<compile_context>
chip_gen: v7x
topology: tpu7x:2x2x1
jax: 0.10.0
libtpu: 0.0.40
codegen_flags: <defaults>
</compile_context>

<pallas_src>
import jax
import jax.numpy as jnp
from jax.experimental import pallas as pl
from jax.experimental.pallas import tpu as pltpu


def _leaky_relu(h, slope=0.2):
    return jnp.where(h > 0, h, slope * h)


def disc_kernel(x_ref,
                w1_ref, b1_ref,
                w2_ref, b2_ref,
                w3_ref, b3_ref,
                w4_ref, b4_ref,
                o_ref):
    # Layer 1: bf16 x bf16 -> f32 accumulate on the MXU.
    h = jnp.dot(x_ref[...], w1_ref[...], preferred_element_type=jnp.float32)
    h = _leaky_relu(h + b1_ref[...])                      # f32 epilogue (VPU)

    # Layer 2.
    h = jnp.dot(h.astype(jnp.bfloat16), w2_ref[...],
                preferred_element_type=jnp.float32)
    h = _leaky_relu(h + b2_ref[...])

    # Layer 3.
    h = jnp.dot(h.astype(jnp.bfloat16), w3_ref[...],
                preferred_element_type=jnp.float32)
    h = _leaky_relu(h + b3_ref[...])

    # Layer 4 (out_dim == 1): VPU multiply + lane reduction instead of an
    # N=1 MXU matmul.  w4_ref is the weight stored as a (1, 128) row, f32.
    logit = jnp.sum(h * w4_ref[...], axis=-1, keepdims=True) + b4_ref[...]

    # Lane-dense store: broadcast the logit across 128 lanes; wrapper slices col 0.
    o_ref[...] = jnp.broadcast_to(logit, o_ref.shape).astype(o_ref.dtype)


def discriminator_forward(x, params, tile_b=256):
    """x: (B, im_dim) float32. params: dict with w1..w4 (in,out) and b1..b4 (1,out)."""
    B, im_dim = x.shape

    # Pad feature dim up to a multiple of 128 (784 -> 896) and batch up to TILE_B.
    feat_pad = (-im_dim) % 128
    im_dim_p = im_dim + feat_pad
    n_tiles = (B + tile_b - 1) // tile_b
    Bp = n_tiles * tile_b

    x_p = jnp.pad(x, ((0, Bp - B), (0, feat_pad))).astype(jnp.bfloat16)

    w1 = jnp.pad(params["w1"], ((0, feat_pad), (0, 0))).astype(jnp.bfloat16)
    w2 = params["w2"].astype(jnp.bfloat16)
    w3 = params["w3"].astype(jnp.bfloat16)
    w4_row = params["w4"].T.astype(jnp.float32)            # (1, hidden)
    b1, b2, b3, b4 = params["b1"], params["b2"], params["b3"], params["b4"]

    hidden = w3.shape[1]                                    # 128

    # Weights/biases: constant block index -> resident in VMEM across batch tiles.
    const = lambda a: pl.BlockSpec(a.shape, lambda i: (0,) * a.ndim)

    out_padded = pl.pallas_call(
        disc_kernel,
        out_shape=jax.ShapeDtypeStruct((Bp, hidden), jnp.float32),
        grid_spec=pltpu.PrefetchScalarGridSpec(
            num_scalar_prefetch=0,
            grid=(n_tiles,),
            in_specs=[
                pl.BlockSpec((tile_b, im_dim_p), lambda i: (i, 0)),   # x tile
                const(w1), const(b1),
                const(w2), const(b2),
                const(w3), const(b3),
                const(w4_row), const(b4),
            ],
            out_specs=pl.BlockSpec((tile_b, hidden), lambda i: (i, 0)),
        ),
        compiler_params=pltpu.CompilerParams(
            dimension_semantics=("parallel",)),              # shards batch tiles on v7x
    )(x_p, w1, b1, w2, b2, w3, b3, w4_row, b4)

    # Slice off the batch padding and the lane-dense output padding.
    return out_padded[:B, :1]


def init_params(key, im_dim=784, hidden_dim=128):
    """Deterministic synthetic init (PyTorch-Linear-shaped, stored as (in, out))."""
    dims = [im_dim, hidden_dim * 4, hidden_dim * 2, hidden_dim, 1]
    params = {}
    for i in range(4):
        key, kw, kb = jax.random.split(key, 3)
        fan_in, fan_out = dims[i], dims[i + 1]
        bound = 1.0 / jnp.sqrt(fan_in)
        params[f"w{i+1}"] = jax.random.uniform(
            kw, (fan_in, fan_out), jnp.float32, -bound, bound)
        params[f"b{i+1}"] = jax.random.uniform(
            kb, (1, fan_out), jnp.float32, -bound, bound)
    return params


def discriminator_ref(x, params):
    """Pure-JAX reference matching the kernel's bf16-matmul / f32-accumulate numerics."""
    h = x.astype(jnp.bfloat16)
    for i in range(1, 4):
        h = jnp.dot(h, params[f"w{i}"].astype(jnp.bfloat16),
                    preferred_element_type=jnp.float32) + params[f"b{i}"]
        h = jnp.where(h > 0, h, 0.2 * h)
        if i < 3:
            h = h.astype(jnp.bfloat16)
    return jnp.sum(h * params["w4"].T, axis=-1, keepdims=True) + params["b4"]


def discriminator_ref_f32(x, params):
    """Full-precision reference of the PyTorch forward (loose sanity check)."""
    h = x
    for i in range(1, 4):
        h = h @ params[f"w{i}"] + params[f"b{i}"]
        h = jnp.where(h > 0, h, 0.2 * h)
    return h @ params["w4"] + params["b4"]


if __name__ == "__main__":
    key = jax.random.PRNGKey(0)
    key, kx = jax.random.split(key)

    im_dim, hidden_dim, batch = 784, 128, 8
    params = init_params(key, im_dim=im_dim, hidden_dim=hidden_dim)
    x = jax.random.normal(kx, (batch, im_dim), dtype=jnp.float32)

    out = discriminator_forward(x, params)
    out = jax.block_until_ready(out)

    assert out.shape == (batch, 1), out.shape

    ref_bf16 = discriminator_ref(x, params)
    assert jnp.allclose(out, ref_bf16, atol=2e-3, rtol=2e-3), "mismatch vs bf16 reference"

    ref_f32 = discriminator_ref_f32(x, params)
    assert jnp.allclose(out, ref_f32, atol=5e-2, rtol=5e-2), "mismatch vs f32 reference"

    print("KERNEL_OK")
</pallas_src>

<mosaic_0001>
module attributes {stable_mosaic.version = 11 : i64} {
  func.func @disc_kernel(%arg0: i32, %arg1: memref<256x896xbf16, #tpu.memory_space<vmem>>, %arg2: memref<896x512xbf16, #tpu.memory_space<vmem>>, %arg3: memref<1x512xf32, #tpu.memory_space<vmem>>, %arg4: memref<512x256xbf16, #tpu.memory_space<vmem>>, %arg5: memref<1x256xf32, #tpu.memory_space<vmem>>, %arg6: memref<256x128xbf16, #tpu.memory_space<vmem>>, %arg7: memref<1x128xf32, #tpu.memory_space<vmem>>, %arg8: memref<1x128xf32, #tpu.memory_space<vmem>>, %arg9: memref<1x1xf32, #tpu.memory_space<vmem>>, %arg10: memref<256x128xf32, #tpu.memory_space<vmem>>) attributes {dimension_semantics = [#tpu.dimension_semantics<parallel>], iteration_bounds = array<i64: 1>, scalar_prefetch = 0 : i64, scratch_operands = 0 : i64, tpu.core_type = #tpu.core_type<tc>, window_params = [{transform_indices = @transform_0, window_bounds = array<i64: 256, 896>}, {pipeline_mode = #tpu.pipeline_mode<synchronous>, transform_indices = @transform_1, window_bounds = array<i64: 896, 512>}, {pipeline_mode = #tpu.pipeline_mode<synchronous>, transform_indices = @transform_2, window_bounds = array<i64: 1, 512>}, {pipeline_mode = #tpu.pipeline_mode<synchronous>, transform_indices = @transform_3, window_bounds = array<i64: 512, 256>}, {pipeline_mode = #tpu.pipeline_mode<synchronous>, transform_indices = @transform_4, window_bounds = array<i64: 1, 256>}, {pipeline_mode = #tpu.pipeline_mode<synchronous>, transform_indices = @transform_5, window_bounds = array<i64: 256, 128>}, {pipeline_mode = #tpu.pipeline_mode<synchronous>, transform_indices = @transform_6, window_bounds = array<i64: 1, 128>}, {pipeline_mode = #tpu.pipeline_mode<synchronous>, transform_indices = @transform_7, window_bounds = array<i64: 1, 128>}, {pipeline_mode = #tpu.pipeline_mode<synchronous>, transform_indices = @transform_8, window_bounds = array<i64: 1, 1>}, {transform_indices = @transform_9, window_bounds = array<i64: 256, 128>}]} {
    %c0 = arith.constant 0 : index
    %c0_0 = arith.constant 0 : index
    %0 = vector.load %arg1[%c0, %c0_0] : memref<256x896xbf16, #tpu.memory_space<vmem>>, vector<256x896xbf16>
    %c0_1 = arith.constant 0 : index
    %c0_2 = arith.constant 0 : index
    %1 = vector.load %arg2[%c0_1, %c0_2] : memref<896x512xbf16, #tpu.memory_space<vmem>>, vector<896x512xbf16>
    %cst = arith.constant dense<0.000000e+00> : vector<256x512xf32>
    %2 = tpu.matmul %0, %1, %cst {dimension_numbers = #tpu.dot_dimension_numbers<[1], [0], [0], [1], [0, 0, 1, 1], [], []>} : vector<256x896xbf16>, vector<896x512xbf16>, vector<256x512xf32> -> vector<256x512xf32>
    %c0_3 = arith.constant 0 : index
    %c0_4 = arith.constant 0 : index
    %3 = vector.load %arg3[%c0_3, %c0_4] : memref<1x512xf32, #tpu.memory_space<vmem>>, vector<1x512xf32>
    %4 = vector.broadcast %3 : vector<1x512xf32> to vector<256x512xf32>
    %5 = arith.addf %2, %4 : vector<256x512xf32>
    %cst_5 = arith.constant 0.000000e+00 : f32
    %6 = vector.broadcast %cst_5 : f32 to vector<256x512xf32>
    %7 = arith.cmpf ogt, %5, %6 : vector<256x512xf32>
    %cst_6 = arith.constant 2.000000e-01 : f32
    %8 = vector.broadcast %cst_6 : f32 to vector<256x512xf32>
    %9 = arith.mulf %8, %5 : vector<256x512xf32>
    %10 = arith.select %7, %5, %9 : vector<256x512xi1>, vector<256x512xf32>
    %11 = arith.truncf %10 : vector<256x512xf32> to vector<256x512xbf16>
    %c0_7 = arith.constant 0 : index
    %c0_8 = arith.constant 0 : index
    %12 = vector.load %arg4[%c0_7, %c0_8] : memref<512x256xbf16, #tpu.memory_space<vmem>>, vector<512x256xbf16>
    %cst_9 = arith.constant dense<0.000000e+00> : vector<256x256xf32>
    %13 = tpu.matmul %11, %12, %cst_9 {dimension_numbers = #tpu.dot_dimension_numbers<[1], [0], [0], [1], [0, 0, 1, 1], [], []>} : vector<256x512xbf16>, vector<512x256xbf16>, vector<256x256xf32> -> vector<256x256xf32>
    %c0_10 = arith.constant 0 : index
    %c0_11 = arith.constant 0 : index
    %14 = vector.load %arg5[%c0_10, %c0_11] : memref<1x256xf32, #tpu.memory_space<vmem>>, vector<1x256xf32>
    %15 = vector.broadcast %14 : vector<1x256xf32> to vector<256x256xf32>
    %16 = arith.addf %13, %15 : vector<256x256xf32>
    %cst_12 = arith.constant 0.000000e+00 : f32
    %17 = vector.broadcast %cst_12 : f32 to vector<256x256xf32>
    %18 = arith.cmpf ogt, %16, %17 : vector<256x256xf32>
    %cst_13 = arith.constant 2.000000e-01 : f32
    %19 = vector.broadcast %cst_13 : f32 to vector<256x256xf32>
    %20 = arith.mulf %19, %16 : vector<256x256xf32>
    %21 = arith.select %18, %16, %20 : vector<256x256xi1>, vector<256x256xf32>
    %22 = arith.truncf %21 : vector<256x256xf32> to vector<256x256xbf16>
    %c0_14 = arith.constant 0 : index
    %c0_15 = arith.constant 0 : index
    %23 = vector.load %arg6[%c0_14, %c0_15] : memref<256x128xbf16, #tpu.memory_space<vmem>>, vector<256x128xbf16>
    %cst_16 = arith.constant dense<0.000000e+00> : vector<256x128xf32>
    %24 = tpu.matmul %22, %23, %cst_16 {dimension_numbers = #tpu.dot_dimension_numbers<[1], [0], [0], [1], [0, 0, 1, 1], [], []>} : vector<256x256xbf16>, vector<256x128xbf16>, vector<256x128xf32> -> vector<256x128xf32>
    %c0_17 = arith.constant 0 : index
    %c0_18 = arith.constant 0 : index
    %25 = vector.load %arg7[%c0_17, %c0_18] : memref<1x128xf32, #tpu.memory_space<vmem>>, vector<1x128xf32>
    %26 = vector.broadcast %25 : vector<1x128xf32> to vector<256x128xf32>
    %27 = arith.addf %24, %26 : vector<256x128xf32>
    %cst_19 = arith.constant 0.000000e+00 : f32
    %28 = vector.broadcast %cst_19 : f32 to vector<256x128xf32>
    %29 = arith.cmpf ogt, %27, %28 : vector<256x128xf32>
    %cst_20 = arith.constant 2.000000e-01 : f32
    %30 = vector.broadcast %cst_20 : f32 to vector<256x128xf32>
    %31 = arith.mulf %30, %27 : vector<256x128xf32>
    %32 = arith.select %29, %27, %31 : vector<256x128xi1>, vector<256x128xf32>
    %c0_21 = arith.constant 0 : index
    %c0_22 = arith.constant 0 : index
    %33 = vector.load %arg8[%c0_21, %c0_22] : memref<1x128xf32, #tpu.memory_space<vmem>>, vector<1x128xf32>
    %34 = vector.broadcast %33 : vector<1x128xf32> to vector<256x128xf32>
    %35 = arith.mulf %32, %34 : vector<256x128xf32>
    %cst_23 = arith.constant dense<0.000000e+00> : vector<256xf32>
    %36 = vector.multi_reduction <add>, %35, %cst_23 [1] : vector<256x128xf32> to vector<256xf32>
    %37 = vector.shape_cast %36 : vector<256xf32> to vector<256x1xf32>
    %c0_24 = arith.constant 0 : index
    %c0_25 = arith.constant 0 : index
    %38 = vector.load %arg9[%c0_24, %c0_25] : memref<1x1xf32, #tpu.memory_space<vmem>>, vector<1x1xf32>
    %39 = vector.broadcast %38 : vector<1x1xf32> to vector<256x1xf32>
    %40 = arith.addf %37, %39 : vector<256x1xf32>
    %41 = vector.shape_cast %40 : vector<256x1xf32> to vector<256x1xf32>
    %42 = vector.broadcast %41 : vector<256x1xf32> to vector<256x128xf32>
    %c0_26 = arith.constant 0 : index
    %c0_27 = arith.constant 0 : index
    %43 = vector.load %arg10[%c0_26, %c0_27] : memref<256x128xf32, #tpu.memory_space<vmem>>, vector<256x128xf32>
    tpu.vector_store %arg10[%c0_26, %c0_27], %42 {strides = array<i32>} : memref<256x128xf32, #tpu.memory_space<vmem>>, vector<256x128xf32>,
    return
  }
  func.func @transform_0(%arg0: i32) -> (i32, i32) {
    %c0_i32 = arith.constant 0 : i32
    %c0_i32_0 = arith.constant 0 : i32
    return %arg0, %c0_i32 : i32, i32
  }
  func.func @transform_1(%arg0: i32) -> (i32, i32) {
    %c0_i32 = arith.constant 0 : i32
    %c0_i32_0 = arith.constant 0 : i32
    %c0_i32_1 = arith.constant 0 : i32
    return %c0_i32, %c0_i32_0 : i32, i32
  }
  func.func @transform_2(%arg0: i32) -> (i32, i32) {
    %c0_i32 = arith.constant 0 : i32
    %c0_i32_0 = arith.constant 0 : i32
    %c0_i32_1 = arith.constant 0 : i32
    return %c0_i32, %c0_i32_0 : i32, i32
  }
  func.func @transform_3(%arg0: i32) -> (i32, i32) {
    %c0_i32 = arith.constant 0 : i32
    %c0_i32_0 = arith.constant 0 : i32
    %c0_i32_1 = arith.constant 0 : i32
    return %c0_i32, %c0_i32_0 : i32, i32
  }
  func.func @transform_4(%arg0: i32) -> (i32, i32) {
    %c0_i32 = arith.constant 0 : i32
    %c0_i32_0 = arith.constant 0 : i32
    %c0_i32_1 = arith.constant 0 : i32
    return %c0_i32, %c0_i32_0 : i32, i32
  }
  func.func @transform_5(%arg0: i32) -> (i32, i32) {
    %c0_i32 = arith.constant 0 : i32
    %c0_i32_0 = arith.constant 0 : i32
    %c0_i32_1 = arith.constant 0 : i32
    return %c0_i32, %c0_i32_0 : i32, i32
  }
  func.func @transform_6(%arg0: i32) -> (i32, i32) {
    %c0_i32 = arith.constant 0 : i32
    %c0_i32_0 = arith.constant 0 : i32
    %c0_i32_1 = arith.constant 0 : i32
    return %c0_i32, %c0_i32_0 : i32, i32
  }
  func.func @transform_7(%arg0: i32) -> (i32, i32) {
    %c0_i32 = arith.constant 0 : i32
    %c0_i32_0 = arith.constant 0 : i32
    %c0_i32_1 = arith.constant 0 : i32
    return %c0_i32, %c0_i32_0 : i32, i32
  }
  func.func @transform_8(%arg0: i32) -> (i32, i32) {
    %c0_i32 = arith.constant 0 : i32
    %c0_i32_0 = arith.constant 0 : i32
    %c0_i32_1 = arith.constant 0 : i32
    return %c0_i32, %c0_i32_0 : i32, i32
  }
  func.func @transform_9(%arg0: i32) -> (i32, i32) {
    %c0_i32 = arith.constant 0 : i32
    %c0_i32_0 = arith.constant 0 : i32
    return %arg0, %c0_i32 : i32, i32
  }
}

</mosaic_0001>

<llo_original>
// kernel: tpu_custom_call.1
$region0: #{tpu_custom_call.1}
  #allocation0 [shape = 'u32[]', space=smem, size = 0x4, offset = 0x4, fixed_abs, tag = 'smem constant byte address 0x4 - core index']
  #allocation1 [shape = 'u32[144,128]{1,0:T(1,128)}', space=vmem, size = 0x12000, scoped, tag = 'internal scratch']
  #allocation2 [shape = 'f32[1,1]{1,0:T(1,128)S(1)}', space=vmem, size = 0x200, scoped, tag = 'scoped memory for tpu_custom_call.1']
  %s0 = inlined_call_operand.hbm [shape: bf16[256,896], index: 0, kind: input, shape index: {}]
  %s1 = inlined_call_operand.hbm [shape: bf16[896,512], index: 1, kind: input, shape index: {}]
  %s2 = inlined_call_operand.vmem [shape: f32[1,512], index: 2, kind: input, shape index: {}]
  %s3 = inlined_call_operand.hbm [shape: bf16[512,256], index: 3, kind: input, shape index: {}]
  %s4 = inlined_call_operand.vmem [shape: f32[1,256], index: 4, kind: input, shape index: {}]
  %s5 = inlined_call_operand.hbm [shape: bf16[256,128], index: 5, kind: input, shape index: {}]
  %s6 = inlined_call_operand.vmem [shape: f32[1,128], index: 6, kind: input, shape index: {}]
  %s7 = inlined_call_operand.vmem [shape: f32[1,128], index: 7, kind: input, shape index: {}]
  %s8 = inlined_call_operand.<no memory space> [shape: f32[1,1], index: 8, kind: input, shape index: {}]
  %s9 = inlined_call_operand.hbm [shape: f32[256,128], index: 9, kind: output, shape index: {}]
  %s10 = sld [smem:[#allocation0]]
  $region62: #{tpu_custom_call.1} parent=0
    _
  %s12 = ssub.s32 1, %s10
  %s13 = scalar_select 0, %s12, %s10
  %v14 = vstv %s8
  %15 = vst [vmem:[#allocation2] sm:$0x1] %v14
  $region1: #{tpu_custom_call.1} parent=0
    #allocation3 [shape = 'u8[458752]{0}', space=vmem, size = 0x70000, scoped, tag = 'input window, operand 0, single buffered']
    #allocation4 [shape = 's32[1]{0}', space=sflag, size = 0x4, scoped, tag = 'scoped memory for tpu_custom_call.1']
    #allocation5 [shape = 's32[1]{0}', space=sflag, size = 0x4, scoped, tag = 'scoped memory for tpu_custom_call.1']
    #allocation6 [shape = 'u8[917504]{0}', space=vmem, size = 0xe0000, scoped, tag = 'input window, operand 1, single buffered']
    #allocation7 [shape = 's32[1]{0}', space=sflag, size = 0x4, scoped, tag = 'scoped memory for tpu_custom_call.1']
    #allocation8 [shape = 'u8[262144]{0}', space=vmem, size = 0x40000, scoped, tag = 'input window, operand 3, single buffered']
    #allocation9 [shape = 'u8[65536]{0}', space=vmem, size = 0x10000, scoped, tag = 'input window, operand 5, single buffered']
    #allocation10 [shape = 's32[1]{0}', space=sflag, size = 0x4, scoped, tag = 'scoped memory for tpu_custom_call.1']
    #allocation11 [shape = 'u8[131072]{0}', space=vmem, size = 0x20000, scoped, tag = 'output window, operand 0, single buffered']
    %16 = vsyncpa [#allocation4], 0
    %17 = vsyncpa [#allocation7], 0
    %18 = vsyncpa [#allocation10], 0
    %19 = vsyncpa [#allocation5], 0
    // Predicated region
    $region2: #{tpu_custom_call.1} parent=1 // pred_check
      _
    $region3: #{tpu_custom_call.1} parent=1 // pred_check_branch
      %21 = sbr.rel (0) target = $region5
    $region4: #{tpu_custom_call.1} parent=1 // pred_region
      %s23 = ssub.s32 14336, 14336
      %24 = vsyncadd [#allocation4], %s23
      %s25 = sshll.u32 [#allocation3], 4
      %s26 = int_to_ptr.vmem [resolvable:$true] %s25
      %31 = dma.hbm_to_vmem [thread:$0]  %s0, 14336, %s26, [#allocation4], 448, 448, 28
    $region5: #{tpu_custom_call.1} parent=1 // pred_fallthru
      _
    // Predicated region
    $region6: #{tpu_custom_call.1} parent=1 // pred_check
      _
    $region7: #{tpu_custom_call.1} parent=1 // pred_check_branch
      %33 = sbr.rel (0) target = $region9
    $region8: #{tpu_custom_call.1} parent=1 // pred_region
      %s35 = ssub.s32 28672, 28672
      %36 = vsyncadd [#allocation7], %s35
      %s37 = sshll.u32 [#allocation6], 4
      %s38 = int_to_ptr.vmem [resolvable:$true] %s37
      %43 = dma.hbm_to_vmem [thread:$0]  %s1, 28672, %s38, [#allocation7], 256, 256, 16
    $region9: #{tpu_custom_call.1} parent=1 // pred_fallthru
      _
    // Predicated region
    $region10: #{tpu_custom_call.1} parent=1 // pred_check
      _
    $region11: #{tpu_custom_call.1} parent=1 // pred_check_branch
      %45 = sbr.rel (0) target = $region13
    $region12: #{tpu_custom_call.1} parent=1 // pred_region
      _
    $region13: #{tpu_custom_call.1} parent=1 // pred_fallthru
      _
    // Predicated region
    $region14: #{tpu_custom_call.1} parent=1 // pred_check
      _
    $region15: #{tpu_custom_call.1} parent=1 // pred_check_branch
      %47 = sbr.rel (0) target = $region17
    $region16: #{tpu_custom_call.1} parent=1 // pred_region
      %s49 = ssub.s32 8192, 8192
      %50 = vsyncadd [#allocation7], %s49
      %s51 = sshll.u32 [#allocation8], 4
      %s52 = int_to_ptr.vmem [resolvable:$true] %s51
      %57 = dma.hbm_to_vmem [thread:$0]  %s3, 8192, %s52, [#allocation7], 128, 128, 8
    $region17: #{tpu_custom_call.1} parent=1 // pred_fallthru
      _
    // Predicated region
    $region18: #{tpu_custom_call.1} parent=1 // pred_check
      _
    $region19: #{tpu_custom_call.1} parent=1 // pred_check_branch
      %59 = sbr.rel (0) target = $region21
    $region20: #{tpu_custom_call.1} parent=1 // pred_region
      _
    $region21: #{tpu_custom_call.1} parent=1 // pred_fallthru
      _
    // Predicated region
    $region22: #{tpu_custom_call.1} parent=1 // pred_check
      _
    $region23: #{tpu_custom_call.1} parent=1 // pred_check_branch
      %61 = sbr.rel (0) target = $region25
    $region24: #{tpu_custom_call.1} parent=1 // pred_region
      %s63 = ssub.s32 2048, 2048
      %64 = vsyncadd [#allocation10], %s63
      %s65 = sshll.u32 [#allocation9], 4
      %s66 = int_to_ptr.vmem [resolvable:$true] %s65
      %71 = dma.hbm_to_vmem [thread:$0]  %s5, 2048, %s66, [#allocation10], 64, 64, 4
    $region25: #{tpu_custom_call.1} parent=1 // pred_fallthru
      _
    // Predicated region
    $region26: #{tpu_custom_call.1} parent=1 // pred_check
      _
    $region27: #{tpu_custom_call.1} parent=1 // pred_check_branch
      %73 = sbr.rel (0) target = $region29
    $region28: #{tpu_custom_call.1} parent=1 // pred_region
      _
    $region29: #{tpu_custom_call.1} parent=1 // pred_fallthru
      _
    // Predicated region
    $region30: #{tpu_custom_call.1} parent=1 // pred_check
      _
    $region31: #{tpu_custom_call.1} parent=1 // pred_check_branch
      %75 = sbr.rel (0) target = $region33
    $region32: #{tpu_custom_call.1} parent=1 // pred_region
      _
    $region33: #{tpu_custom_call.1} parent=1 // pred_fallthru
      _
    // Predicated region
    $region34: #{tpu_custom_call.1} parent=1 // pred_check
      _
    $region35: #{tpu_custom_call.1} parent=1 // pred_check_branch
      %77 = sbr.rel (0) target = $region37
    $region36: #{tpu_custom_call.1} parent=1 // pred_region
      _
    $region37: #{tpu_custom_call.1} parent=1 // pred_fallthru
      _
    // Predicated region
    $region38: #{tpu_custom_call.1} parent=1 // pred_check
      _
    $region39: #{tpu_custom_call.1} parent=1 // pred_check_branch
      %79 = sbr.rel (0) target = $region41
    $region40: #{tpu_custom_call.1} parent=1 // pred_region
      %80 = dma.done [#allocation4], 14336
    $region41: #{tpu_custom_call.1} parent=1 // pred_fallthru
      _
    // Predicated region
    $region42: #{tpu_custom_call.1} parent=1 // pred_check
      _
    $region43: #{tpu_custom_call.1} parent=1 // pred_check_branch
      %82 = sbr.rel (0) target = $region45
    $region44: #{tpu_custom_call.1} parent=1 // pred_region
      %83 = dma.done [#allocation7], 28672
    $region45: #{tpu_custom_call.1} parent=1 // pred_fallthru
      _
    // Predicated region
    $region46: #{tpu_custom_call.1} parent=1 // pred_check
      _
    $region47: #{tpu_custom_call.1} parent=1 // pred_check_branch
      %85 = sbr.rel (0) target = $region49
    $region48: #{tpu_custom_call.1} parent=1 // pred_region
      %86 = dma.done [#allocation7], 8192
    $region49: #{tpu_custom_call.1} parent=1 // pred_fallthru
      _
    // Predicated region
    $region50: #{tpu_custom_call.1} parent=1 // pred_check
      _
    $region51: #{tpu_custom_call.1} parent=1 // pred_check_branch
      %88 = sbr.rel (0) target = $region53
    $region52: #{tpu_custom_call.1} parent=1 // pred_region
      %89 = dma.done [#allocation10], 2048
    $region53: #{tpu_custom_call.1} parent=1 // pred_fallthru
      _
    %v91 = vld [vmem:[#allocation3] sm:$0xff]
    %v92 = vld [vmem:[#allocation3 + $0x8] sm:$0xff]
    %v93 = vld [vmem:[#allocation3 + $0x10] sm:$0xff]
    %v94 = vld [vmem:[#allocation3 + $0x18] sm:$0xf]
    %v95 = vld [vmem:[#allocation3 + $0x1c] sm:$0xff]
    %v96 = vld [vmem:[#allocation3 + $0x24] sm:$0xff]
    %v97 = vld [vmem:[#allocation3 + $0x2c] sm:$0xff]
    %v98 = vld [vmem:[#allocation3 + $0x34] sm:$0xf]
    %v99 = vld [vmem:[#allocation3 + $0x38] sm:$0xff]
    %v100 = vld [vmem:[#allocation3 + $0x40] sm:$0xff]
    %v101 = vld [vmem:[#allocation3 + $0x48] sm:$0xff]
    %v102 = vld [vmem:[#allocation3 + $0x50] sm:$0xf]
    %v103 = vld [vmem:[#allocation3 + $0x54] sm:$0xff]
    %v104 = vld [vmem:[#allocation3 + $0x5c] sm:$0xff]
    %v105 = vld [vmem:[#allocation3 + $0x64] sm:$0xff]
    %v106 = vld [vmem:[#allocation3 + $0x6c] sm:$0xf]
    %v107 = vld [vmem:[#allocation3 + $0x70] sm:$0xff]
    %v108 = vld [vmem:[#allocation3 + $0x78] sm:$0xff]
    %v109 = vld [vmem:[#allocation3 + $0x80] sm:$0xff]
    %v110 = vld [vmem:[#allocation3 + $0x88] sm:$0xf]
    %v111 = vld [vmem:[#allocation3 + $0x8c] sm:$0xff]
    %v112 = vld [vmem:[#allocation3 + $0x94] sm:$0xff]
    %v113 = vld [vmem:[#allocation3 + $0x9c] sm:$0xff]
    %v114 = vld [vmem:[#allocation3 + $0xa4] sm:$0xf]
    %v115 = vld [vmem:[#allocation3 + $0xa8] sm:$0xff]
    %v116 = vld [vmem:[#allocation3 + $0xb0] sm:$0xff]
    %v117 = vld [vmem:[#allocation3 + $0xb8] sm:$0xff]
    %v118 = vld [vmem:[#allocation3 + $0xc0] sm:$0xf]
    %v119 = vld [vmem:[#allocation3 + $0xc4] sm:$0xff]
    %v120 = vld [vmem:[#allocation3 + $0xcc] sm:$0xff]
    %v121 = vld [vmem:[#allocation3 + $0xd4] sm:$0xff]
    %v122 = vld [vmem:[#allocation3 + $0xdc] sm:$0xf]
    %v123 = vld [vmem:[#allocation3 + $0xe0] sm:$0xff]
    %v124 = vld [vmem:[#allocation3 + $0xe8] sm:$0xff]
    %v125 = vld [vmem:[#allocation3 + $0xf0] sm:$0xff]
    %v126 = vld [vmem:[#allocation3 + $0xf8] sm:$0xf]
    %v127 = vld [vmem:[#allocation3 + $0xfc] sm:$0xff]
    %v128 = vld [vmem:[#allocation3 + $0x104] sm:$0xff]
    %v129 = vld [vmem:[#allocation3 + $0x10c] sm:$0xff]
    %v130 = vld [vmem:[#allocation3 + $0x114] sm:$0xf]
    %v131 = vld [vmem:[#allocation3 + $0x118] sm:$0xff]
    %v132 = vld [vmem:[#allocation3 + $0x120] sm:$0xff]
    %v133 = vld [vmem:[#allocation3 + $0x128] sm:$0xff]
    %v134 = vld [vmem:[#allocation3 + $0x130] sm:$0xf]
    %v135 = vld [vmem:[#allocation3 + $0x134] sm:$0xff]
    %v136 = vld [vmem:[#allocation3 + $0x13c] sm:$0xff]
    %v137 = vld [vmem:[#allocation3 + $0x144] sm:$0xff]
    %v138 = vld [vmem:[#allocation3 + $0x14c] sm:$0xf]
    %v139 = vld [vmem:[#allocation3 + $0x150] sm:$0xff]
    %v140 = vld [vmem:[#allocation3 + $0x158] sm:$0xff]
    %v141 = vld [vmem:[#allocation3 + $0x160] sm:$0xff]
    %v142 = vld [vmem:[#allocation3 + $0x168] sm:$0xf]
    %v143 = vld [vmem:[#allocation3 + $0x16c] sm:$0xff]
    %v144 = vld [vmem:[#allocation3 + $0x174] sm:$0xff]
    %v145 = vld [vmem:[#allocation3 + $0x17c] sm:$0xff]
    %v146 = vld [vmem:[#allocation3 + $0x184] sm:$0xf]
    %v147 = vld [vmem:[#allocation3 + $0x188] sm:$0xff]
    %v148 = vld [vmem:[#allocation3 + $0x190] sm:$0xff]
    %v149 = vld [vmem:[#allocation3 + $0x198] sm:$0xff]
    %v150 = vld [vmem:[#allocation3 + $0x1a0] sm:$0xf]
    %v151 = vld [vmem:[#allocation3 + $0x1a4] sm:$0xff]
    %v152 = vld [vmem:[#allocation3 + $0x1ac] sm:$0xff]
    %v153 = vld [vmem:[#allocation3 + $0x1b4] sm:$0xff]
    %v154 = vld [vmem:[#allocation3 + $0x1bc] sm:$0xf]
    %v155 = vld [vmem:[#allocation3 + $0x1c0] sm:$0xff]
    %v156 = vld [vmem:[#allocation3 + $0x1c8] sm:$0xff]
    %v157 = vld [vmem:[#allocation3 + $0x1d0] sm:$0xff]
    %v158 = vld [vmem:[#allocation3 + $0x1d8] sm:$0xf]
    %v159 = vld [vmem:[#allocation3 + $0x1dc] sm:$0xff]
    %v160 = vld [vmem:[#allocation3 + $0x1e4] sm:$0xff]
    %v161 = vld [vmem:[#allocation3 + $0x1ec] sm:$0xff]
    %v162 = vld [vmem:[#allocation3 + $0x1f4] sm:$0xf]
    %v163 = vld [vmem:[#allocation3 + $0x1f8] sm:$0xff]
    %v164 = vld [vmem:[#allocation3 + $0x200] sm:$0xff]
    %v165 = vld [vmem:[#allocation3 + $0x208] sm:$0xff]
    %v166 = vld [vmem:[#allocation3 + $0x210] sm:$0xf]
    %v167 = vld [vmem:[#allocation3 + $0x214] sm:$0xff]
    %v168 = vld [vmem:[#allocation3 + $0x21c] sm:$0xff]
    %v169 = vld [vmem:[#allocation3 + $0x224] sm:$0xff]
    %v170 = vld [vmem:[#allocation3 + $0x22c] sm:$0xf]
    %v171 = vld [vmem:[#allocation3 + $0x230] sm:$0xff]
    %v172 = vld [vmem:[#allocation3 + $0x238] sm:$0xff]
    %v173 = vld [vmem:[#allocation3 + $0x240] sm:$0xff]
    %v174 = vld [vmem:[#allocation3 + $0x248] sm:$0xf]
    %v175 = vld [vmem:[#allocation3 + $0x24c] sm:$0xff]
    %v176 = vld [vmem:[#allocation3 + $0x254] sm:$0xff]
    %v177 = vld [vmem:[#allocation3 + $0x25c] sm:$0xff]
    %v178 = vld [vmem:[#allocation3 + $0x264] sm:$0xf]
    %v179 = vld [vmem:[#allocation3 + $0x268] sm:$0xff]
    %v180 = vld [vmem:[#allocation3 + $0x270] sm:$0xff]
    %v181 = vld [vmem:[#allocation3 + $0x278] sm:$0xff]
    %v182 = vld [vmem:[#allocation3 + $0x280] sm:$0xf]
    %v183 = vld [vmem:[#allocation3 + $0x284] sm:$0xff]
    %v184 = vld [vmem:[#allocation3 + $0x28c] sm:$0xff]
    %v185 = vld [vmem:[#allocation3 + $0x294] sm:$0xff]
    %v186 = vld [vmem:[#allocation3 + $0x29c] sm:$0xf]
    %v187 = vld [vmem:[#allocation3 + $0x2a0] sm:$0xff]
    %v188 = vld [vmem:[#allocation3 + $0x2a8] sm:$0xff]
    %v189 = vld [vmem:[#allocation3 + $0x2b0] sm:$0xff]
    %v190 = vld [vmem:[#allocation3 + $0x2b8] sm:$0xf]
    %v191 = vld [vmem:[#allocation3 + $0x2bc] sm:$0xff]
    %v192 = vld [vmem:[#allocation3 + $0x2c4] sm:$0xff]
    %v193 = vld [vmem:[#allocation3 + $0x2cc] sm:$0xff]
    %v194 = vld [vmem:[#allocation3 + $0x2d4] sm:$0xf]
    %v195 = vld [vmem:[#allocation3 + $0x2d8] sm:$0xff]
    %v196 = vld [vmem:[#allocation3 + $0x2e0] sm:$0xff]
    %v197 = vld [vmem:[#allocation3 + $0x2e8] sm:$0xff]
    %v198 = vld [vmem:[#allocation3 + $0x2f0] sm:$0xf]
    %v199 = vld [vmem:[#allocation3 + $0x2f4] sm:$0xff]
    %v200 = vld [vmem:[#allocation3 + $0x2fc] sm:$0xff]
    %v201 = vld [vmem:[#allocation3 + $0x304] sm:$0xff]
    %v202 = vld [vmem:[#allocation3 + $0x30c] sm:$0xf]
    %v203 = vld [vmem:[#allocation3 + $0x310] sm:$0xff]
    %v204 = vld [vmem:[#allocation3 + $0x318] sm:$0xff]
    %v205 = vld [vmem:[#allocation3 + $0x320] sm:$0xff]
    %v206 = vld [vmem:[#allocation3 + $0x328] sm:$0xf]
    %v207 = vld [vmem:[#allocation3 + $0x32c] sm:$0xff]
    %v208 = vld [vmem:[#allocation3 + $0x334] sm:$0xff]
    %v209 = vld [vmem:[#allocation3 + $0x33c] sm:$0xff]
    %v210 = vld [vmem:[#allocation3 + $0x344] sm:$0xf]
    %v211 = vld [vmem:[#allocation3 + $0x348] sm:$0xff]
    %v212 = vld [vmem:[#allocation3 + $0x350] sm:$0xff]
    %v213 = vld [vmem:[#allocation3 + $0x358] sm:$0xff]
    %v214 = vld [vmem:[#allocation3 + $0x360] sm:$0xf]
    %v215 = vld [vmem:[#allocation3 + $0x364] sm:$0xff]
    %v216 = vld [vmem:[#allocation3 + $0x36c] sm:$0xff]
    %v217 = vld [vmem:[#allocation3 + $0x374] sm:$0xff]
    %v218 = vld [vmem:[#allocation3 + $0x37c] sm:$0xf]
    %v219 = vld [vmem:[#allocation6] sm:$0xff]
    %v220 = vld [vmem:[#allocation6 + $0x8] sm:$0xff]
    %v221 = vld [vmem:[#allocation6 + $0x10] sm:$0xff]
    %v222 = vld [vmem:[#allocation6 + $0x18] sm:$0xff]
    %v223 = vld [vmem:[#allocation6 + $0x20] sm:$0xff]
    %v224 = vld [vmem:[#allocation6 + $0x28] sm:$0xff]
    %v225 = vld [vmem:[#allocation6 + $0x30] sm:$0xff]
    %v226 = vld [vmem:[#allocation6 + $0x38] sm:$0xff]
    %v227 = vld [vmem:[#allocation6 + $0x40] sm:$0xff]
    %v228 = vld [vmem:[#allocation6 + $0x48] sm:$0xff]
    %v229 = vld [vmem:[#allocation6 + $0x50] sm:$0xff]
    %v230 = vld [vmem:[#allocation6 + $0x58] sm:$0xff]
    %v231 = vld [vmem:[#allocation6 + $0x60] sm:$0xff]
    %v232 = vld [vmem:[#allocation6 + $0x68] sm:$0xff]
    %v233 = vld [vmem:[#allocation6 + $0x70] sm:$0xff]
    %v234 = vld [vmem:[#allocation6 + $0x78] sm:$0xff]
    %v235 = vld [vmem:[#allocation6 + $0x80] sm:$0xff]
    %v236 = vld [vmem:[#allocation6 + $0x88] sm:$0xff]
    %v237 = vld [vmem:[#allocation6 + $0x90] sm:$0xff]
    %v238 = vld [vmem:[#allocation6 + $0x98] sm:$0xff]
    %v239 = vld [vmem:[#allocation6 + $0xa0] sm:$0xff]
    %v240 = vld [vmem:[#allocation6 + $0xa8] sm:$0xff]
    %v241 = vld [vmem:[#allocation6 + $0xb0] sm:$0xff]
    %v242 = vld [vmem:[#allocation6 + $0xb8] sm:$0xff]
    %v243 = vld [vmem:[#allocation6 + $0xc0] sm:$0xff]
    %v244 = vld [vmem:[#allocation6 + $0xc8] sm:$0xff]
    %v245 = vld [vmem:[#allocation6 + $0xd0] sm:$0xff]
    %v246 = vld [vmem:[#allocation6 + $0xd8] sm:$0xff]
    %v247 = vld [vmem:[#allocation6 + $0xe0] sm:$0xff]
    %v248 = vld [vmem:[#allocation6 + $0xe8] sm:$0xff]
    %v249 = vld [vmem:[#allocation6 + $0xf0] sm:$0xff]
    %v250 = vld [vmem:[#allocation6 + $0xf8] sm:$0xff]
    %v251 = vld [vmem:[#allocation6 + $0x100] sm:$0xff]
    %v252 = vld [vmem:[#allocation6 + $0x108] sm:$0xff]
    %v253 = vld [vmem:[#allocation6 + $0x110] sm:$0xff]
    %v254 = vld [vmem:[#allocation6 + $0x118] sm:$0xff]
    %v255 = vld [vmem:[#allocation6 + $0x120] sm:$0xff]
    %v256 = vld [vmem:[#allocation6 + $0x128] sm:$0xff]
    %v257 = vld [vmem:[#allocation6 + $0x130] sm:$0xff]
    %v258 = vld [vmem:[#allocation6 + $0x138] sm:$0xff]
    %v259 = vld [vmem:[#allocation6 + $0x140] sm:$0xff]
    %v260 = vld [vmem:[#allocation6 + $0x148] sm:$0xff]
    %v261 = vld [vmem:[#allocation6 + $0x150] sm:$0xff]
    %v262 = vld [vmem:[#allocation6 + $0x158] sm:$0xff]
    %v263 = vld [vmem:[#allocation6 + $0x160] sm:$0xff]
    %v264 = vld [vmem:[#allocation6 + $0x168] sm:$0xff]
    %v265 = vld [vmem:[#allocation6 + $0x170] sm:$0xff]
    %v266 = vld [vmem:[#allocation6 + $0x178] sm:$0xff]
    %v267 = vld [vmem:[#allocation6 + $0x180] sm:$0xff]
    %v268 = vld [vmem:[#allocation6 + $0x188] sm:$0xff]
    %v269 = vld [vmem:[#allocation6 + $0x190] sm:$0xff]
    %v270 = vld [vmem:[#allocation6 + $0x198] sm:$0xff]
    %v271 = vld [vmem:[#allocation6 + $0x1a0] sm:$0xff]
    %v272 = vld [vmem:[#allocation6 + $0x1a8] sm:$0xff]
    %v273 = vld [vmem:[#allocation6 + $0x1b0] sm:$0xff]
    %v274 = vld [vmem:[#allocation6 + $0x1b8] sm:$0xff]
    %v275 = vld [vmem:[#allocation6 + $0x1c0] sm:$0xff]
    %v276 = vld [vmem:[#allocation6 + $0x1c8] sm:$0xff]
    %v277 = vld [vmem:[#allocation6 + $0x1d0] sm:$0xff]
    %v278 = vld [vmem:[#allocation6 + $0x1d8] sm:$0xff]
    %v279 = vld [vmem:[#allocation6 + $0x1e0] sm:$0xff]
    %v280 = vld [vmem:[#allocation6 + $0x1e8] sm:$0xff]
    %v281 = vld [vmem:[#allocation6 + $0x1f0] sm:$0xff]
    %v282 = vld [vmem:[#allocation6 + $0x1f8] sm:$0xff]
    %v283 = vld [vmem:[#allocation6 + $0x200] sm:$0xff]
    %v284 = vld [vmem:[#allocation6 + $0x208] sm:$0xff]
    %v285 = vld [vmem:[#allocation6 + $0x210] sm:$0xff]
    %v286 = vld [vmem:[#allocation6 + $0x218] sm:$0xff]
    %v287 = vld [vmem:[#allocation6 + $0x220] sm:$0xff]
    %v288 = vld [vmem:[#allocation6 + $0x228] sm:$0xff]
    %v289 = vld [vmem:[#allocation6 + $0x230] sm:$0xff]
    %v290 = vld [vmem:[#allocation6 + $0x238] sm:$0xff]
    %v291 = vld [vmem:[#allocation6 + $0x240] sm:$0xff]
    %v292 = vld [vmem:[#allocation6 + $0x248] sm:$0xff]
    %v293 = vld [vmem:[#allocation6 + $0x250] sm:$0xff]
    %v294 = vld [vmem:[#allocation6 + $0x258] sm:$0xff]
    %v295 = vld [vmem:[#allocation6 + $0x260] sm:$0xff]
    %v296 = vld [vmem:[#allocation6 + $0x268] sm:$0xff]
    %v297 = vld [vmem:[#allocation6 + $0x270] sm:$0xff]
    %v298 = vld [vmem:[#allocation6 + $0x278] sm:$0xff]
    %v299 = vld [vmem:[#allocation6 + $0x280] sm:$0xff]
    %v300 = vld [vmem:[#allocation6 + $0x288] sm:$0xff]
    %v301 = vld [vmem:[#allocation6 + $0x290] sm:$0xff]
    %v302 = vld [vmem:[#allocation6 + $0x298] sm:$0xff]
    %v303 = vld [vmem:[#allocation6 + $0x2a0] sm:$0xff]
    %v304 = vld [vmem:[#allocation6 + $0x2a8] sm:$0xff]
    %v305 = vld [vmem:[#allocation6 + $0x2b0] sm:$0xff]
    %v306 = vld [vmem:[#allocation6 + $0x2b8] sm:$0xff]
    %v307 = vld [vmem:[#allocation6 + $0x2c0] sm:$0xff]
    %v308 = vld [vmem:[#allocation6 + $0x2c8] sm:$0xff]
    %v309 = vld [vmem:[#allocation6 + $0x2d0] sm:$0xff]
    %v310 = vld [vmem:[#allocation6 + $0x2d8] sm:$0xff]
    %v311 = vld [vmem:[#allocation6 + $0x2e0] sm:$0xff]
    %v312 = vld [vmem:[#allocation6 + $0x2e8] sm:$0xff]
    %v313 = vld [vmem:[#allocation6 + $0x2f0] sm:$0xff]
    %v314 = vld [vmem:[#allocation6 + $0x2f8] sm:$0xff]
    %v315 = vld [vmem:[#allocation6 + $0x300] sm:$0xff]
    %v316 = vld [vmem:[#allocation6 + $0x308] sm:$0xff]
    %v317 = vld [vmem:[#allocation6 + $0x310] sm:$0xff]
    %v318 = vld [vmem:[#allocation6 + $0x318] sm:$0xff]
    %v319 = vld [vmem:[#allocation6 + $0x320] sm:$0xff]
    %v320 = vld [vmem:[#allocation6 + $0x328] sm:$0xff]
    %v321 = vld [vmem:[#allocation6 + $0x330] sm:$0xff]
    %v322 = vld [vmem:[#allocation6 + $0x338] sm:$0xff]
    %v323 = vld [vmem:[#allocation6 + $0x340] sm:$0xff]
    %v324 = vld [vmem:[#allocation6 + $0x348] sm:$0xff]
    %v325 = vld [vmem:[#allocation6 + $0x350] sm:$0xff]
    %v326 = vld [vmem:[#allocation6 + $0x358] sm:$0xff]
    %v327 = vld [vmem:[#allocation6 + $0x360] sm:$0xff]
    %v328 = vld [vmem:[#allocation6 + $0x368] sm:$0xff]
    %v329 = vld [vmem:[#allocation6 + $0x370] sm:$0xff]
    %v330 = vld [vmem:[#allocation6 + $0x378] sm:$0xff]
    %v331 = vld [vmem:[#allocation6 + $0x380] sm:$0xff]
    %v332 = vld [vmem:[#allocation6 + $0x388] sm:$0xff]
    %v333 = vld [vmem:[#allocation6 + $0x390] sm:$0xff]
    %v334 = vld [vmem:[#allocation6 + $0x398] sm:$0xff]
    %v335 = vld [vmem:[#allocation6 + $0x3a0] sm:$0xff]
    %v336 = vld [vmem:[#allocation6 + $0x3a8] sm:$0xff]
    %v337 = vld [vmem:[#allocation6 + $0x3b0] sm:$0xff]
    %v338 = vld [vmem:[#allocation6 + $0x3b8] sm:$0xff]
    %v339 = vld [vmem:[#allocation6 + $0x3c0] sm:$0xff]
    %v340 = vld [vmem:[#allocation6 + $0x3c8] sm:$0xff]
    %v341 = vld [vmem:[#allocation6 + $0x3d0] sm:$0xff]
    %v342 = vld [vmem:[#allocation6 + $0x3d8] sm:$0xff]
    %v343 = vld [vmem:[#allocation6 + $0x3e0] sm:$0xff]
    %v344 = vld [vmem:[#allocation6 + $0x3e8] sm:$0xff]
    %v345 = vld [vmem:[#allocation6 + $0x3f0] sm:$0xff]
    %v346 = vld [vmem:[#allocation6 + $0x3f8] sm:$0xff]
    %v347 = vld [vmem:[#allocation6 + $0x400] sm:$0xff]
    %v348 = vld [vmem:[#allocation6 + $0x408] sm:$0xff]
    %v349 = vld [vmem:[#allocation6 + $0x410] sm:$0xff]
    %v350 = vld [vmem:[#allocation6 + $0x418] sm:$0xff]
    %v351 = vld [vmem:[#allocation6 + $0x420] sm:$0xff]
    %v352 = vld [vmem:[#allocation6 + $0x428] sm:$0xff]
    %v353 = vld [vmem:[#allocation6 + $0x430] sm:$0xff]
    %v354 = vld [vmem:[#allocation6 + $0x438] sm:$0xff]
    %v355 = vld [vmem:[#allocation6 + $0x440] sm:$0xff]
    %v356 = vld [vmem:[#allocation6 + $0x448] sm:$0xff]
    %v357 = vld [vmem:[#allocation6 + $0x450] sm:$0xff]
    %v358 = vld [vmem:[#allocation6 + $0x458] sm:$0xff]
    %v359 = vld [vmem:[#allocation6 + $0x460] sm:$0xff]
    %v360 = vld [vmem:[#allocation6 + $0x468] sm:$0xff]
    %v361 = vld [vmem:[#allocation6 + $0x470] sm:$0xff]
    %v362 = vld [vmem:[#allocation6 + $0x478] sm:$0xff]
    %v363 = vld [vmem:[#allocation6 + $0x480] sm:$0xff]
    %v364 = vld [vmem:[#allocation6 + $0x488] sm:$0xff]
    %v365 = vld [vmem:[#allocation6 + $0x490] sm:$0xff]
    %v366 = vld [vmem:[#allocation6 + $0x498] sm:$0xff]
    %v367 = vld [vmem:[#allocation6 + $0x4a0] sm:$0xff]
    %v368 = vld [vmem:[#allocation6 + $0x4a8] sm:$0xff]
    %v369 = vld [vmem:[#allocation6 + $0x4b0] sm:$0xff]
    %v370 = vld [vmem:[#allocation6 + $0x4b8] sm:$0xff]
    %v371 = vld [vmem:[#allocation6 + $0x4c0] sm:$0xff]
    %v372 = vld [vmem:[#allocation6 + $0x4c8] sm:$0xff]
    %v373 = vld [vmem:[#allocation6 + $0x4d0] sm:$0xff]
    %v374 = vld [vmem:[#allocation6 + $0x4d8] sm:$0xff]
    %v375 = vld [vmem:[#allocation6 + $0x4e0] sm:$0xff]
    %v376 = vld [vmem:[#allocation6 + $0x4e8] sm:$0xff]
    %v377 = vld [vmem:[#allocation6 + $0x4f0] sm:$0xff]
    %v378 = vld [vmem:[#allocation6 + $0x4f8] sm:$0xff]
    %v379 = vld [vmem:[#allocation6 + $0x500] sm:$0xff]
    %v380 = vld [vmem:[#allocation6 + $0x508] sm:$0xff]
    %v381 = vld [vmem:[#allocation6 + $0x510] sm:$0xff]
    %v382 = vld [vmem:[#allocation6 + $0x518] sm:$0xff]
    %v383 = vld [vmem:[#allocation6 + $0x520] sm:$0xff]
    %v384 = vld [vmem:[#allocation6 + $0x528] sm:$0xff]
    %v385 = vld [vmem:[#allocation6 + $0x530] sm:$0xff]
    %v386 = vld [vmem:[#allocation6 + $0x538] sm:$0xff]
    %v387 = vld [vmem:[#allocation6 + $0x540] sm:$0xff]
    %v388 = vld [vmem:[#allocation6 + $0x548] sm:$0xff]
    %v389 = vld [vmem:[#allocation6 + $0x550] sm:$0xff]
    %v390 = vld [vmem:[#allocation6 + $0x558] sm:$0xff]
    %v391 = vld [vmem:[#allocation6 + $0x560] sm:$0xff]
    %v392 = vld [vmem:[#allocation6 + $0x568] sm:$0xff]
    %v393 = vld [vmem:[#allocation6 + $0x570] sm:$0xff]
    %v394 = vld [vmem:[#allocation6 + $0x578] sm:$0xff]
    %v395 = vld [vmem:[#allocation6 + $0x580] sm:$0xff]
    %v396 = vld [vmem:[#allocation6 + $0x588] sm:$0xff]
    %v397 = vld [vmem:[#allocation6 + $0x590] sm:$0xff]
    %v398 = vld [vmem:[#allocation6 + $0x598] sm:$0xff]
    %v399 = vld [vmem:[#allocation6 + $0x5a0] sm:$0xff]
    %v400 = vld [vmem:[#allocation6 + $0x5a8] sm:$0xff]
    %v401 = vld [vmem:[#allocation6 + $0x5b0] sm:$0xff]
    %v402 = vld [vmem:[#allocation6 + $0x5b8] sm:$0xff]
    %v403 = vld [vmem:[#allocation6 + $0x5c0] sm:$0xff]
    %v404 = vld [vmem:[#allocation6 + $0x5c8] sm:$0xff]
    %v405 = vld [vmem:[#allocation6 + $0x5d0] sm:$0xff]
    %v406 = vld [vmem:[#allocation6 + $0x5d8] sm:$0xff]
    %v407 = vld [vmem:[#allocation6 + $0x5e0] sm:$0xff]
    %v408 = vld [vmem:[#allocation6 + $0x5e8] sm:$0xff]
    %v409 = vld [vmem:[#allocation6 + $0x5f0] sm:$0xff]
    %v410 = vld [vmem:[#allocation6 + $0x5f8] sm:$0xff]
    %v411 = vld [vmem:[#allocation6 + $0x600] sm:$0xff]
    %v412 = vld [vmem:[#allocation6 + $0x608] sm:$0xff]
    %v413 = vld [vmem:[#allocation6 + $0x610] sm:$0xff]
    %v414 = vld [vmem:[#allocation6 + $0x618] sm:$0xff]
    %v415 = vld [vmem:[#allocation6 + $0x620] sm:$0xff]
    %v416 = vld [vmem:[#allocation6 + $0x628] sm:$0xff]
    %v417 = vld [vmem:[#allocation6 + $0x630] sm:$0xff]
    %v418 = vld [vmem:[#allocation6 + $0x638] sm:$0xff]
    %v419 = vld [vmem:[#allocation6 + $0x640] sm:$0xff]
    %v420 = vld [vmem:[#allocation6 + $0x648] sm:$0xff]
    %v421 = vld [vmem:[#allocation6 + $0x650] sm:$0xff]
    %v422 = vld [vmem:[#allocation6 + $0x658] sm:$0xff]
    %v423 = vld [vmem:[#allocation6 + $0x660] sm:$0xff]
    %v424 = vld [vmem:[#allocation6 + $0x668] sm:$0xff]
    %v425 = vld [vmem:[#allocation6 + $0x670] sm:$0xff]
    %v426 = vld [vmem:[#allocation6 + $0x678] sm:$0xff]
    %v427 = vld [vmem:[#allocation6 + $0x680] sm:$0xff]
    %v428 = vld [vmem:[#allocation6 + $0x688] sm:$0xff]
    %v429 = vld [vmem:[#allocation6 + $0x690] sm:$0xff]
    %v430 = vld [vmem:[#allocation6 + $0x698] sm:$0xff]
    %v431 = vld [vmem:[#allocation6 + $0x6a0] sm:$0xff]
    %v432 = vld [vmem:[#allocation6 + $0x6a8] sm:$0xff]
    %v433 = vld [vmem:[#allocation6 + $0x6b0] sm:$0xff]
    %v434 = vld [vmem:[#allocation6 + $0x6b8] sm:$0xff]
    %v435 = vld [vmem:[#allocation6 + $0x6c0] sm:$0xff]
    %v436 = vld [vmem:[#allocation6 + $0x6c8] sm:$0xff]
    %v437 = vld [vmem:[#allocation6 + $0x6d0] sm:$0xff]
    %v438 = vld [vmem:[#allocation6 + $0x6d8] sm:$0xff]
    %v439 = vld [vmem:[#allocation6 + $0x6e0] sm:$0xff]
    %v440 = vld [vmem:[#allocation6 + $0x6e8] sm:$0xff]
    %v441 = vld [vmem:[#allocation6 + $0x6f0] sm:$0xff]
    %v442 = vld [vmem:[#allocation6 + $0x6f8] sm:$0xff]
    %v443 = vld [vmem:[%s2] sm:$0xf]
    %v445 = vlaneseq
    %v446 = vshrl.u32 %v445, 7
    %v447 = vsub.s32 0, %v446
    %v448 = vrot.slane %v443, %v447
    %v449 = vlaneseq
    %v450 = vshrl.u32 %v449, 7
    %v451 = vsub.s32 1, %v450
    %v452 = vrot.slane %v443, %v451
    %v453 = vlaneseq
    %v454 = vshrl.u32 %v453, 7
    %v455 = vsub.s32 2, %v454
    %v456 = vrot.slane %v443, %v455
    %v457 = vlaneseq
    %v458 = vshrl.u32 %v457, 7
    %v459 = vsub.s32 3, %v458
    %v460 = vrot.slane %v443, %v459
    %v593 = vunpack.c.l.b16 %v91
    %v594 = vunpack.c.h.b16 %v91
    %v595 = vunpack.c.l.b16 %v92
    %v596 = vunpack.c.h.b16 %v92
    %v597 = vunpack.c.l.b16 %v93
    %v598 = vunpack.c.h.b16 %v93
    %v599 = vunpack.c.l.b16 %v94
    %v600 = vunpack.c.l.b16 %v95
    %v601 = vunpack.c.h.b16 %v95
    %v602 = vunpack.c.l.b16 %v96
    %v603 = vunpack.c.h.b16 %v96
    %v604 = vunpack.c.l.b16 %v97
    %v605 = vunpack.c.h.b16 %v97
    %v606 = vunpack.c.l.b16 %v98
    %v607 = vunpack.c.l.b16 %v99
    %v608 = vunpack.c.h.b16 %v99
    %v609 = vunpack.c.l.b16 %v100
    %v610 = vunpack.c.h.b16 %v100
    %v611 = vunpack.c.l.b16 %v101
    %v612 = vunpack.c.h.b16 %v101
    %v613 = vunpack.c.l.b16 %v102
    %v614 = vunpack.c.l.b16 %v103
    %v615 = vunpack.c.h.b16 %v103
    %v616 = vunpack.c.l.b16 %v104
    %v617 = vunpack.c.h.b16 %v104
    %v618 = vunpack.c.l.b16 %v105
    %v619 = vunpack.c.h.b16 %v105
    %v620 = vunpack.c.l.b16 %v106
    %v621 = vunpack.c.l.b16 %v107
    %v622 = vunpack.c.h.b16 %v107
    %v623 = vunpack.c.l.b16 %v108
    %v624 = vunpack.c.h.b16 %v108
    %v625 = vunpack.c.l.b16 %v109
    %v626 = vunpack.c.h.b16 %v109
    %v627 = vunpack.c.l.b16 %v110
    %v628 = vunpack.c.l.b16 %v111
    %v629 = vunpack.c.h.b16 %v111
    %v630 = vunpack.c.l.b16 %v112
    %v631 = vunpack.c.h.b16 %v112
    %v632 = vunpack.c.l.b16 %v113
    %v633 = vunpack.c.h.b16 %v113
    %v634 = vunpack.c.l.b16 %v114
    %v635 = vunpack.c.l.b16 %v115
    %v636 = vunpack.c.h.b16 %v115
    %v637 = vunpack.c.l.b16 %v116
    %v638 = vunpack.c.h.b16 %v116
    %v639 = vunpack.c.l.b16 %v117
    %v640 = vunpack.c.h.b16 %v117
    %v641 = vunpack.c.l.b16 %v118
    %v642 = vunpack.c.l.b16 %v119
    %v643 = vunpack.c.h.b16 %v119
    %v644 = vunpack.c.l.b16 %v120
    %v645 = vunpack.c.h.b16 %v120
    %v646 = vunpack.c.l.b16 %v121
    %v647 = vunpack.c.h.b16 %v121
    %v648 = vunpack.c.l.b16 %v122
    %v649 = vunpack.c.l.b16 %v123
    %v650 = vunpack.c.h.b16 %v123
    %v651 = vunpack.c.l.b16 %v124
    %v652 = vunpack.c.h.b16 %v124
    %v653 = vunpack.c.l.b16 %v125
    %v654 = vunpack.c.h.b16 %v125
    %v655 = vunpack.c.l.b16 %v126
    %v656 = vunpack.c.l.b16 %v127
    %v657 = vunpack.c.h.b16 %v127
    %v658 = vunpack.c.l.b16 %v128
    %v659 = vunpack.c.h.b16 %v128
    %v660 = vunpack.c.l.b16 %v129
    %v661 = vunpack.c.h.b16 %v129
    %v662 = vunpack.c.l.b16 %v130
    %v663 = vunpack.c.l.b16 %v131
    %v664 = vunpack.c.h.b16 %v131
    %v665 = vunpack.c.l.b16 %v132
    %v666 = vunpack.c.h.b16 %v132
    %v667 = vunpack.c.l.b16 %v133
    %v668 = vunpack.c.h.b16 %v133
    %v669 = vunpack.c.l.b16 %v134
    %v670 = vunpack.c.l.b16 %v135
    %v671 = vunpack.c.h.b16 %v135
    %v672 = vunpack.c.l.b16 %v136
    %v673 = vunpack.c.h.b16 %v136
    %v674 = vunpack.c.l.b16 %v137
    %v675 = vunpack.c.h.b16 %v137
    %v676 = vunpack.c.l.b16 %v138
    %v677 = vunpack.c.l.b16 %v139
    %v678 = vunpack.c.h.b16 %v139
    %v679 = vunpack.c.l.b16 %v140
    %v680 = vunpack.c.h.b16 %v140
    %v681 = vunpack.c.l.b16 %v141
    %v682 = vunpack.c.h.b16 %v141
    %v683 = vunpack.c.l.b16 %v142
    %v684 = vunpack.c.l.b16 %v143
    %v685 = vunpack.c.h.b16 %v143
    %v686 = vunpack.c.l.b16 %v144
    %v687 = vunpack.c.h.b16 %v144
    %v688 = vunpack.c.l.b16 %v145
    %v689 = vunpack.c.h.b16 %v145
    %v690 = vunpack.c.l.b16 %v146
    %v691 = vunpack.c.l.b16 %v147
    %v692 = vunpack.c.h.b16 %v147
    %v693 = vunpack.c.l.b16 %v148
    %v694 = vunpack.c.h.b16 %v148
    %v695 = vunpack.c.l.b16 %v149
    %v696 = vunpack.c.h.b16 %v149
    %v697 = vunpack.c.l.b16 %v150
    %v698 = vunpack.c.l.b16 %v151
    %v699 = vunpack.c.h.b16 %v151
    %v700 = vunpack.c.l.b16 %v152
    %v701 = vunpack.c.h.b16 %v152
    %v702 = vunpack.c.l.b16 %v153
    %v703 = vunpack.c.h.b16 %v153
    %v704 = vunpack.c.l.b16 %v154
    %v705 = vunpack.c.l.b16 %v155
    %v706 = vunpack.c.h.b16 %v155
    %v707 = vunpack.c.l.b16 %v156
    %v708 = vunpack.c.h.b16 %v156
    %v709 = vunpack.c.l.b16 %v157
    %v710 = vunpack.c.h.b16 %v157
    %v711 = vunpack.c.l.b16 %v158
    %v712 = vunpack.c.l.b16 %v159
    %v713 = vunpack.c.h.b16 %v159
    %v714 = vunpack.c.l.b16 %v160
    %v715 = vunpack.c.h.b16 %v160
    %v716 = vunpack.c.l.b16 %v161
    %v717 = vunpack.c.h.b16 %v161
    %v718 = vunpack.c.l.b16 %v162
    %v719 = vunpack.c.l.b16 %v163
    %v720 = vunpack.c.h.b16 %v163
    %v721 = vunpack.c.l.b16 %v164
    %v722 = vunpack.c.h.b16 %v164
    %v723 = vunpack.c.l.b16 %v165
    %v724 = vunpack.c.h.b16 %v165
    %v725 = vunpack.c.l.b16 %v166
    %v726 = vunpack.c.l.b16 %v167
    %v727 = vunpack.c.h.b16 %v167
    %v728 = vunpack.c.l.b16 %v168
    %v729 = vunpack.c.h.b16 %v168
    %v730 = vunpack.c.l.b16 %v169
    %v731 = vunpack.c.h.b16 %v169
    %v732 = vunpack.c.l.b16 %v170
    %v733 = vunpack.c.l.b16 %v171
    %v734 = vunpack.c.h.b16 %v171
    %v735 = vunpack.c.l.b16 %v172
    %v736 = vunpack.c.h.b16 %v172
    %v737 = vunpack.c.l.b16 %v173
    %v738 = vunpack.c.h.b16 %v173
    %v739 = vunpack.c.l.b16 %v174
    %v740 = vunpack.c.l.b16 %v175
    %v741 = vunpack.c.h.b16 %v175
    %v742 = vunpack.c.l.b16 %v176
    %v743 = vunpack.c.h.b16 %v176
    %v744 = vunpack.c.l.b16 %v177
    %v745 = vunpack.c.h.b16 %v177
    %v746 = vunpack.c.l.b16 %v178
    %v747 = vunpack.c.l.b16 %v179
    %v748 = vunpack.c.h.b16 %v179
    %v749 = vunpack.c.l.b16 %v180
    %v750 = vunpack.c.h.b16 %v180
    %v751 = vunpack.c.l.b16 %v181
    %v752 = vunpack.c.h.b16 %v181
    %v753 = vunpack.c.l.b16 %v182
    %v754 = vunpack.c.l.b16 %v183
    %v755 = vunpack.c.h.b16 %v183
    %v756 = vunpack.c.l.b16 %v184
    %v757 = vunpack.c.h.b16 %v184
    %v758 = vunpack.c.l.b16 %v185
    %v759 = vunpack.c.h.b16 %v185
    %v760 = vunpack.c.l.b16 %v186
    %v761 = vunpack.c.l.b16 %v187
    %v762 = vunpack.c.h.b16 %v187
    %v763 = vunpack.c.l.b16 %v188
    %v764 = vunpack.c.h.b16 %v188
    %v765 = vunpack.c.l.b16 %v189
    %v766 = vunpack.c.h.b16 %v189
    %v767 = vunpack.c.l.b16 %v190
    %v768 = vunpack.c.l.b16 %v191
    %v769 = vunpack.c.h.b16 %v191
    %v770 = vunpack.c.l.b16 %v192
    %v771 = vunpack.c.h.b16 %v192
    %v772 = vunpack.c.l.b16 %v193
    %v773 = vunpack.c.h.b16 %v193
    %v774 = vunpack.c.l.b16 %v194
    %v775 = vunpack.c.l.b16 %v195
    %v776 = vunpack.c.h.b16 %v195
    %v777 = vunpack.c.l.b16 %v196
    %v778 = vunpack.c.h.b16 %v196
    %v779 = vunpack.c.l.b16 %v197
    %v780 = vunpack.c.h.b16 %v197
    %v781 = vunpack.c.l.b16 %v198
    %v782 = vunpack.c.l.b16 %v199
    %v783 = vunpack.c.h.b16 %v199
    %v784 = vunpack.c.l.b16 %v200
    %v785 = vunpack.c.h.b16 %v200
    %v786 = vunpack.c.l.b16 %v201
    %v787 = vunpack.c.h.b16 %v201
    %v788 = vunpack.c.l.b16 %v202
    %v789 = vunpack.c.l.b16 %v203
    %v790 = vunpack.c.h.b16 %v203
    %v791 = vunpack.c.l.b16 %v204
    %v792 = vunpack.c.h.b16 %v204
    %v793 = vunpack.c.l.b16 %v205
    %v794 = vunpack.c.h.b16 %v205
    %v795 = vunpack.c.l.b16 %v206
    %v796 = vunpack.c.l.b16 %v207
    %v797 = vunpack.c.h.b16 %v207
    %v798 = vunpack.c.l.b16 %v208
    %v799 = vunpack.c.h.b16 %v208
    %v800 = vunpack.c.l.b16 %v209
    %v801 = vunpack.c.h.b16 %v209
    %v802 = vunpack.c.l.b16 %v210
    %v803 = vunpack.c.l.b16 %v211
    %v804 = vunpack.c.h.b16 %v211
    %v805 = vunpack.c.l.b16 %v212
    %v806 = vunpack.c.h.b16 %v212
    %v807 = vunpack.c.l.b16 %v213
    %v808 = vunpack.c.h.b16 %v213
    %v809 = vunpack.c.l.b16 %v214
    %v810 = vunpack.c.l.b16 %v215
    %v811 = vunpack.c.h.b16 %v215
    %v812 = vunpack.c.l.b16 %v216
    %v813 = vunpack.c.h.b16 %v216
    %v814 = vunpack.c.l.b16 %v217
    %v815 = vunpack.c.h.b16 %v217
    %v816 = vunpack.c.l.b16 %v218
    %v817 = vpack.c.b16 %v600, %v593
    %v818 = vpack.c.b16 %v601, %v594
    %v819 = vpack.c.b16 %v602, %v595
    %v820 = vpack.c.b16 %v603, %v596
    %v821 = vpack.c.b16 %v604, %v597
    %v822 = vpack.c.b16 %v605, %v598
    %v823 = vpack.c.b16 %v606, %v599
    %v824 = vpack.c.b16 %v614, %v607
    %v825 = vpack.c.b16 %v615, %v608
    %v826 = vpack.c.b16 %v616, %v609
    %v827 = vpack.c.b16 %v617, %v610
    %v828 = vpack.c.b16 %v618, %v611
    %v829 = vpack.c.b16 %v619, %v612
    %v830 = vpack.c.b16 %v620, %v613
    %v831 = vpack.c.b16 %v628, %v621
    %v832 = vpack.c.b16 %v629, %v622
    %v833 = vpack.c.b16 %v630, %v623
    %v834 = vpack.c.b16 %v631, %v624
    %v835 = vpack.c.b16 %v632, %v625
    %v836 = vpack.c.b16 %v633, %v626
    %v837 = vpack.c.b16 %v634, %v627
    %v838 = vpack.c.b16 %v642, %v635
    %v839 = vpack.c.b16 %v643, %v636
    %v840 = vpack.c.b16 %v644, %v637
    %v841 = vpack.c.b16 %v645, %v638
    %v842 = vpack.c.b16 %v646, %v639
    %v843 = vpack.c.b16 %v647, %v640
    %v844 = vpack.c.b16 %v648, %v641
    %v845 = vpack.c.b16 %v656, %v649
    %v846 = vpack.c.b16 %v657, %v650
    %v847 = vpack.c.b16 %v658, %v651
    %v848 = vpack.c.b16 %v659, %v652
    %v849 = vpack.c.b16 %v660, %v653
    %v850 = vpack.c.b16 %v661, %v654
    %v851 = vpack.c.b16 %v662, %v655
    %v852 = vpack.c.b16 %v670, %v663
    %v853 = vpack.c.b16 %v671, %v664
    %v854 = vpack.c.b16 %v672, %v665
    %v855 = vpack.c.b16 %v673, %v666
    %v856 = vpack.c.b16 %v674, %v667
    %v857 = vpack.c.b16 %v675, %v668
    %v858 = vpack.c.b16 %v676, %v669
    %v859 = vpack.c.b16 %v684, %v677
    %v860 = vpack.c.b16 %v685, %v678
    %v861 = vpack.c.b16 %v686, %v679
    %v862 = vpack.c.b16 %v687, %v680
    %v863 = vpack.c.b16 %v688, %v681
    %v864 = vpack.c.b16 %v689, %v682
    %v865 = vpack.c.b16 %v690, %v683
    %v866 = vpack.c.b16 %v698, %v691
    %v867 = vpack.c.b16 %v699, %v692
    %v868 = vpack.c.b16 %v700, %v693
    %v869 = vpack.c.b16 %v701, %v694
    %v870 = vpack.c.b16 %v702, %v695
    %v871 = vpack.c.b16 %v703, %v696
    %v872 = vpack.c.b16 %v704, %v697
    %v873 = vpack.c.b16 %v712, %v705
    %v874 = vpack.c.b16 %v713, %v706
    %v875 = vpack.c.b16 %v714, %v707
    %v876 = vpack.c.b16 %v715, %v708
    %v877 = vpack.c.b16 %v716, %v709
    %v878 = vpack.c.b16 %v717, %v710
    %v879 = vpack.c.b16 %v718, %v711
    %v880 = vpack.c.b16 %v726, %v719
    %v881 = vpack.c.b16 %v727, %v720
    %v882 = vpack.c.b16 %v728, %v721
    %v883 = vpack.c.b16 %v729, %v722
    %v884 = vpack.c.b16 %v730, %v723
    %v885 = vpack.c.b16 %v731, %v724
    %v886 = vpack.c.b16 %v732, %v725
    %v887 = vpack.c.b16 %v740, %v733
    %v888 = vpack.c.b16 %v741, %v734
    %v889 = vpack.c.b16 %v742, %v735
    %v890 = vpack.c.b16 %v743, %v736
    %v891 = vpack.c.b16 %v744, %v737
    %v892 = vpack.c.b16 %v745, %v738
    %v893 = vpack.c.b16 %v746, %v739
    %v894 = vpack.c.b16 %v754, %v747
    %v895 = vpack.c.b16 %v755, %v748
    %v896 = vpack.c.b16 %v756, %v749
    %v897 = vpack.c.b16 %v757, %v750
    %v898 = vpack.c.b16 %v758, %v751
    %v899 = vpack.c.b16 %v759, %v752
    %v900 = vpack.c.b16 %v760, %v753
    %v901 = vpack.c.b16 %v768, %v761
    %v902 = vpack.c.b16 %v769, %v762
    %v903 = vpack.c.b16 %v770, %v763
    %v904 = vpack.c.b16 %v771, %v764
    %v905 = vpack.c.b16 %v772, %v765
    %v906 = vpack.c.b16 %v773, %v766
    %v907 = vpack.c.b16 %v774, %v767
    %v908 = vpack.c.b16 %v782, %v775
    %v909 = vpack.c.b16 %v783, %v776
    %v910 = vpack.c.b16 %v784, %v777
    %v911 = vpack.c.b16 %v785, %v778
    %v912 = vpack.c.b16 %v786, %v779
    %v913 = vpack.c.b16 %v787, %v780
    %v914 = vpack.c.b16 %v788, %v781
    %v915 = vpack.c.b16 %v796, %v789
    %v916 = vpack.c.b16 %v797, %v790
    %v917 = vpack.c.b16 %v798, %v791
    %v918 = vpack.c.b16 %v799, %v792
    %v919 = vpack.c.b16 %v800, %v793
    %v920 = vpack.c.b16 %v801, %v794
    %v921 = vpack.c.b16 %v802, %v795
    %v922 = vpack.c.b16 %v810, %v803
    %v923 = vpack.c.b16 %v811, %v804
    %v924 = vpack.c.b16 %v812, %v805
    %v925 = vpack.c.b16 %v813, %v806
    %v926 = vpack.c.b16 %v814, %v807
    %v927 = vpack.c.b16 %v815, %v808
    %v928 = vpack.c.b16 %v816, %v809
    %v1265 = vunpack.c.l.b16 %v219
    %v1266 = vunpack.c.h.b16 %v219
    %v1267 = vunpack.c.l.b16 %v220
    %v1268 = vunpack.c.h.b16 %v220
    %v1269 = vunpack.c.l.b16 %v221
    %v1270 = vunpack.c.h.b16 %v221
    %v1271 = vunpack.c.l.b16 %v222
    %v1272 = vunpack.c.h.b16 %v222
    %v1273 = vunpack.c.l.b16 %v223
    %v1274 = vunpack.c.h.b16 %v223
    %v1275 = vunpack.c.l.b16 %v224
    %v1276 = vunpack.c.h.b16 %v224
    %v1277 = vunpack.c.l.b16 %v225
    %v1278 = vunpack.c.h.b16 %v225
    %v1279 = vunpack.c.l.b16 %v226
    %v1280 = vunpack.c.h.b16 %v226
    %v1281 = vunpack.c.l.b16 %v227
    %v1282 = vunpack.c.h.b16 %v227
    %v1283 = vunpack.c.l.b16 %v228
    %v1284 = vunpack.c.h.b16 %v228
    %v1285 = vunpack.c.l.b16 %v229
    %v1286 = vunpack.c.h.b16 %v229
    %v1287 = vunpack.c.l.b16 %v230
    %v1288 = vunpack.c.h.b16 %v230
    %v1289 = vunpack.c.l.b16 %v231
    %v1290 = vunpack.c.h.b16 %v231
    %v1291 = vunpack.c.l.b16 %v232
    %v1292 = vunpack.c.h.b16 %v232
    %v1293 = vunpack.c.l.b16 %v233
    %v1294 = vunpack.c.h.b16 %v233
    %v1295 = vunpack.c.l.b16 %v234
    %v1296 = vunpack.c.h.b16 %v234
    %v1297 = vunpack.c.l.b16 %v235
    %v1298 = vunpack.c.h.b16 %v235
    %v1299 = vunpack.c.l.b16 %v236
    %v1300 = vunpack.c.h.b16 %v236
    %v1301 = vunpack.c.l.b16 %v237
    %v1302 = vunpack.c.h.b16 %v237
    %v1303 = vunpack.c.l.b16 %v238
    %v1304 = vunpack.c.h.b16 %v238
    %v1305 = vunpack.c.l.b16 %v239
    %v1306 = vunpack.c.h.b16 %v239
    %v1307 = vunpack.c.l.b16 %v240
    %v1308 = vunpack.c.h.b16 %v240
    %v1309 = vunpack.c.l.b16 %v241
    %v1310 = vunpack.c.h.b16 %v241
    %v1311 = vunpack.c.l.b16 %v242
    %v1312 = vunpack.c.h.b16 %v242
    %v1313 = vunpack.c.l.b16 %v243
    %v1314 = vunpack.c.h.b16 %v243
    %v1315 = vunpack.c.l.b16 %v244
    %v1316 = vunpack.c.h.b16 %v244
    %v1317 = vunpack.c.l.b16 %v245
    %v1318 = vunpack.c.h.b16 %v245
    %v1319 = vunpack.c.l.b16 %v246
    %v1320 = vunpack.c.h.b16 %v246
    %v1321 = vunpack.c.l.b16 %v247
    %v1322 = vunpack.c.h.b16 %v247
    %v1323 = vunpack.c.l.b16 %v248
    %v1324 = vunpack.c.h.b16 %v248
    %v1325 = vunpack.c.l.b16 %v249
    %v1326 = vunpack.c.h.b16 %v249
    %v1327 = vunpack.c.l.b16 %v250
    %v1328 = vunpack.c.h.b16 %v250
    %v1329 = vunpack.c.l.b16 %v251
    %v1330 = vunpack.c.h.b16 %v251
    %v1331 = vunpack.c.l.b16 %v252
    %v1332 = vunpack.c.h.b16 %v252
    %v1333 = vunpack.c.l.b16 %v253
    %v1334 = vunpack.c.h.b16 %v253
    %v1335 = vunpack.c.l.b16 %v254
    %v1336 = vunpack.c.h.b16 %v254
    %v1337 = vunpack.c.l.b16 %v255
    %v1338 = vunpack.c.h.b16 %v255
    %v1339 = vunpack.c.l.b16 %v256
    %v1340 = vunpack.c.h.b16 %v256
    %v1341 = vunpack.c.l.b16 %v257
    %v1342 = vunpack.c.h.b16 %v257
    %v1343 = vunpack.c.l.b16 %v258
    %v1344 = vunpack.c.h.b16 %v258
    %v1345 = vunpack.c.l.b16 %v259
    %v1346 = vunpack.c.h.b16 %v259
    %v1347 = vunpack.c.l.b16 %v260
    %v1348 = vunpack.c.h.b16 %v260
    %v1349 = vunpack.c.l.b16 %v261
    %v1350 = vunpack.c.h.b16 %v261
    %v1351 = vunpack.c.l.b16 %v262
    %v1352 = vunpack.c.h.b16 %v262
    %v1353 = vunpack.c.l.b16 %v263
    %v1354 = vunpack.c.h.b16 %v263
    %v1355 = vunpack.c.l.b16 %v264
    %v1356 = vunpack.c.h.b16 %v264
    %v1357 = vunpack.c.l.b16 %v265
    %v1358 = vunpack.c.h.b16 %v265
    %v1359 = vunpack.c.l.b16 %v266
    %v1360 = vunpack.c.h.b16 %v266
    %v1361 = vunpack.c.l.b16 %v267
    %v1362 = vunpack.c.h.b16 %v267
    %v1363 = vunpack.c.l.b16 %v268
    %v1364 = vunpack.c.h.b16 %v268
    %v1365 = vunpack.c.l.b16 %v269
    %v1366 = vunpack.c.h.b16 %v269
    %v1367 = vunpack.c.l.b16 %v270
    %v1368 = vunpack.c.h.b16 %v270
    %v1369 = vunpack.c.l.b16 %v271
    %v1370 = vunpack.c.h.b16 %v271
    %v1371 = vunpack.c.l.b16 %v272
    %v1372 = vunpack.c.h.b16 %v272
    %v1373 = vunpack.c.l.b16 %v273
    %v1374 = vunpack.c.h.b16 %v273
    %v1375 = vunpack.c.l.b16 %v274
    %v1376 = vunpack.c.h.b16 %v274
    %v1377 = vunpack.c.l.b16 %v275
    %v1378 = vunpack.c.h.b16 %v275
    %v1379 = vunpack.c.l.b16 %v276
    %v1380 = vunpack.c.h.b16 %v276
    %v1381 = vunpack.c.l.b16 %v277
    %v1382 = vunpack.c.h.b16 %v277
    %v1383 = vunpack.c.l.b16 %v278
    %v1384 = vunpack.c.h.b16 %v278
    %v1385 = vunpack.c.l.b16 %v279
    %v1386 = vunpack.c.h.b16 %v279
    %v1387 = vunpack.c.l.b16 %v280
    %v1388 = vunpack.c.h.b16 %v280
    %v1389 = vunpack.c.l.b16 %v281
    %v1390 = vunpack.c.h.b16 %v281
    %v1391 = vunpack.c.l.b16 %v282
    %v1392 = vunpack.c.h.b16 %v282
    %v1393 = vunpack.c.l.b16 %v283
    %v1394 = vunpack.c.h.b16 %v283
    %v1395 = vunpack.c.l.b16 %v284
    %v1396 = vunpack.c.h.b16 %v284
    %v1397 = vunpack.c.l.b16 %v285
    %v1398 = vunpack.c.h.b16 %v285
    %v1399 = vunpack.c.l.b16 %v286
    %v1400 = vunpack.c.h.b16 %v286
    %v1401 = vunpack.c.l.b16 %v287
    %v1402 = vunpack.c.h.b16 %v287
    %v1403 = vunpack.c.l.b16 %v288
    %v1404 = vunpack.c.h.b16 %v288
    %v1405 = vunpack.c.l.b16 %v289
    %v1406 = vunpack.c.h.b16 %v289
    %v1407 = vunpack.c.l.b16 %v290
    %v1408 = vunpack.c.h.b16 %v290
    %v1409 = vunpack.c.l.b16 %v291
    %v1410 = vunpack.c.h.b16 %v291
    %v1411 = vunpack.c.l.b16 %v292
    %v1412 = vunpack.c.h.b16 %v292
    %v1413 = vunpack.c.l.b16 %v293
    %v1414 = vunpack.c.h.b16 %v293
    %v1415 = vunpack.c.l.b16 %v294
    %v1416 = vunpack.c.h.b16 %v294
    %v1417 = vunpack.c.l.b16 %v295
    %v1418 = vunpack.c.h.b16 %v295
    %v1419 = vunpack.c.l.b16 %v296
    %v1420 = vunpack.c.h.b16 %v296
    %v1421 = vunpack.c.l.b16 %v297
    %v1422 = vunpack.c.h.b16 %v297
    %v1423 = vunpack.c.l.b16 %v298
    %v1424 = vunpack.c.h.b16 %v298
    %v1425 = vunpack.c.l.b16 %v299
    %v1426 = vunpack.c.h.b16 %v299
    %v1427 = vunpack.c.l.b16 %v300
    %v1428 = vunpack.c.h.b16 %v300
    %v1429 = vunpack.c.l.b16 %v301
    %v1430 = vunpack.c.h.b16 %v301
    %v1431 = vunpack.c.l.b16 %v302
    %v1432 = vunpack.c.h.b16 %v302
    %v1433 = vunpack.c.l.b16 %v303
    %v1434 = vunpack.c.h.b16 %v303
    %v1435 = vunpack.c.l.b16 %v304
    %v1436 = vunpack.c.h.b16 %v304
    %v1437 = vunpack.c.l.b16 %v305
    %v1438 = vunpack.c.h.b16 %v305
    %v1439 = vunpack.c.l.b16 %v306
    %v1440 = vunpack.c.h.b16 %v306
    %v1441 = vunpack.c.l.b16 %v307
    %v1442 = vunpack.c.h.b16 %v307
    %v1443 = vunpack.c.l.b16 %v308
    %v1444 = vunpack.c.h.b16 %v308
    %v1445 = vunpack.c.l.b16 %v309
    %v1446 = vunpack.c.h.b16 %v309
    %v1447 = vunpack.c.l.b16 %v310
    %v1448 = vunpack.c.h.b16 %v310
    %v1449 = vunpack.c.l.b16 %v311
    %v1450 = vunpack.c.h.b16 %v311
    %v1451 = vunpack.c.l.b16 %v312
    %v1452 = vunpack.c.h.b16 %v312
    %v1453 = vunpack.c.l.b16 %v313
    %v1454 = vunpack.c.h.b16 %v313
    %v1455 = vunpack.c.l.b16 %v314
    %v1456 = vunpack.c.h.b16 %v314
    %v1457 = vunpack.c.l.b16 %v315
    %v1458 = vunpack.c.h.b16 %v315
    %v1459 = vunpack.c.l.b16 %v316
    %v1460 = vunpack.c.h.b16 %v316
    %v1461 = vunpack.c.l.b16 %v317
    %v1462 = vunpack.c.h.b16 %v317
    %v1463 = vunpack.c.l.b16 %v318
    %v1464 = vunpack.c.h.b16 %v318
    %v1465 = vunpack.c.l.b16 %v319
    %v1466 = vunpack.c.h.b16 %v319
    %v1467 = vunpack.c.l.b16 %v320
    %v1468 = vunpack.c.h.b16 %v320
    %v1469 = vunpack.c.l.b16 %v321
    %v1470 = vunpack.c.h.b16 %v321
    %v1471 = vunpack.c.l.b16 %v322
    %v1472 = vunpack.c.h.b16 %v322
    %v1473 = vunpack.c.l.b16 %v323
    %v1474 = vunpack.c.h.b16 %v323
    %v1475 = vunpack.c.l.b16 %v324
    %v1476 = vunpack.c.h.b16 %v324
    %v1477 = vunpack.c.l.b16 %v325
    %v1478 = vunpack.c.h.b16 %v325
    %v1479 = vunpack.c.l.b16 %v326
    %v1480 = vunpack.c.h.b16 %v326
    %v1481 = vunpack.c.l.b16 %v327
    %v1482 = vunpack.c.h.b16 %v327
    %v1483 = vunpack.c.l.b16 %v328
    %v1484 = vunpack.c.h.b16 %v328
    %v1485 = vunpack.c.l.b16 %v329
    %v1486 = vunpack.c.h.b16 %v329
    %v1487 = vunpack.c.l.b16 %v330
    %v1488 = vunpack.c.h.b16 %v330
    %v1489 = vunpack.c.l.b16 %v331
    %v1490 = vunpack.c.h.b16 %v331
    %v1491 = vunpack.c.l.b16 %v332
    %v1492 = vunpack.c.h.b16 %v332
    %v1493 = vunpack.c.l.b16 %v333
    %v1494 = vunpack.c.h.b16 %v333
    %v1495 = vunpack.c.l.b16 %v334
    %v1496 = vunpack.c.h.b16 %v334
    %v1497 = vunpack.c.l.b16 %v335
    %v1498 = vunpack.c.h.b16 %v335
    %v1499 = vunpack.c.l.b16 %v336
    %v1500 = vunpack.c.h.b16 %v336
    %v1501 = vunpack.c.l.b16 %v337
    %v1502 = vunpack.c.h.b16 %v337
    %v1503 = vunpack.c.l.b16 %v338
    %v1504 = vunpack.c.h.b16 %v338
    %v1505 = vunpack.c.l.b16 %v339
    %v1506 = vunpack.c.h.b16 %v339
    %v1507 = vunpack.c.l.b16 %v340
    %v1508 = vunpack.c.h.b16 %v340
    %v1509 = vunpack.c.l.b16 %v341
    %v1510 = vunpack.c.h.b16 %v341
    %v1511 = vunpack.c.l.b16 %v342
    %v1512 = vunpack.c.h.b16 %v342
    %v1513 = vunpack.c.l.b16 %v343
    %v1514 = vunpack.c.h.b16 %v343
    %v1515 = vunpack.c.l.b16 %v344
    %v1516 = vunpack.c.h.b16 %v344
    %v1517 = vunpack.c.l.b16 %v345
    %v1518 = vunpack.c.h.b16 %v345
    %v1519 = vunpack.c.l.b16 %v346
    %v1520 = vunpack.c.h.b16 %v346
    %v1521 = vunpack.c.l.b16 %v347
    %v1522 = vunpack.c.h.b16 %v347
    %v1523 = vunpack.c.l.b16 %v348
    %v1524 = vunpack.c.h.b16 %v348
    %v1525 = vunpack.c.l.b16 %v349
    %v1526 = vunpack.c.h.b16 %v349
    %v1527 = vunpack.c.l.b16 %v350
    %v1528 = vunpack.c.h.b16 %v350
    %v1529 = vunpack.c.l.b16 %v351
    %v1530 = vunpack.c.h.b16 %v351
    %v1531 = vunpack.c.l.b16 %v352
    %v1532 = vunpack.c.h.b16 %v352
    %v1533 = vunpack.c.l.b16 %v353
    %v1534 = vunpack.c.h.b16 %v353
    %v1535 = vunpack.c.l.b16 %v354
    %v1536 = vunpack.c.h.b16 %v354
    %v1537 = vunpack.c.l.b16 %v355
    %v1538 = vunpack.c.h.b16 %v355
    %v1539 = vunpack.c.l.b16 %v356
    %v1540 = vunpack.c.h.b16 %v356
    %v1541 = vunpack.c.l.b16 %v357
    %v1542 = vunpack.c.h.b16 %v357
    %v1543 = vunpack.c.l.b16 %v358
    %v1544 = vunpack.c.h.b16 %v358
    %v1545 = vunpack.c.l.b16 %v359
    %v1546 = vunpack.c.h.b16 %v359
    %v1547 = vunpack.c.l.b16 %v360
    %v1548 = vunpack.c.h.b16 %v360
    %v1549 = vunpack.c.l.b16 %v361
    %v1550 = vunpack.c.h.b16 %v361
    %v1551 = vunpack.c.l.b16 %v362
    %v1552 = vunpack.c.h.b16 %v362
    %v1553 = vunpack.c.l.b16 %v363
    %v1554 = vunpack.c.h.b16 %v363
    %v1555 = vunpack.c.l.b16 %v364
    %v1556 = vunpack.c.h.b16 %v364
    %v1557 = vunpack.c.l.b16 %v365
    %v1558 = vunpack.c.h.b16 %v365
    %v1559 = vunpack.c.l.b16 %v366
    %v1560 = vunpack.c.h.b16 %v366
    %v1561 = vunpack.c.l.b16 %v367
    %v1562 = vunpack.c.h.b16 %v367
    %v1563 = vunpack.c.l.b16 %v368
    %v1564 = vunpack.c.h.b16 %v368
    %v1565 = vunpack.c.l.b16 %v369
    %v1566 = vunpack.c.h.b16 %v369
    %v1567 = vunpack.c.l.b16 %v370
    %v1568 = vunpack.c.h.b16 %v370
    %v1569 = vunpack.c.l.b16 %v371
    %v1570 = vunpack.c.h.b16 %v371
    %v1571 = vunpack.c.l.b16 %v372
    %v1572 = vunpack.c.h.b16 %v372
    %v1573 = vunpack.c.l.b16 %v373
    %v1574 = vunpack.c.h.b16 %v373
    %v1575 = vunpack.c.l.b16 %v374
    %v1576 = vunpack.c.h.b16 %v374
    %v1577 = vunpack.c.l.b16 %v375
    %v1578 = vunpack.c.h.b16 %v375
    %v1579 = vunpack.c.l.b16 %v376
    %v1580 = vunpack.c.h.b16 %v376
    %v1581 = vunpack.c.l.b16 %v377
    %v1582 = vunpack.c.h.b16 %v377
    %v1583 = vunpack.c.l.b16 %v378
    %v1584 = vunpack.c.h.b16 %v378
    %v1585 = vunpack.c.l.b16 %v379
    %v1586 = vunpack.c.h.b16 %v379
    %v1587 = vunpack.c.l.b16 %v380
    %v1588 = vunpack.c.h.b16 %v380
    %v1589 = vunpack.c.l.b16 %v381
    %v1590 = vunpack.c.h.b16 %v381
    %v1591 = vunpack.c.l.b16 %v382
    %v1592 = vunpack.c.h.b16 %v382
    %v1593 = vunpack.c.l.b16 %v383
    %v1594 = vunpack.c.h.b16 %v383
    %v1595 = vunpack.c.l.b16 %v384
    %v1596 = vunpack.c.h.b16 %v384
    %v1597 = vunpack.c.l.b16 %v385
    %v1598 = vunpack.c.h.b16 %v385
    %v1599 = vunpack.c.l.b16 %v386
    %v1600 = vunpack.c.h.b16 %v386
    %v1601 = vunpack.c.l.b16 %v387
    %v1602 = vunpack.c.h.b16 %v387
    %v1603 = vunpack.c.l.b16 %v388
    %v1604 = vunpack.c.h.b16 %v388
    %v1605 = vunpack.c.l.b16 %v389
    %v1606 = vunpack.c.h.b16 %v389
    %v1607 = vunpack.c.l.b16 %v390
    %v1608 = vunpack.c.h.b16 %v390
    %v1609 = vunpack.c.l.b16 %v391
    %v1610 = vunpack.c.h.b16 %v391
    %v1611 = vunpack.c.l.b16 %v392
    %v1612 = vunpack.c.h.b16 %v392
    %v1613 = vunpack.c.l.b16 %v393
    %v1614 = vunpack.c.h.b16 %v393
    %v1615 = vunpack.c.l.b16 %v394
    %v1616 = vunpack.c.h.b16 %v394
    %v1617 = vunpack.c.l.b16 %v395
    %v1618 = vunpack.c.h.b16 %v395
    %v1619 = vunpack.c.l.b16 %v396
    %v1620 = vunpack.c.h.b16 %v396
    %v1621 = vunpack.c.l.b16 %v397
    %v1622 = vunpack.c.h.b16 %v397
    %v1623 = vunpack.c.l.b16 %v398
    %v1624 = vunpack.c.h.b16 %v398
    %v1625 = vunpack.c.l.b16 %v399
    %v1626 = vunpack.c.h.b16 %v399
    %v1627 = vunpack.c.l.b16 %v400
    %v1628 = vunpack.c.h.b16 %v400
    %v1629 = vunpack.c.l.b16 %v401
    %v1630 = vunpack.c.h.b16 %v401
    %v1631 = vunpack.c.l.b16 %v402
    %v1632 = vunpack.c.h.b16 %v402
    %v1633 = vunpack.c.l.b16 %v403
    %v1634 = vunpack.c.h.b16 %v403
    %v1635 = vunpack.c.l.b16 %v404
    %v1636 = vunpack.c.h.b16 %v404
    %v1637 = vunpack.c.l.b16 %v405
    %v1638 = vunpack.c.h.b16 %v405
    %v1639 = vunpack.c.l.b16 %v406
    %v1640 = vunpack.c.h.b16 %v406
    %v1641 = vunpack.c.l.b16 %v407
    %v1642 = vunpack.c.h.b16 %v407
    %v1643 = vunpack.c.l.b16 %v408
    %v1644 = vunpack.c.h.b16 %v408
    %v1645 = vunpack.c.l.b16 %v409
    %v1646 = vunpack.c.h.b16 %v409
    %v1647 = vunpack.c.l.b16 %v410
    %v1648 = vunpack.c.h.b16 %v410
    %v1649 = vunpack.c.l.b16 %v411
    %v1650 = vunpack.c.h.b16 %v411
    %v1651 = vunpack.c.l.b16 %v412
    %v1652 = vunpack.c.h.b16 %v412
    %v1653 = vunpack.c.l.b16 %v413
    %v1654 = vunpack.c.h.b16 %v413
    %v1655 = vunpack.c.l.b16 %v414
    %v1656 = vunpack.c.h.b16 %v414
    %v1657 = vunpack.c.l.b16 %v415
    %v1658 = vunpack.c.h.b16 %v415
    %v1659 = vunpack.c.l.b16 %v416
    %v1660 = vunpack.c.h.b16 %v416
    %v1661 = vunpack.c.l.b16 %v417
    %v1662 = vunpack.c.h.b16 %v417
    %v1663 = vunpack.c.l.b16 %v418
    %v1664 = vunpack.c.h.b16 %v418
    %v1665 = vunpack.c.l.b16 %v419
    %v1666 = vunpack.c.h.b16 %v419
    %v1667 = vunpack.c.l.b16 %v420
    %v1668 = vunpack.c.h.b16 %v420
    %v1669 = vunpack.c.l.b16 %v421
    %v1670 = vunpack.c.h.b16 %v421
    %v1671 = vunpack.c.l.b16 %v422
    %v1672 = vunpack.c.h.b16 %v422
    %v1673 = vunpack.c.l.b16 %v423
    %v1674 = vunpack.c.h.b16 %v423
    %v1675 = vunpack.c.l.b16 %v424
    %v1676 = vunpack.c.h.b16 %v424
    %v1677 = vunpack.c.l.b16 %v425
    %v1678 = vunpack.c.h.b16 %v425
    %v1679 = vunpack.c.l.b16 %v426
    %v1680 = vunpack.c.h.b16 %v426
    %v1681 = vunpack.c.l.b16 %v427
    %v1682 = vunpack.c.h.b16 %v427
    %v1683 = vunpack.c.l.b16 %v428
    %v1684 = vunpack.c.h.b16 %v428
    %v1685 = vunpack.c.l.b16 %v429
    %v1686 = vunpack.c.h.b16 %v429
    %v1687 = vunpack.c.l.b16 %v430
    %v1688 = vunpack.c.h.b16 %v430
    %v1689 = vunpack.c.l.b16 %v431
    %v1690 = vunpack.c.h.b16 %v431
    %v1691 = vunpack.c.l.b16 %v432
    %v1692 = vunpack.c.h.b16 %v432
    %v1693 = vunpack.c.l.b16 %v433
    %v1694 = vunpack.c.h.b16 %v433
    %v1695 = vunpack.c.l.b16 %v434
    %v1696 = vunpack.c.h.b16 %v434
    %v1697 = vunpack.c.l.b16 %v435
    %v1698 = vunpack.c.h.b16 %v435
    %v1699 = vunpack.c.l.b16 %v436
    %v1700 = vunpack.c.h.b16 %v436
    %v1701 = vunpack.c.l.b16 %v437
    %v1702 = vunpack.c.h.b16 %v437
    %v1703 = vunpack.c.l.b16 %v438
    %v1704 = vunpack.c.h.b16 %v438
    %v1705 = vunpack.c.l.b16 %v439
    %v1706 = vunpack.c.h.b16 %v439
    %v1707 = vunpack.c.l.b16 %v440
    %v1708 = vunpack.c.h.b16 %v440
    %v1709 = vunpack.c.l.b16 %v441
    %v1710 = vunpack.c.h.b16 %v441
    %v1711 = vunpack.c.l.b16 %v442
    %v1712 = vunpack.c.h.b16 %v442
    %v1713 = vpack.c.b16 %v1269, %v1265
    %v1714 = vpack.c.b16 %v1270, %v1266
    %v1715 = vpack.c.b16 %v1271, %v1267
    %v1716 = vpack.c.b16 %v1272, %v1268
    %v1717 = vpack.c.b16 %v1277, %v1273
    %v1718 = vpack.c.b16 %v1278, %v1274
    %v1719 = vpack.c.b16 %v1279, %v1275
    %v1720 = vpack.c.b16 %v1280, %v1276
    %v1721 = vpack.c.b16 %v1285, %v1281
    %v1722 = vpack.c.b16 %v1286, %v1282
    %v1723 = vpack.c.b16 %v1287, %v1283
    %v1724 = vpack.c.b16 %v1288, %v1284
    %v1725 = vpack.c.b16 %v1293, %v1289
    %v1726 = vpack.c.b16 %v1294, %v1290
    %v1727 = vpack.c.b16 %v1295, %v1291
    %v1728 = vpack.c.b16 %v1296, %v1292
    %v1729 = vpack.c.b16 %v1301, %v1297
    %v1730 = vpack.c.b16 %v1302, %v1298
    %v1731 = vpack.c.b16 %v1303, %v1299
    %v1732 = vpack.c.b16 %v1304, %v1300
    %v1733 = vpack.c.b16 %v1309, %v1305
    %v1734 = vpack.c.b16 %v1310, %v1306
    %v1735 = vpack.c.b16 %v1311, %v1307
    %v1736 = vpack.c.b16 %v1312, %v1308
    %v1737 = vpack.c.b16 %v1317, %v1313
    %v1738 = vpack.c.b16 %v1318, %v1314
    %v1739 = vpack.c.b16 %v1319, %v1315
    %v1740 = vpack.c.b16 %v1320, %v1316
    %v1741 = vpack.c.b16 %v1325, %v1321
    %v1742 = vpack.c.b16 %v1326, %v1322
    %v1743 = vpack.c.b16 %v1327, %v1323
    %v1744 = vpack.c.b16 %v1328, %v1324
    %v1745 = vpack.c.b16 %v1333, %v1329
    %v1746 = vpack.c.b16 %v1334, %v1330
    %v1747 = vpack.c.b16 %v1335, %v1331
    %v1748 = vpack.c.b16 %v1336, %v1332
    %v1749 = vpack.c.b16 %v1341, %v1337
    %v1750 = vpack.c.b16 %v1342, %v1338
    %v1751 = vpack.c.b16 %v1343, %v1339
    %v1752 = vpack.c.b16 %v1344, %v1340
    %v1753 = vpack.c.b16 %v1349, %v1345
    %v1754 = vpack.c.b16 %v1350, %v1346
    %v1755 = vpack.c.b16 %v1351, %v1347
    %v1756 = vpack.c.b16 %v1352, %v1348
    %v1757 = vpack.c.b16 %v1357, %v1353
    %v1758 = vpack.c.b16 %v1358, %v1354
    %v1759 = vpack.c.b16 %v1359, %v1355
    %v1760 = vpack.c.b16 %v1360, %v1356
    %v1761 = vpack.c.b16 %v1365, %v1361
    %v1762 = vpack.c.b16 %v1366, %v1362
    %v1763 = vpack.c.b16 %v1367, %v1363
    %v1764 = vpack.c.b16 %v1368, %v1364
    %v1765 = vpack.c.b16 %v1373, %v1369
    %v1766 = vpack.c.b16 %v1374, %v1370
    %v1767 = vpack.c.b16 %v1375, %v1371
    %v1768 = vpack.c.b16 %v1376, %v1372
    %v1769 = vpack.c.b16 %v1381, %v1377
    %v1770 = vpack.c.b16 %v1382, %v1378
    %v1771 = vpack.c.b16 %v1383, %v1379
    %v1772 = vpack.c.b16 %v1384, %v1380
    %v1773 = vpack.c.b16 %v1389, %v1385
    %v1774 = vpack.c.b16 %v1390, %v1386
    %v1775 = vpack.c.b16 %v1391, %v1387
    %v1776 = vpack.c.b16 %v1392, %v1388
    %v1777 = vpack.c.b16 %v1397, %v1393
    %v1778 = vpack.c.b16 %v1398, %v1394
    %v1779 = vpack.c.b16 %v1399, %v1395
    %v1780 = vpack.c.b16 %v1400, %v1396
    %v1781 = vpack.c.b16 %v1405, %v1401
    %v1782 = vpack.c.b16 %v1406, %v1402
    %v1783 = vpack.c.b16 %v1407, %v1403
    %v1784 = vpack.c.b16 %v1408, %v1404
    %v1785 = vpack.c.b16 %v1413, %v1409
    %v1786 = vpack.c.b16 %v1414, %v1410
    %v1787 = vpack.c.b16 %v1415, %v1411
    %v1788 = vpack.c.b16 %v1416, %v1412
    %v1789 = vpack.c.b16 %v1421, %v1417
    %v1790 = vpack.c.b16 %v1422, %v1418
    %v1791 = vpack.c.b16 %v1423, %v1419
    %v1792 = vpack.c.b16 %v1424, %v1420
    %v1793 = vpack.c.b16 %v1429, %v1425
    %v1794 = vpack.c.b16 %v1430, %v1426
    %v1795 = vpack.c.b16 %v1431, %v1427
    %v1796 = vpack.c.b16 %v1432, %v1428
    %v1797 = vpack.c.b16 %v1437, %v1433
    %v1798 = vpack.c.b16 %v1438, %v1434
    %v1799 = vpack.c.b16 %v1439, %v1435
    %v1800 = vpack.c.b16 %v1440, %v1436
    %v1801 = vpack.c.b16 %v1445, %v1441
    %v1802 = vpack.c.b16 %v1446, %v1442
    %v1803 = vpack.c.b16 %v1447, %v1443
    %v1804 = vpack.c.b16 %v1448, %v1444
    %v1805 = vpack.c.b16 %v1453, %v1449
    %v1806 = vpack.c.b16 %v1454, %v1450
    %v1807 = vpack.c.b16 %v1455, %v1451
    %v1808 = vpack.c.b16 %v1456, %v1452
    %v1809 = vpack.c.b16 %v1461, %v1457
    %v1810 = vpack.c.b16 %v1462, %v1458
    %v1811 = vpack.c.b16 %v1463, %v1459
    %v1812 = vpack.c.b16 %v1464, %v1460
    %v1813 = vpack.c.b16 %v1469, %v1465
    %v1814 = vpack.c.b16 %v1470, %v1466
    %v1815 = vpack.c.b16 %v1471, %v1467
    %v1816 = vpack.c.b16 %v1472, %v1468
    %v1817 = vpack.c.b16 %v1477, %v1473
    %v1818 = vpack.c.b16 %v1478, %v1474
    %v1819 = vpack.c.b16 %v1479, %v1475
    %v1820 = vpack.c.b16 %v1480, %v1476
    %v1821 = vpack.c.b16 %v1485, %v1481
    %v1822 = vpack.c.b16 %v1486, %v1482
    %v1823 = vpack.c.b16 %v1487, %v1483
    %v1824 = vpack.c.b16 %v1488, %v1484
    %v1825 = vpack.c.b16 %v1493, %v1489
    %v1826 = vpack.c.b16 %v1494, %v1490
    %v1827 = vpack.c.b16 %v1495, %v1491
    %v1828 = vpack.c.b16 %v1496, %v1492
    %v1829 = vpack.c.b16 %v1501, %v1497
    %v1830 = vpack.c.b16 %v1502, %v1498
    %v1831 = vpack.c.b16 %v1503, %v1499
    %v1832 = vpack.c.b16 %v1504, %v1500
    %v1833 = vpack.c.b16 %v1509, %v1505
    %v1834 = vpack.c.b16 %v1510, %v1506
    %v1835 = vpack.c.b16 %v1511, %v1507
    %v1836 = vpack.c.b16 %v1512, %v1508
    %v1837 = vpack.c.b16 %v1517, %v1513
    %v1838 = vpack.c.b16 %v1518, %v1514
    %v1839 = vpack.c.b16 %v1519, %v1515
    %v1840 = vpack.c.b16 %v1520, %v1516
    %v1841 = vpack.c.b16 %v1525, %v1521
    %v1842 = vpack.c.b16 %v1526, %v1522
    %v1843 = vpack.c.b16 %v1527, %v1523
    %v1844 = vpack.c.b16 %v1528, %v1524
    %v1845 = vpack.c.b16 %v1533, %v1529
    %v1846 = vpack.c.b16 %v1534, %v1530
    %v1847 = vpack.c.b16 %v1535, %v1531
    %v1848 = vpack.c.b16 %v1536, %v1532
    %v1849 = vpack.c.b16 %v1541, %v1537
    %v1850 = vpack.c.b16 %v1542, %v1538
    %v1851 = vpack.c.b16 %v1543, %v1539
    %v1852 = vpack.c.b16 %v1544, %v1540
    %v1853 = vpack.c.b16 %v1549, %v1545
    %v1854 = vpack.c.b16 %v1550, %v1546
    %v1855 = vpack.c.b16 %v1551, %v1547
    %v1856 = vpack.c.b16 %v1552, %v1548
    %v1857 = vpack.c.b16 %v1557, %v1553
    %v1858 = vpack.c.b16 %v1558, %v1554
    %v1859 = vpack.c.b16 %v1559, %v1555
    %v1860 = vpack.c.b16 %v1560, %v1556
    %v1861 = vpack.c.b16 %v1565, %v1561
    %v1862 = vpack.c.b16 %v1566, %v1562
    %v1863 = vpack.c.b16 %v1567, %v1563
    %v1864 = vpack.c.b16 %v1568, %v1564
    %v1865 = vpack.c.b16 %v1573, %v1569
    %v1866 = vpack.c.b16 %v1574, %v1570
    %v1867 = vpack.c.b16 %v1575, %v1571
    %v1868 = vpack.c.b16 %v1576, %v1572
    %v1869 = vpack.c.b16 %v1581, %v1577
    %v1870 = vpack.c.b16 %v1582, %v1578
    %v1871 = vpack.c.b16 %v1583, %v1579
    %v1872 = vpack.c.b16 %v1584, %v1580
    %v1873 = vpack.c.b16 %v1589, %v1585
    %v1874 = vpack.c.b16 %v1590, %v1586
    %v1875 = vpack.c.b16 %v1591, %v1587
    %v1876 = vpack.c.b16 %v1592, %v1588
    %v1877 = vpack.c.b16 %v1597, %v1593
    %v1878 = vpack.c.b16 %v1598, %v1594
    %v1879 = vpack.c.b16 %v1599, %v1595
    %v1880 = vpack.c.b16 %v1600, %v1596
    %v1881 = vpack.c.b16 %v1605, %v1601
    %v1882 = vpack.c.b16 %v1606, %v1602
    %v1883 = vpack.c.b16 %v1607, %v1603
    %v1884 = vpack.c.b16 %v1608, %v1604
    %v1885 = vpack.c.b16 %v1613, %v1609
    %v1886 = vpack.c.b16 %v1614, %v1610
    %v1887 = vpack.c.b16 %v1615, %v1611
    %v1888 = vpack.c.b16 %v1616, %v1612
    %v1889 = vpack.c.b16 %v1621, %v1617
    %v1890 = vpack.c.b16 %v1622, %v1618
    %v1891 = vpack.c.b16 %v1623, %v1619
    %v1892 = vpack.c.b16 %v1624, %v1620
    %v1893 = vpack.c.b16 %v1629, %v1625
    %v1894 = vpack.c.b16 %v1630, %v1626
    %v1895 = vpack.c.b16 %v1631, %v1627
    %v1896 = vpack.c.b16 %v1632, %v1628
    %v1897 = vpack.c.b16 %v1637, %v1633
    %v1898 = vpack.c.b16 %v1638, %v1634
    %v1899 = vpack.c.b16 %v1639, %v1635
    %v1900 = vpack.c.b16 %v1640, %v1636
    %v1901 = vpack.c.b16 %v1645, %v1641
    %v1902 = vpack.c.b16 %v1646, %v1642
    %v1903 = vpack.c.b16 %v1647, %v1643
    %v1904 = vpack.c.b16 %v1648, %v1644
    %v1905 = vpack.c.b16 %v1653, %v1649
    %v1906 = vpack.c.b16 %v1654, %v1650
    %v1907 = vpack.c.b16 %v1655, %v1651
    %v1908 = vpack.c.b16 %v1656, %v1652
    %v1909 = vpack.c.b16 %v1661, %v1657
    %v1910 = vpack.c.b16 %v1662, %v1658
    %v1911 = vpack.c.b16 %v1663, %v1659
    %v1912 = vpack.c.b16 %v1664, %v1660
    %v1913 = vpack.c.b16 %v1669, %v1665
    %v1914 = vpack.c.b16 %v1670, %v1666
    %v1915 = vpack.c.b16 %v1671, %v1667
    %v1916 = vpack.c.b16 %v1672, %v1668
    %v1917 = vpack.c.b16 %v1677, %v1673
    %v1918 = vpack.c.b16 %v1678, %v1674
    %v1919 = vpack.c.b16 %v1679, %v1675
    %v1920 = vpack.c.b16 %v1680, %v1676
    %v1921 = vpack.c.b16 %v1685, %v1681
    %v1922 = vpack.c.b16 %v1686, %v1682
    %v1923 = vpack.c.b16 %v1687, %v1683
    %v1924 = vpack.c.b16 %v1688, %v1684
    %v1925 = vpack.c.b16 %v1693, %v1689
    %v1926 = vpack.c.b16 %v1694, %v1690
    %v1927 = vpack.c.b16 %v1695, %v1691
    %v1928 = vpack.c.b16 %v1696, %v1692
    %v1929 = vpack.c.b16 %v1701, %v1697
    %v1930 = vpack.c.b16 %v1702, %v1698
    %v1931 = vpack.c.b16 %v1703, %v1699
    %v1932 = vpack.c.b16 %v1704, %v1700
    %v1933 = vpack.c.b16 %v1709, %v1705
    %v1934 = vpack.c.b16 %v1710, %v1706
    %v1935 = vpack.c.b16 %v1711, %v1707
    %v1936 = vpack.c.b16 %v1712, %v1708
    %2161 = vmatprep.subr.bf16.mxu0 %v1714
    %2162 = vmatpush1.bf16.msra.mxu0 %v1713
    %2163 = vmatprep.subr.bf16.mxu0 %v1718
    %2164 = vmatpush1.bf16.msra.mxu0 %v1717
    %2165 = vmatprep.subr.bf16.mxu0 %v1722
    %2166 = vmatpush1.bf16.msra.mxu0 %v1721
    %2167 = vmatprep.subr.bf16.mxu0 %v1726
    %2168 = vmatpush1.bf16.msra.mxu0 %v1725
    %2169 = vmatprep.subr.bf16.mxu0 %v1730
    %2170 = vmatpush1.bf16.msra.mxu0 %v1729
    %2171 = vmatprep.subr.bf16.mxu0 %v1734
    %2172 = vmatpush1.bf16.msra.mxu0 %v1733
    %2173 = vmatprep.subr.bf16.mxu0 %v1738
    %2174 = vmatpush1.bf16.msra.mxu0 %v1737
    %2175 = vmatprep.subr.bf16.mxu0 %v1742
    %2176 = vmatpush1.bf16.msra.mxu0 %v1741
    %2177 = vmatprep.subr.bf16.mxu0 %v1746
    %2178 = vmatpush1.bf16.msra.mxu0 %v1745
    %2179 = vmatprep.subr.bf16.mxu0 %v1750
    %2180 = vmatpush1.bf16.msra.mxu0 %v1749
    %2181 = vmatprep.subr.bf16.mxu0 %v1754
    %2182 = vmatpush1.bf16.msra.mxu0 %v1753
    %2183 = vmatprep.subr.bf16.mxu0 %v1758
    %2184 = vmatpush1.bf16.msra.mxu0 %v1757
    %2185 = vmatprep.subr.bf16.mxu0 %v1762
    %2186 = vmatpush1.bf16.msra.mxu0 %v1761
    %2187 = vmatprep.subr.bf16.mxu0 %v1766
    %2188 = vmatpush1.bf16.msra.mxu0 %v1765
    %2189 = vmatprep.subr.bf16.mxu0 %v1770
    %2190 = vmatpush1.bf16.msra.mxu0 %v1769
    %2191 = vmatprep.subr.bf16.mxu0 %v1774
    %2192 = vmatpush1.bf16.msra.mxu0 %v1773
    %2193 = vmatprep.mubr.bf16.mxu0 %v818
    %2194 = vmatmul.mubr.bf16.gmra.mrb[0].mxu0 %v817
    %v2195 = vpop.f32.mrb[0].mxu0
    %v2196 = vadd.f32 %v448, %v2195
    %v2197 = vpop.f32.mrb[0].mxu0
    %v2198 = vadd.f32 %v452, %v2197
    %v2199 = vpop.f32.mrb[0].mxu0
    %v2200 = vadd.f32 %v448, %v2199
    %v2201 = vpop.f32.mrb[0].mxu0
    %v2202 = vadd.f32 %v452, %v2201
    %2203 = vmatprep.mubr.bf16.mxu0 %v825
    %2204 = vmatmul.mubr.bf16.gmra.mrb[0].mxu0 %v824
    %v2205 = vpop.f32.mrb[0].mxu0
    %v2206 = vadd.f32 %v448, %v2205
    %v2207 = vpop.f32.mrb[0].mxu0
    %v2208 = vadd.f32 %v452, %v2207
    %v2209 = vpop.f32.mrb[0].mxu0
    %v2210 = vadd.f32 %v448, %v2209
    %v2211 = vpop.f32.mrb[0].mxu0
    %v2212 = vadd.f32 %v452, %v2211
    %2213 = vmatprep.mubr.bf16.mxu0 %v832
    %2214 = vmatmul.mubr.bf16.gmra.mrb[0].mxu0 %v831
    %v2215 = vpop.f32.mrb[0].mxu0
    %v2216 = vadd.f32 %v448, %v2215
    %v2217 = vpop.f32.mrb[0].mxu0
    %v2218 = vadd.f32 %v452, %v2217
    %v2219 = vpop.f32.mrb[0].mxu0
    %v2220 = vadd.f32 %v448, %v2219
    %v2221 = vpop.f32.mrb[0].mxu0
    %v2222 = vadd.f32 %v452, %v2221
    %2223 = vmatprep.mubr.bf16.mxu0 %v839
    %2224 = vmatmul.mubr.bf16.gmra.mrb[0].mxu0 %v838
    %v2225 = vpop.f32.mrb[0].mxu0
    %v2226 = vadd.f32 %v448, %v2225
    %v2227 = vpop.f32.mrb[0].mxu0
    %v2228 = vadd.f32 %v452, %v2227
    %v2229 = vpop.f32.mrb[0].mxu0
    %v2230 = vadd.f32 %v448, %v2229
    %v2231 = vpop.f32.mrb[0].mxu0
    %v2232 = vadd.f32 %v452, %v2231
    %2233 = vmatprep.mubr.bf16.mxu0 %v846
    %2234 = vmatmul.mubr.bf16.gmra.mrb[0].mxu0 %v845
    %v2235 = vpop.f32.mrb[0].mxu0
    %v2236 = vadd.f32 %v448, %v2235
    %v2237 = vpop.f32.mrb[0].mxu0
    %v2238 = vadd.f32 %v452, %v2237
    %v2239 = vpop.f32.mrb[0].mxu0
    %v2240 = vadd.f32 %v448, %v2239
    %v2241 = vpop.f32.mrb[0].mxu0
    %v2242 = vadd.f32 %v452, %v2241
    %2243 = vmatprep.mubr.bf16.mxu0 %v853
    %2244 = vmatmul.mubr.bf16.gmra.mrb[0].mxu0 %v852
    %v2245 = vpop.f32.mrb[0].mxu0
    %v2246 = vadd.f32 %v448, %v2245
    %v2247 = vpop.f32.mrb[0].mxu0
    %v2248 = vadd.f32 %v452, %v2247
    %v2249 = vpop.f32.mrb[0].mxu0
    %v2250 = vadd.f32 %v448, %v2249
    %v2251 = vpop.f32.mrb[0].mxu0
    %v2252 = vadd.f32 %v452, %v2251
    %2253 = vmatprep.mubr.bf16.mxu0 %v860
    %2254 = vmatmul.mubr.bf16.gmra.mrb[0].mxu0 %v859
    %v2255 = vpop.f32.mrb[0].mxu0
    %v2256 = vadd.f32 %v448, %v2255
    %v2257 = vpop.f32.mrb[0].mxu0
    %v2258 = vadd.f32 %v452, %v2257
    %v2259 = vpop.f32.mrb[0].mxu0
    %v2260 = vadd.f32 %v448, %v2259
    %v2261 = vpop.f32.mrb[0].mxu0
    %v2262 = vadd.f32 %v452, %v2261
    %2263 = vmatprep.mubr.bf16.mxu0 %v867
    %2264 = vmatmul.mubr.bf16.gmra.mrb[0].mxu0 %v866
    %v2265 = vpop.f32.mrb[0].mxu0
    %v2266 = vadd.f32 %v448, %v2265
    %v2267 = vpop.f32.mrb[0].mxu0
    %v2268 = vadd.f32 %v452, %v2267
    %v2269 = vpop.f32.mrb[0].mxu0
    %v2270 = vadd.f32 %v448, %v2269
    %v2271 = vpop.f32.mrb[0].mxu0
    %v2272 = vadd.f32 %v452, %v2271
    %2273 = vmatprep.mubr.bf16.mxu0 %v874
    %2274 = vmatmul.mubr.bf16.gmra.mrb[0].mxu0 %v873
    %v2275 = vpop.f32.mrb[0].mxu0
    %v2276 = vadd.f32 %v448, %v2275
    %v2277 = vpop.f32.mrb[0].mxu0
    %v2278 = vadd.f32 %v452, %v2277
    %v2279 = vpop.f32.mrb[0].mxu0
    %v2280 = vadd.f32 %v448, %v2279
    %v2281 = vpop.f32.mrb[0].mxu0
    %v2282 = vadd.f32 %v452, %v2281
    %2283 = vmatprep.mubr.bf16.mxu0 %v881
    %2284 = vmatmul.mubr.bf16.gmra.mrb[0].mxu0 %v880
    %v2285 = vpop.f32.mrb[0].mxu0
    %v2286 = vadd.f32 %v448, %v2285
    %v2287 = vpop.f32.mrb[0].mxu0
    %v2288 = vadd.f32 %v452, %v2287
    %v2289 = vpop.f32.mrb[0].mxu0
    %v2290 = vadd.f32 %v448, %v2289
    %v2291 = vpop.f32.mrb[0].mxu0
    %v2292 = vadd.f32 %v452, %v2291
    %2293 = vmatprep.mubr.bf16.mxu0 %v888
    %2294 = vmatmul.mubr.bf16.gmra.mrb[0].mxu0 %v887
    %v2295 = vpop.f32.mrb[0].mxu0
    %v2296 = vadd.f32 %v448, %v2295
    %v2297 = vpop.f32.mrb[0].mxu0
    %v2298 = vadd.f32 %v452, %v2297
    %v2299 = vpop.f32.mrb[0].mxu0
    %v2300 = vadd.f32 %v448, %v2299
    %v2301 = vpop.f32.mrb[0].mxu0
    %v2302 = vadd.f32 %v452, %v2301
    %2303 = vmatprep.mubr.bf16.mxu0 %v895
    %2304 = vmatmul.mubr.bf16.gmra.mrb[0].mxu0 %v894
    %v2305 = vpop.f32.mrb[0].mxu0
    %v2306 = vadd.f32 %v448, %v2305
    %v2307 = vpop.f32.mrb[0].mxu0
    %v2308 = vadd.f32 %v452, %v2307
    %v2309 = vpop.f32.mrb[0].mxu0
    %v2310 = vadd.f32 %v448, %v2309
    %v2311 = vpop.f32.mrb[0].mxu0
    %v2312 = vadd.f32 %v452, %v2311
    %2313 = vmatprep.mubr.bf16.mxu0 %v902
    %2314 = vmatmul.mubr.bf16.gmra.mrb[0].mxu0 %v901
    %v2315 = vpop.f32.mrb[0].mxu0
    %v2316 = vadd.f32 %v448, %v2315
    %v2317 = vpop.f32.mrb[0].mxu0
    %v2318 = vadd.f32 %v452, %v2317
    %v2319 = vpop.f32.mrb[0].mxu0
    %v2320 = vadd.f32 %v448, %v2319
    %v2321 = vpop.f32.mrb[0].mxu0
    %v2322 = vadd.f32 %v452, %v2321
    %2323 = vmatprep.mubr.bf16.mxu0 %v909
    %2324 = vmatmul.mubr.bf16.gmra.mrb[0].mxu0 %v908
    %v2325 = vpop.f32.mrb[0].mxu0
    %v2326 = vadd.f32 %v448, %v2325
    %v2327 = vpop.f32.mrb[0].mxu0
    %v2328 = vadd.f32 %v452, %v2327
    %v2329 = vpop.f32.mrb[0].mxu0
    %v2330 = vadd.f32 %v448, %v2329
    %v2331 = vpop.f32.mrb[0].mxu0
    %v2332 = vadd.f32 %v452, %v2331
    %2333 = vmatprep.mubr.bf16.mxu0 %v916
    %2334 = vmatmul.mubr.bf16.gmra.mrb[0].mxu0 %v915
    %v2335 = vpop.f32.mrb[0].mxu0
    %v2336 = vadd.f32 %v448, %v2335
    %v2337 = vpop.f32.mrb[0].mxu0
    %v2338 = vadd.f32 %v452, %v2337
    %v2339 = vpop.f32.mrb[0].mxu0
    %v2340 = vadd.f32 %v448, %v2339
    %v2341 = vpop.f32.mrb[0].mxu0
    %v2342 = vadd.f32 %v452, %v2341
    %2343 = vmatprep.mubr.bf16.mxu0 %v923
    %2344 = vmatmul.mubr.bf16.gmra.mrb[0].mxu0 %v922
    %v2345 = vpop.f32.mrb[0].mxu0
    %v2346 = vadd.f32 %v448, %v2345
    %v2347 = vpop.f32.mrb[0].mxu0
    %v2348 = vadd.f32 %v452, %v2347
    %v2349 = vpop.f32.mrb[0].mxu0
    %v2350 = vadd.f32 %v448, %v2349
    %v2351 = vpop.f32.mrb[0].mxu0
    %v2352 = vadd.f32 %v452, %v2351
    %2353 = vdwg.mxu0
    %2354 = vmatprep.subr.bf16.mxu0 %v1778
    %2355 = vmatpush1.bf16.msra.mxu0 %v1777
    %2356 = vmatprep.subr.bf16.mxu0 %v1782
    %2357 = vmatpush1.bf16.msra.mxu0 %v1781
    %2358 = vmatprep.subr.bf16.mxu0 %v1786
    %2359 = vmatpush1.bf16.msra.mxu0 %v1785
    %2360 = vmatprep.subr.bf16.mxu0 %v1790
    %2361 = vmatpush1.bf16.msra.mxu0 %v1789
    %2362 = vmatprep.subr.bf16.mxu0 %v1794
    %2363 = vmatpush1.bf16.msra.mxu0 %v1793
    %2364 = vmatprep.subr.bf16.mxu0 %v1798
    %2365 = vmatpush1.bf16.msra.mxu0 %v1797
    %2366 = vmatprep.subr.bf16.mxu0 %v1802
    %2367 = vmatpush1.bf16.msra.mxu0 %v1801
    %2368 = vmatprep.subr.bf16.mxu0 %v1806
    %2369 = vmatpush1.bf16.msra.mxu0 %v1805
    %2370 = vmatprep.subr.bf16.mxu0 %v1810
    %2371 = vmatpush1.bf16.msra.mxu0 %v1809
    %2372 = vmatprep.subr.bf16.mxu0 %v1814
    %2373 = vmatpush1.bf16.msra.mxu0 %v1813
    %2374 = vmatprep.subr.bf16.mxu0 %v1818
    %2375 = vmatpush1.bf16.msra.mxu0 %v1817
    %2376 = vmatprep.subr.bf16.mxu0 %v1822
    %2377 = vmatpush1.bf16.msra.mxu0 %v1821
    %2378 = vmatprep.subr.bf16.mxu0 %v1826
    %2379 = vmatpush1.bf16.msra.mxu0 %v1825
    %2380 = vmatprep.subr.bf16.mxu0 %v1830
    %2381 = vmatpush1.bf16.msra.mxu0 %v1829
    %2382 = vmatprep.subr.bf16.mxu0 %v1834
    %2383 = vmatpush1.bf16.msra.mxu0 %v1833
    %2384 = vmatprep.subr.bf16.mxu0 %v1838
    %2385 = vmatpush1.bf16.msra.mxu0 %v1837
    %2386 = vmatprep.mubr.bf16.mxu0 %v820
    %2387 = vmatmul.mubr.bf16.gmra.mrb[0].mxu0 %v819
    %v2388 = vpop.f32.mrb[0].mxu0
    %v2389 = vadd.f32 %v2196, %v2388
    %v2390 = vpop.f32.mrb[0].mxu0
    %v2391 = vadd.f32 %v2198, %v2390
    %v2392 = vpop.f32.mrb[0].mxu0
    %v2393 = vadd.f32 %v2200, %v2392
    %v2394 = vpop.f32.mrb[0].mxu0
    %v2395 = vadd.f32 %v2202, %v2394
    %2396 = vmatprep.mubr.bf16.mxu0 %v827
    %2397 = vmatmul.mubr.bf16.gmra.mrb[0].mxu0 %v826
    %v2398 = vpop.f32.mrb[0].mxu0
    %v2399 = vadd.f32 %v2206, %v2398
    %v2400 = vpop.f32.mrb[0].mxu0
    %v2401 = vadd.f32 %v2208, %v2400
    %v2402 = vpop.f32.mrb[0].mxu0
    %v2403 = vadd.f32 %v2210, %v2402
    %v2404 = vpop.f32.mrb[0].mxu0
    %v2405 = vadd.f32 %v2212, %v2404
    %2406 = vmatprep.mubr.bf16.mxu0 %v834
    %2407 = vmatmul.mubr.bf16.gmra.mrb[0].mxu0 %v833
    %v2408 = vpop.f32.mrb[0].mxu0
    %v2409 = vadd.f32 %v2216, %v2408
    %v2410 = vpop.f32.mrb[0].mxu0
    %v2411 = vadd.f32 %v2218, %v2410
    %v2412 = vpop.f32.mrb[0].mxu0
    %v2413 = vadd.f32 %v2220, %v2412
    %v2414 = vpop.f32.mrb[0].mxu0
    %v2415 = vadd.f32 %v2222, %v2414
    %2416 = vmatprep.mubr.bf16.mxu0 %v841
    %2417 = vmatmul.mubr.bf16.gmra.mrb[0].mxu0 %v840
    %v2418 = vpop.f32.mrb[0].mxu0
    %v2419 = vadd.f32 %v2226, %v2418
    %v2420 = vpop.f32.mrb[0].mxu0
    %v2421 = vadd.f32 %v2228, %v2420
    %v2422 = vpop.f32.mrb[0].mxu0
    %v2423 = vadd.f32 %v2230, %v2422
    %v2424 = vpop.f32.mrb[0].mxu0
    %v2425 = vadd.f32 %v2232, %v2424
    %2426 = vmatprep.mubr.bf16.mxu0 %v848
    %2427 = vmatmul.mubr.bf16.gmra.mrb[0].mxu0 %v847
    %v2428 = vpop.f32.mrb[0].mxu0
    %v2429 = vadd.f32 %v2236, %v2428
    %v2430 = vpop.f32.mrb[0].mxu0
    %v2431 = vadd.f32 %v2238, %v2430
    %v2432 = vpop.f32.mrb[0].mxu0
    %v2433 = vadd.f32 %v2240, %v2432
    %v2434 = vpop.f32.mrb[0].mxu0
    %v2435 = vadd.f32 %v2242, %v2434
    %2436 = vmatprep.mubr.bf16.mxu0 %v855
    %2437 = vmatmul.mubr.bf16.gmra.mrb[0].mxu0 %v854
    %v2438 = vpop.f32.mrb[0].mxu0
    %v2439 = vadd.f32 %v2246, %v2438
    %v2440 = vpop.f32.mrb[0].mxu0
    %v2441 = vadd.f32 %v2248, %v2440
    %v2442 = vpop.f32.mrb[0].mxu0
    %v2443 = vadd.f32 %v2250, %v2442
    %v2444 = vpop.f32.mrb[0].mxu0
    %v2445 = vadd.f32 %v2252, %v2444
    %2446 = vmatprep.mubr.bf16.mxu0 %v862
    %2447 = vmatmul.mubr.bf16.gmra.mrb[0].mxu0 %v861
    %v2448 = vpop.f32.mrb[0].mxu0
    %v2449 = vadd.f32 %v2256, %v2448
    %v2450 = vpop.f32.mrb[0].mxu0
    %v2451 = vadd.f32 %v2258, %v2450
    %v2452 = vpop.f32.mrb[0].mxu0
    %v2453 = vadd.f32 %v2260, %v2452
    %v2454 = vpop.f32.mrb[0].mxu0
    %v2455 = vadd.f32 %v2262, %v2454
    %2456 = vmatprep.mubr.bf16.mxu0 %v869
    %2457 = vmatmul.mubr.bf16.gmra.mrb[0].mxu0 %v868
    %v2458 = vpop.f32.mrb[0].mxu0
    %v2459 = vadd.f32 %v2266, %v2458
    %v2460 = vpop.f32.mrb[0].mxu0
    %v2461 = vadd.f32 %v2268, %v2460
    %v2462 = vpop.f32.mrb[0].mxu0
    %v2463 = vadd.f32 %v2270, %v2462
    %v2464 = vpop.f32.mrb[0].mxu0
    %v2465 = vadd.f32 %v2272, %v2464
    %2466 = vmatprep.mubr.bf16.mxu0 %v876
    %2467 = vmatmul.mubr.bf16.gmra.mrb[0].mxu0 %v875
    %v2468 = vpop.f32.mrb[0].mxu0
    %v2469 = vadd.f32 %v2276, %v2468
    %v2470 = vpop.f32.mrb[0].mxu0
    %v2471 = vadd.f32 %v2278, %v2470
    %v2472 = vpop.f32.mrb[0].mxu0
    %v2473 = vadd.f32 %v2280, %v2472
    %v2474 = vpop.f32.mrb[0].mxu0
    %v2475 = vadd.f32 %v2282, %v2474
    %2476 = vmatprep.mubr.bf16.mxu0 %v883
    %2477 = vmatmul.mubr.bf16.gmra.mrb[0].mxu0 %v882
    %v2478 = vpop.f32.mrb[0].mxu0
    %v2479 = vadd.f32 %v2286, %v2478
    %v2480 = vpop.f32.mrb[0].mxu0
    %v2481 = vadd.f32 %v2288, %v2480
    %v2482 = vpop.f32.mrb[0].mxu0
    %v2483 = vadd.f32 %v2290, %v2482
    %v2484 = vpop.f32.mrb[0].mxu0
    %v2485 = vadd.f32 %v2292, %v2484
    %2486 = vmatprep.mubr.bf16.mxu0 %v890
    %2487 = vmatmul.mubr.bf16.gmra.mrb[0].mxu0 %v889
    %v2488 = vpop.f32.mrb[0].mxu0
    %v2489 = vadd.f32 %v2296, %v2488
    %v2490 = vpop.f32.mrb[0].mxu0
    %v2491 = vadd.f32 %v2298, %v2490
    %v2492 = vpop.f32.mrb[0].mxu0
    %v2493 = vadd.f32 %v2300, %v2492
    %v2494 = vpop.f32.mrb[0].mxu0
    %v2495 = vadd.f32 %v2302, %v2494
    %2496 = vmatprep.mubr.bf16.mxu0 %v897
    %2497 = vmatmul.mubr.bf16.gmra.mrb[0].mxu0 %v896
    %v2498 = vpop.f32.mrb[0].mxu0
    %v2499 = vadd.f32 %v2306, %v2498
    %v2500 = vpop.f32.mrb[0].mxu0
    %v2501 = vadd.f32 %v2308, %v2500
    %v2502 = vpop.f32.mrb[0].mxu0
    %v2503 = vadd.f32 %v2310, %v2502
    %v2504 = vpop.f32.mrb[0].mxu0
    %v2505 = vadd.f32 %v2312, %v2504
    %2506 = vmatprep.mubr.bf16.mxu0 %v904
    %2507 = vmatmul.mubr.bf16.gmra.mrb[0].mxu0 %v903
    %v2508 = vpop.f32.mrb[0].mxu0
    %v2509 = vadd.f32 %v2316, %v2508
    %v2510 = vpop.f32.mrb[0].mxu0
    %v2511 = vadd.f32 %v2318, %v2510
    %v2512 = vpop.f32.mrb[0].mxu0
    %v2513 = vadd.f32 %v2320, %v2512
    %v2514 = vpop.f32.mrb[0].mxu0
    %v2515 = vadd.f32 %v2322, %v2514
    %2516 = vmatprep.mubr.bf16.mxu0 %v911
    %2517 = vmatmul.mubr.bf16.gmra.mrb[0].mxu0 %v910
    %v2518 = vpop.f32.mrb[0].mxu0
    %v2519 = vadd.f32 %v2326, %v2518
    %v2520 = vpop.f32.mrb[0].mxu0
    %v2521 = vadd.f32 %v2328, %v2520
    %v2522 = vpop.f32.mrb[0].mxu0
    %v2523 = vadd.f32 %v2330, %v2522
    %v2524 = vpop.f32.mrb[0].mxu0
    %v2525 = vadd.f32 %v2332, %v2524
    %2526 = vmatprep.mubr.bf16.mxu0 %v918
    %2527 = vmatmul.mubr.bf16.gmra.mrb[0].mxu0 %v917
    %v2528 = vpop.f32.mrb[0].mxu0
    %v2529 = vadd.f32 %v2336, %v2528
    %v2530 = vpop.f32.mrb[0].mxu0
    %v2531 = vadd.f32 %v2338, %v2530
    %v2532 = vpop.f32.mrb[0].mxu0
    %v2533 = vadd.f32 %v2340, %v2532
    %v2534 = vpop.f32.mrb[0].mxu0
    %v2535 = vadd.f32 %v2342, %v2534
    %2536 = vmatprep.mubr.bf16.mxu0 %v925
    %2537 = vmatmul.mubr.bf16.gmra.mrb[0].mxu0 %v924
    %v2538 = vpop.f32.mrb[0].mxu0
    %v2539 = vadd.f32 %v2346, %v2538
    %v2540 = vpop.f32.mrb[0].mxu0
    %v2541 = vadd.f32 %v2348, %v2540
    %v2542 = vpop.f32.mrb[0].mxu0
    %v2543 = vadd.f32 %v2350, %v2542
    %v2544 = vpop.f32.mrb[0].mxu0
    %v2545 = vadd.f32 %v2352, %v2544
    %2546 = vdwg.mxu0
    %2547 = vmatprep.subr.bf16.mxu0 %v1842
    %2548 = vmatpush1.bf16.msra.mxu0 %v1841
    %2549 = vmatprep.subr.bf16.mxu0 %v1846
    %2550 = vmatpush1.bf16.msra.mxu0 %v1845
    %2551 = vmatprep.subr.bf16.mxu0 %v1850
    %2552 = vmatpush1.bf16.msra.mxu0 %v1849
    %2553 = vmatprep.subr.bf16.mxu0 %v1854
    %2554 = vmatpush1.bf16.msra.mxu0 %v1853
    %2555 = vmatprep.subr.bf16.mxu0 %v1858
    %2556 = vmatpush1.bf16.msra.mxu0 %v1857
    %2557 = vmatprep.subr.bf16.mxu0 %v1862
    %2558 = vmatpush1.bf16.msra.mxu0 %v1861
    %2559 = vmatprep.subr.bf16.mxu0 %v1866
    %2560 = vmatpush1.bf16.msra.mxu0 %v1865
    %2561 = vmatprep.subr.bf16.mxu0 %v1870
    %2562 = vmatpush1.bf16.msra.mxu0 %v1869
    %2563 = vmatprep.subr.bf16.mxu0 %v1874
    %2564 = vmatpush1.bf16.msra.mxu0 %v1873
    %2565 = vmatprep.subr.bf16.mxu0 %v1878
    %2566 = vmatpush1.bf16.msra.mxu0 %v1877
    %2567 = vmatprep.subr.bf16.mxu0 %v1882
    %2568 = vmatpush1.bf16.msra.mxu0 %v1881
    %2569 = vmatprep.subr.bf16.mxu0 %v1886
    %2570 = vmatpush1.bf16.msra.mxu0 %v1885
    %2571 = vmatprep.subr.bf16.mxu0 %v1890
    %2572 = vmatpush1.bf16.msra.mxu0 %v1889
    %2573 = vmatprep.subr.bf16.mxu0 %v1894
    %2574 = vmatpush1.bf16.msra.mxu0 %v1893
    %2575 = vmatprep.subr.bf16.mxu0 %v1898
    %2576 = vmatpush1.bf16.msra.mxu0 %v1897
    %2577 = vmatprep.subr.bf16.mxu0 %v1902
    %2578 = vmatpush1.bf16.msra.mxu0 %v1901
    %2579 = vmatprep.mubr.bf16.mxu0 %v822
    %2580 = vmatmul.mubr.bf16.gmra.mrb[0].mxu0 %v821
    %v2581 = vpop.f32.mrb[0].mxu0
    %v2582 = vadd.f32 %v2389, %v2581
    %v2583 = vpop.f32.mrb[0].mxu0
    %v2584 = vadd.f32 %v2391, %v2583
    %v2585 = vpop.f32.mrb[0].mxu0
    %v2586 = vadd.f32 %v2393, %v2585
    %v2587 = vpop.f32.mrb[0].mxu0
    %v2588 = vadd.f32 %v2395, %v2587
    %2589 = vmatprep.mubr.bf16.mxu0 %v829
    %2590 = vmatmul.mubr.bf16.gmra.mrb[0].mxu0 %v828
    %v2591 = vpop.f32.mrb[0].mxu0
    %v2592 = vadd.f32 %v2399, %v2591
    %v2593 = vpop.f32.mrb[0].mxu0
    %v2594 = vadd.f32 %v2401, %v2593
    %v2595 = vpop.f32.mrb[0].mxu0
    %v2596 = vadd.f32 %v2403, %v2595
    %v2597 = vpop.f32.mrb[0].mxu0
    %v2598 = vadd.f32 %v2405, %v2597
    %2599 = vmatprep.mubr.bf16.mxu0 %v836
    %2600 = vmatmul.mubr.bf16.gmra.mrb[0].mxu0 %v835
    %v2601 = vpop.f32.mrb[0].mxu0
    %v2602 = vadd.f32 %v2409, %v2601
    %v2603 = vpop.f32.mrb[0].mxu0
    %v2604 = vadd.f32 %v2411, %v2603
    %v2605 = vpop.f32.mrb[0].mxu0
    %v2606 = vadd.f32 %v2413, %v2605
    %v2607 = vpop.f32.mrb[0].mxu0
    %v2608 = vadd.f32 %v2415, %v2607
    %2609 = vmatprep.mubr.bf16.mxu0 %v843
    %2610 = vmatmul.mubr.bf16.gmra.mrb[0].mxu0 %v842
    %v2611 = vpop.f32.mrb[0].mxu0
    %v2612 = vadd.f32 %v2419, %v2611
    %v2613 = vpop.f32.mrb[0].mxu0
    %v2614 = vadd.f32 %v2421, %v2613
    %v2615 = vpop.f32.mrb[0].mxu0
    %v2616 = vadd.f32 %v2423, %v2615
    %v2617 = vpop.f32.mrb[0].mxu0
    %v2618 = vadd.f32 %v2425, %v2617
    %2619 = vmatprep.mubr.bf16.mxu0 %v850
    %2620 = vmatmul.mubr.bf16.gmra.mrb[0].mxu0 %v849
    %v2621 = vpop.f32.mrb[0].mxu0
    %v2622 = vadd.f32 %v2429, %v2621
    %v2623 = vpop.f32.mrb[0].mxu0
    %v2624 = vadd.f32 %v2431, %v2623
    %v2625 = vpop.f32.mrb[0].mxu0
    %v2626 = vadd.f32 %v2433, %v2625
    %v2627 = vpop.f32.mrb[0].mxu0
    %v2628 = vadd.f32 %v2435, %v2627
    %2629 = vmatprep.mubr.bf16.mxu0 %v857
    %2630 = vmatmul.mubr.bf16.gmra.mrb[0].mxu0 %v856
    %v2631 = vpop.f32.mrb[0].mxu0
    %v2632 = vadd.f32 %v2439, %v2631
    %v2633 = vpop.f32.mrb[0].mxu0
    %v2634 = vadd.f32 %v2441, %v2633
    %v2635 = vpop.f32.mrb[0].mxu0
    %v2636 = vadd.f32 %v2443, %v2635
    %v2637 = vpop.f32.mrb[0].mxu0
    %v2638 = vadd.f32 %v2445, %v2637
    %2639 = vmatprep.mubr.bf16.mxu0 %v864
    %2640 = vmatmul.mubr.bf16.gmra.mrb[0].mxu0 %v863
    %v2641 = vpop.f32.mrb[0].mxu0
    %v2642 = vadd.f32 %v2449, %v2641
    %v2643 = vpop.f32.mrb[0].mxu0
    %v2644 = vadd.f32 %v2451, %v2643
    %v2645 = vpop.f32.mrb[0].mxu0
    %v2646 = vadd.f32 %v2453, %v2645
    %v2647 = vpop.f32.mrb[0].mxu0
    %v2648 = vadd.f32 %v2455, %v2647
    %2649 = vmatprep.mubr.bf16.mxu0 %v871
    %2650 = vmatmul.mubr.bf16.gmra.mrb[0].mxu0 %v870
    %v2651 = vpop.f32.mrb[0].mxu0
    %v2652 = vadd.f32 %v2459, %v2651
    %v2653 = vpop.f32.mrb[0].mxu0
    %v2654 = vadd.f32 %v2461, %v2653
    %v2655 = vpop.f32.mrb[0].mxu0
    %v2656 = vadd.f32 %v2463, %v2655
    %v2657 = vpop.f32.mrb[0].mxu0
    %v2658 = vadd.f32 %v2465, %v2657
    %2659 = vmatprep.mubr.bf16.mxu0 %v878
    %2660 = vmatmul.mubr.bf16.gmra.mrb[0].mxu0 %v877
    %v2661 = vpop.f32.mrb[0].mxu0
    %v2662 = vadd.f32 %v2469, %v2661
    %v2663 = vpop.f32.mrb[0].mxu0
    %v2664 = vadd.f32 %v2471, %v2663
    %v2665 = vpop.f32.mrb[0].mxu0
    %v2666 = vadd.f32 %v2473, %v2665
    %v2667 = vpop.f32.mrb[0].mxu0
    %v2668 = vadd.f32 %v2475, %v2667
    %2669 = vmatprep.mubr.bf16.mxu0 %v885
    %2670 = vmatmul.mubr.bf16.gmra.mrb[0].mxu0 %v884
    %v2671 = vpop.f32.mrb[0].mxu0
    %v2672 = vadd.f32 %v2479, %v2671
    %v2673 = vpop.f32.mrb[0].mxu0
    %v2674 = vadd.f32 %v2481, %v2673
    %v2675 = vpop.f32.mrb[0].mxu0
    %v2676 = vadd.f32 %v2483, %v2675
    %v2677 = vpop.f32.mrb[0].mxu0
    %v2678 = vadd.f32 %v2485, %v2677
    %2679 = vmatprep.mubr.bf16.mxu0 %v892
    %2680 = vmatmul.mubr.bf16.gmra.mrb[0].mxu0 %v891
    %v2681 = vpop.f32.mrb[0].mxu0
    %v2682 = vadd.f32 %v2489, %v2681
    %v2683 = vpop.f32.mrb[0].mxu0
    %v2684 = vadd.f32 %v2491, %v2683
    %v2685 = vpop.f32.mrb[0].mxu0
    %v2686 = vadd.f32 %v2493, %v2685
    %v2687 = vpop.f32.mrb[0].mxu0
    %v2688 = vadd.f32 %v2495, %v2687
    %2689 = vmatprep.mubr.bf16.mxu0 %v899
    %2690 = vmatmul.mubr.bf16.gmra.mrb[0].mxu0 %v898
    %v2691 = vpop.f32.mrb[0].mxu0
    %v2692 = vadd.f32 %v2499, %v2691
    %v2693 = vpop.f32.mrb[0].mxu0
    %v2694 = vadd.f32 %v2501, %v2693
    %v2695 = vpop.f32.mrb[0].mxu0
    %v2696 = vadd.f32 %v2503, %v2695
    %v2697 = vpop.f32.mrb[0].mxu0
    %v2698 = vadd.f32 %v2505, %v2697
    %2699 = vmatprep.mubr.bf16.mxu0 %v906
    %2700 = vmatmul.mubr.bf16.gmra.mrb[0].mxu0 %v905
    %v2701 = vpop.f32.mrb[0].mxu0
    %v2702 = vadd.f32 %v2509, %v2701
    %v2703 = vpop.f32.mrb[0].mxu0
    %v2704 = vadd.f32 %v2511, %v2703
    %v2705 = vpop.f32.mrb[0].mxu0
    %v2706 = vadd.f32 %v2513, %v2705
    %v2707 = vpop.f32.mrb[0].mxu0
    %v2708 = vadd.f32 %v2515, %v2707
    %2709 = vmatprep.mubr.bf16.mxu0 %v913
    %2710 = vmatmul.mubr.bf16.gmra.mrb[0].mxu0 %v912
    %v2711 = vpop.f32.mrb[0].mxu0
    %v2712 = vadd.f32 %v2519, %v2711
    %v2713 = vpop.f32.mrb[0].mxu0
    %v2714 = vadd.f32 %v2521, %v2713
    %v2715 = vpop.f32.mrb[0].mxu0
    %v2716 = vadd.f32 %v2523, %v2715
    %v2717 = vpop.f32.mrb[0].mxu0
    %v2718 = vadd.f32 %v2525, %v2717
    %2719 = vmatprep.mubr.bf16.mxu0 %v920
    %2720 = vmatmul.mubr.bf16.gmra.mrb[0].mxu0 %v919
    %v2721 = vpop.f32.mrb[0].mxu0
    %v2722 = vadd.f32 %v2529, %v2721
    %v2723 = vpop.f32.mrb[0].mxu0
    %v2724 = vadd.f32 %v2531, %v2723
    %v2725 = vpop.f32.mrb[0].mxu0
    %v2726 = vadd.f32 %v2533, %v2725
    %v2727 = vpop.f32.mrb[0].mxu0
    %v2728 = vadd.f32 %v2535, %v2727
    %2729 = vmatprep.mubr.bf16.mxu0 %v927
    %2730 = vmatmul.mubr.bf16.gmra.mrb[0].mxu0 %v926
    %v2731 = vpop.f32.mrb[0].mxu0
    %v2732 = vadd.f32 %v2539, %v2731
    %v2733 = vpop.f32.mrb[0].mxu0
    %v2734 = vadd.f32 %v2541, %v2733
    %v2735 = vpop.f32.mrb[0].mxu0
    %v2736 = vadd.f32 %v2543, %v2735
    %v2737 = vpop.f32.mrb[0].mxu0
    %v2738 = vadd.f32 %v2545, %v2737
    %2739 = vdwg.mxu0
    %2740 = vmatprep.subr.bf16.mxu0 %v1906
    %2741 = vmatpush1.bf16.msra.mxu0 %v1905
    %2742 = vmatprep.subr.bf16.mxu0 %v1910
    %2743 = vmatpush1.bf16.msra.mxu0 %v1909
    %2744 = vmatprep.subr.bf16.mxu0 %v1914
    %2745 = vmatpush1.bf16.msra.mxu0 %v1913
    %2746 = vmatprep.subr.bf16.mxu0 %v1918
    %2747 = vmatpush1.bf16.msra.mxu0 %v1917
    %2748 = vmatprep.subr.bf16.mxu0 %v1922
    %2749 = vmatpush1.bf16.msra.mxu0 %v1921
    %2750 = vmatprep.subr.bf16.mxu0 %v1926
    %2751 = vmatpush1.bf16.msra.mxu0 %v1925
    %2752 = vmatprep.subr.bf16.mxu0 %v1930
    %2753 = vmatpush1.bf16.msra.mxu0 %v1929
    %2754 = vmatprep.subr.bf16.mxu0 %v1934
    %2755 = vmatpush1.bf16.msra.mxu0 %v1933
    %2756 = vmatprep.subr.bf16.mxu0 0
    %2757 = vmatpush1.bf16.msra.mxu0 0
    %2758 = vmatprep.subr.bf16.mxu0 0
    %2759 = vmatpush1.bf16.msra.mxu0 0
    %2760 = vmatprep.subr.bf16.mxu0 0
    %2761 = vmatpush1.bf16.msra.mxu0 0
    %2762 = vmatprep.subr.bf16.mxu0 0
    %2763 = vmatpush1.bf16.msra.mxu0 0
    %2764 = vmatprep.subr.bf16.mxu0 0
    %2765 = vmatpush1.bf16.msra.mxu0 0
    %2766 = vmatprep.subr.bf16.mxu0 0
    %2767 = vmatpush1.bf16.msra.mxu0 0
    %2768 = vmatprep.subr.bf16.mxu0 0
    %2769 = vmatpush1.bf16.msra.mxu0 0
    %2770 = vmatprep.subr.bf16.mxu0 0
    %2771 = vmatpush1.bf16.msra.mxu0 0
    %2772 = vmatprep.mubr.bf16.mxu0 0
    %2773 = vmatmul.mubr.bf16.gmra.mrb[0].mxu0 %v823
    %v2774 = vpop.f32.mrb[0].mxu0
    %v2775 = vadd.f32 %v2582, %v2774
    %v2776 = vpop.f32.mrb[0].mxu0
    %v2777 = vadd.f32 %v2584, %v2776
    %v2778 = vpop.f32.mrb[0].mxu0
    %v2779 = vadd.f32 %v2586, %v2778
    %v2780 = vpop.f32.mrb[0].mxu0
    %v2781 = vadd.f32 %v2588, %v2780
    %2782 = vmatprep.mubr.bf16.mxu0 0
    %2783 = vmatmul.mubr.bf16.gmra.mrb[0].mxu0 %v830
    %v2784 = vpop.f32.mrb[0].mxu0
    %v2785 = vadd.f32 %v2592, %v2784
    %v2786 = vpop.f32.mrb[0].mxu0
    %v2787 = vadd.f32 %v2594, %v2786
    %v2788 = vpop.f32.mrb[0].mxu0
    %v2789 = vadd.f32 %v2596, %v2788
    %v2790 = vpop.f32.mrb[0].mxu0
    %v2791 = vadd.f32 %v2598, %v2790
    %2792 = vmatprep.mubr.bf16.mxu0 0
    %2793 = vmatmul.mubr.bf16.gmra.mrb[0].mxu0 %v837
    %v2794 = vpop.f32.mrb[0].mxu0
    %v2795 = vadd.f32 %v2602, %v2794
    %v2796 = vpop.f32.mrb[0].mxu0
    %v2797 = vadd.f32 %v2604, %v2796
    %v2798 = vpop.f32.mrb[0].mxu0
    %v2799 = vadd.f32 %v2606, %v2798
    %v2800 = vpop.f32.mrb[0].mxu0
    %v2801 = vadd.f32 %v2608, %v2800
    %2802 = vmatprep.mubr.bf16.mxu0 0
    %2803 = vmatmul.mubr.bf16.gmra.mrb[0].mxu0 %v844
    %v2804 = vpop.f32.mrb[0].mxu0
    %v2805 = vadd.f32 %v2612, %v2804
    %v2806 = vpop.f32.mrb[0].mxu0
    %v2807 = vadd.f32 %v2614, %v2806
    %v2808 = vpop.f32.mrb[0].mxu0
    %v2809 = vadd.f32 %v2616, %v2808
    %v2810 = vpop.f32.mrb[0].mxu0
    %v2811 = vadd.f32 %v2618, %v2810
    %2812 = vmatprep.mubr.bf16.mxu0 0
    %2813 = vmatmul.mubr.bf16.gmra.mrb[0].mxu0 %v851
    %v2814 = vpop.f32.mrb[0].mxu0
    %v2815 = vadd.f32 %v2622, %v2814
    %v2816 = vpop.f32.mrb[0].mxu0
    %v2817 = vadd.f32 %v2624, %v2816
    %v2818 = vpop.f32.mrb[0].mxu0
    %v2819 = vadd.f32 %v2626, %v2818
    %v2820 = vpop.f32.mrb[0].mxu0
    %v2821 = vadd.f32 %v2628, %v2820
    %2822 = vmatprep.mubr.bf16.mxu0 0
    %2823 = vmatmul.mubr.bf16.gmra.mrb[0].mxu0 %v858
    %v2824 = vpop.f32.mrb[0].mxu0
    %v2825 = vadd.f32 %v2632, %v2824
    %v2826 = vpop.f32.mrb[0].mxu0
    %v2827 = vadd.f32 %v2634, %v2826
    %v2828 = vpop.f32.mrb[0].mxu0
    %v2829 = vadd.f32 %v2636, %v2828
    %v2830 = vpop.f32.mrb[0].mxu0
    %v2831 = vadd.f32 %v2638, %v2830
    %2832 = vmatprep.mubr.bf16.mxu0 0
    %2833 = vmatmul.mubr.bf16.gmra.mrb[0].mxu0 %v865
    %v2834 = vpop.f32.mrb[0].mxu0
    %v2835 = vadd.f32 %v2642, %v2834
    %v2836 = vpop.f32.mrb[0].mxu0
    %v2837 = vadd.f32 %v2644, %v2836
    %v2838 = vpop.f32.mrb[0].mxu0
    %v2839 = vadd.f32 %v2646, %v2838
    %v2840 = vpop.f32.mrb[0].mxu0
    %v2841 = vadd.f32 %v2648, %v2840
    %2842 = vmatprep.mubr.bf16.mxu0 0
    %2843 = vmatmul.mubr.bf16.gmra.mrb[0].mxu0 %v872
    %v2844 = vpop.f32.mrb[0].mxu0
    %v2845 = vadd.f32 %v2652, %v2844
    %v2846 = vpop.f32.mrb[0].mxu0
    %v2847 = vadd.f32 %v2654, %v2846
    %v2848 = vpop.f32.mrb[0].mxu0
    %v2849 = vadd.f32 %v2656, %v2848
    %v2850 = vpop.f32.mrb[0].mxu0
    %v2851 = vadd.f32 %v2658, %v2850
    %2852 = vmatprep.mubr.bf16.mxu0 0
    %2853 = vmatmul.mubr.bf16.gmra.mrb[0].mxu0 %v879
    %v2854 = vpop.f32.mrb[0].mxu0
    %v2855 = vadd.f32 %v2662, %v2854
    %v2856 = vpop.f32.mrb[0].mxu0
    %v2857 = vadd.f32 %v2664, %v2856
    %v2858 = vpop.f32.mrb[0].mxu0
    %v2859 = vadd.f32 %v2666, %v2858
    %v2860 = vpop.f32.mrb[0].mxu0
    %v2861 = vadd.f32 %v2668, %v2860
    %2862 = vmatprep.mubr.bf16.mxu0 0
    %2863 = vmatmul.mubr.bf16.gmra.mrb[0].mxu0 %v886
    %v2864 = vpop.f32.mrb[0].mxu0
    %v2865 = vadd.f32 %v2672, %v2864
    %v2866 = vpop.f32.mrb[0].mxu0
    %v2867 = vadd.f32 %v2674, %v2866
    %v2868 = vpop.f32.mrb[0].mxu0
    %v2869 = vadd.f32 %v2676, %v2868
    %v2870 = vpop.f32.mrb[0].mxu0
    %v2871 = vadd.f32 %v2678, %v2870
    %2872 = vmatprep.mubr.bf16.mxu0 0
    %2873 = vmatmul.mubr.bf16.gmra.mrb[0].mxu0 %v893
    %v2874 = vpop.f32.mrb[0].mxu0
    %v2875 = vadd.f32 %v2682, %v2874
    %v2876 = vpop.f32.mrb[0].mxu0
    %v2877 = vadd.f32 %v2684, %v2876
    %v2878 = vpop.f32.mrb[0].mxu0
    %v2879 = vadd.f32 %v2686, %v2878
    %v2880 = vpop.f32.mrb[0].mxu0
    %v2881 = vadd.f32 %v2688, %v2880
    %2882 = vmatprep.mubr.bf16.mxu0 0
    %2883 = vmatmul.mubr.bf16.gmra.mrb[0].mxu0 %v900
    %v2884 = vpop.f32.mrb[0].mxu0
    %v2885 = vadd.f32 %v2692, %v2884
    %v2886 = vpop.f32.mrb[0].mxu0
    %v2887 = vadd.f32 %v2694, %v2886
    %v2888 = vpop.f32.mrb[0].mxu0
    %v2889 = vadd.f32 %v2696, %v2888
    %v2890 = vpop.f32.mrb[0].mxu0
    %v2891 = vadd.f32 %v2698, %v2890
    %2892 = vmatprep.mubr.bf16.mxu0 0
    %2893 = vmatmul.mubr.bf16.gmra.mrb[0].mxu0 %v907
    %v2894 = vpop.f32.mrb[0].mxu0
    %v2895 = vadd.f32 %v2702, %v2894
    %v2896 = vpop.f32.mrb[0].mxu0
    %v2897 = vadd.f32 %v2704, %v2896
    %v2898 = vpop.f32.mrb[0].mxu0
    %v2899 = vadd.f32 %v2706, %v2898
    %v2900 = vpop.f32.mrb[0].mxu0
    %v2901 = vadd.f32 %v2708, %v2900
    %2902 = vmatprep.mubr.bf16.mxu0 0
    %2903 = vmatmul.mubr.bf16.gmra.mrb[0].mxu0 %v914
    %v2904 = vpop.f32.mrb[0].mxu0
    %v2905 = vadd.f32 %v2712, %v2904
    %v2906 = vpop.f32.mrb[0].mxu0
    %v2907 = vadd.f32 %v2714, %v2906
    %v2908 = vpop.f32.mrb[0].mxu0
    %v2909 = vadd.f32 %v2716, %v2908
    %v2910 = vpop.f32.mrb[0].mxu0
    %v2911 = vadd.f32 %v2718, %v2910
    %2912 = vmatprep.mubr.bf16.mxu0 0
    %2913 = vmatmul.mubr.bf16.gmra.mrb[0].mxu0 %v921
    %v2914 = vpop.f32.mrb[0].mxu0
    %v2915 = vadd.f32 %v2722, %v2914
    %v2916 = vpop.f32.mrb[0].mxu0
    %v2917 = vadd.f32 %v2724, %v2916
    %v2918 = vpop.f32.mrb[0].mxu0
    %v2919 = vadd.f32 %v2726, %v2918
    %v2920 = vpop.f32.mrb[0].mxu0
    %v2921 = vadd.f32 %v2728, %v2920
    %2922 = vmatprep.mubr.bf16.mxu0 0
    %2923 = vmatmul.mubr.bf16.gmra.mrb[0].mxu0 %v928
    %v2924 = vpop.f32.mrb[0].mxu0
    %v2925 = vadd.f32 %v2732, %v2924
    %v2926 = vpop.f32.mrb[0].mxu0
    %v2927 = vadd.f32 %v2734, %v2926
    %v2928 = vpop.f32.mrb[0].mxu0
    %v2929 = vadd.f32 %v2736, %v2928
    %v2930 = vpop.f32.mrb[0].mxu0
    %v2931 = vadd.f32 %v2738, %v2930
    %2932 = vdwg.mxu0
    %2933 = vmatprep.subr.bf16.mxu0 %v1716
    %2934 = vmatpush1.bf16.msra.mxu0 %v1715
    %2935 = vmatprep.subr.bf16.mxu0 %v1720
    %2936 = vmatpush1.bf16.msra.mxu0 %v1719
    %2937 = vmatprep.subr.bf16.mxu0 %v1724
    %2938 = vmatpush1.bf16.msra.mxu0 %v1723
    %2939 = vmatprep.subr.bf16.mxu0 %v1728
    %2940 = vmatpush1.bf16.msra.mxu0 %v1727
    %2941 = vmatprep.subr.bf16.mxu0 %v1732
    %2942 = vmatpush1.bf16.msra.mxu0 %v1731
    %2943 = vmatprep.subr.bf16.mxu0 %v1736
    %2944 = vmatpush1.bf16.msra.mxu0 %v1735
    %2945 = vmatprep.subr.bf16.mxu0 %v1740
    %2946 = vmatpush1.bf16.msra.mxu0 %v1739
    %2947 = vmatprep.subr.bf16.mxu0 %v1744
    %2948 = vmatpush1.bf16.msra.mxu0 %v1743
    %2949 = vmatprep.subr.bf16.mxu0 %v1748
    %2950 = vmatpush1.bf16.msra.mxu0 %v1747
    %2951 = vmatprep.subr.bf16.mxu0 %v1752
    %2952 = vmatpush1.bf16.msra.mxu0 %v1751
    %2953 = vmatprep.subr.bf16.mxu0 %v1756
    %2954 = vmatpush1.bf16.msra.mxu0 %v1755
    %2955 = vmatprep.subr.bf16.mxu0 %v1760
    %2956 = vmatpush1.bf16.msra.mxu0 %v1759
    %2957 = vmatprep.subr.bf16.mxu0 %v1764
    %2958 = vmatpush1.bf16.msra.mxu0 %v1763
    %2959 = vmatprep.subr.bf16.mxu0 %v1768
    %2960 = vmatpush1.bf16.msra.mxu0 %v1767
    %2961 = vmatprep.subr.bf16.mxu0 %v1772
    %2962 = vmatpush1.bf16.msra.mxu0 %v1771
    %2963 = vmatprep.subr.bf16.mxu0 %v1776
    %2964 = vmatpush1.bf16.msra.mxu0 %v1775
    %2965 = vmatprep.mubr.bf16.mxu0 %v818
    %2966 = vmatmul.mubr.bf16.gmra.mrb[0].mxu0 %v817
    %v2967 = vpop.f32.mrb[0].mxu0
    %v2968 = vadd.f32 %v456, %v2967
    %v2969 = vpop.f32.mrb[0].mxu0
    %v2970 = vadd.f32 %v460, %v2969
    %v2971 = vpop.f32.mrb[0].mxu0
    %v2972 = vadd.f32 %v456, %v2971
    %v2973 = vpop.f32.mrb[0].mxu0
    %v2974 = vadd.f32 %v460, %v2973
    %2975 = vmatprep.mubr.bf16.mxu0 %v825
    %2976 = vmatmul.mubr.bf16.gmra.mrb[0].mxu0 %v824
    %v2977 = vpop.f32.mrb[0].mxu0
    %v2978 = vadd.f32 %v456, %v2977
    %v2979 = vpop.f32.mrb[0].mxu0
    %v2980 = vadd.f32 %v460, %v2979
    %v2981 = vpop.f32.mrb[0].mxu0
    %v2982 = vadd.f32 %v456, %v2981
    %v2983 = vpop.f32.mrb[0].mxu0
    %v2984 = vadd.f32 %v460, %v2983
    %2985 = vmatprep.mubr.bf16.mxu0 %v832
    %2986 = vmatmul.mubr.bf16.gmra.mrb[0].mxu0 %v831
    %v2987 = vpop.f32.mrb[0].mxu0
    %v2988 = vadd.f32 %v456, %v2987
    %v2989 = vpop.f32.mrb[0].mxu0
    %v2990 = vadd.f32 %v460, %v2989
    %v2991 = vpop.f32.mrb[0].mxu0
    %v2992 = vadd.f32 %v456, %v2991
    %v2993 = vpop.f32.mrb[0].mxu0
    %v2994 = vadd.f32 %v460, %v2993
    %2995 = vmatprep.mubr.bf16.mxu0 %v839
    %2996 = vmatmul.mubr.bf16.gmra.mrb[0].mxu0 %v838
    %v2997 = vpop.f32.mrb[0].mxu0
    %v2998 = vadd.f32 %v456, %v2997
    %v2999 = vpop.f32.mrb[0].mxu0
    %v3000 = vadd.f32 %v460, %v2999
    %v3001 = vpop.f32.mrb[0].mxu0
    %v3002 = vadd.f32 %v456, %v3001
    %v3003 = vpop.f32.mrb[0].mxu0
    %v3004 = vadd.f32 %v460, %v3003
    %3005 = vmatprep.mubr.bf16.mxu0 %v846
    %3006 = vmatmul.mubr.bf16.gmra.mrb[0].mxu0 %v845
    %v3007 = vpop.f32.mrb[0].mxu0
    %v3008 = vadd.f32 %v456, %v3007
    %v3009 = vpop.f32.mrb[0].mxu0
    %v3010 = vadd.f32 %v460, %v3009
    %v3011 = vpop.f32.mrb[0].mxu0
    %v3012 = vadd.f32 %v456, %v3011
    %v3013 = vpop.f32.mrb[0].mxu0
    %v3014 = vadd.f32 %v460, %v3013
    %3015 = vmatprep.mubr.bf16.mxu0 %v853
    %3016 = vmatmul.mubr.bf16.gmra.mrb[0].mxu0 %v852
    %v3017 = vpop.f32.mrb[0].mxu0
    %v3018 = vadd.f32 %v456, %v3017
    %v3019 = vpop.f32.mrb[0].mxu0
    %v3020 = vadd.f32 %v460, %v3019
    %v3021 = vpop.f32.mrb[0].mxu0
    %v3022 = vadd.f32 %v456, %v3021
    %v3023 = vpop.f32.mrb[0].mxu0
    %v3024 = vadd.f32 %v460, %v3023
    %3025 = vmatprep.mubr.bf16.mxu0 %v860
    %3026 = vmatmul.mubr.bf16.gmra.mrb[0].mxu0 %v859
    %v3027 = vpop.f32.mrb[0].mxu0
    %v3028 = vadd.f32 %v456, %v3027
    %v3029 = vpop.f32.mrb[0].mxu0
    %v3030 = vadd.f32 %v460, %v3029
    %v3031 = vpop.f32.mrb[0].mxu0
    %v3032 = vadd.f32 %v456, %v3031
    %v3033 = vpop.f32.mrb[0].mxu0
    %v3034 = vadd.f32 %v460, %v3033
    %3035 = vmatprep.mubr.bf16.mxu0 %v867
    %3036 = vmatmul.mubr.bf16.gmra.mrb[0].mxu0 %v866
    %v3037 = vpop.f32.mrb[0].mxu0
    %v3038 = vadd.f32 %v456, %v3037
    %v3039 = vpop.f32.mrb[0].mxu0
    %v3040 = vadd.f32 %v460, %v3039
    %v3041 = vpop.f32.mrb[0].mxu0
    %v3042 = vadd.f32 %v456, %v3041
    %v3043 = vpop.f32.mrb[0].mxu0
    %v3044 = vadd.f32 %v460, %v3043
    %3045 = vmatprep.mubr.bf16.mxu0 %v874
    %3046 = vmatmul.mubr.bf16.gmra.mrb[0].mxu0 %v873
    %v3047 = vpop.f32.mrb[0].mxu0
    %v3048 = vadd.f32 %v456, %v3047
    %v3049 = vpop.f32.mrb[0].mxu0
    %v3050 = vadd.f32 %v460, %v3049
    %v3051 = vpop.f32.mrb[0].mxu0
    %v3052 = vadd.f32 %v456, %v3051
    %v3053 = vpop.f32.mrb[0].mxu0
    %v3054 = vadd.f32 %v460, %v3053
    %3055 = vmatprep.mubr.bf16.mxu0 %v881
    %3056 = vmatmul.mubr.bf16.gmra.mrb[0].mxu0 %v880
    %v3057 = vpop.f32.mrb[0].mxu0
    %v3058 = vadd.f32 %v456, %v3057
    %v3059 = vpop.f32.mrb[0].mxu0
    %v3060 = vadd.f32 %v460, %v3059
    %v3061 = vpop.f32.mrb[0].mxu0
    %v3062 = vadd.f32 %v456, %v3061
    %v3063 = vpop.f32.mrb[0].mxu0
    %v3064 = vadd.f32 %v460, %v3063
    %3065 = vmatprep.mubr.bf16.mxu0 %v888
    %3066 = vmatmul.mubr.bf16.gmra.mrb[0].mxu0 %v887
    %v3067 = vpop.f32.mrb[0].mxu0
    %v3068 = vadd.f32 %v456, %v3067
    %v3069 = vpop.f32.mrb[0].mxu0
    %v3070 = vadd.f32 %v460, %v3069
    %v3071 = vpop.f32.mrb[0].mxu0
    %v3072 = vadd.f32 %v456, %v3071
    %v3073 = vpop.f32.mrb[0].mxu0
    %v3074 = vadd.f32 %v460, %v3073
    %3075 = vmatprep.mubr.bf16.mxu0 %v895
    %3076 = vmatmul.mubr.bf16.gmra.mrb[0].mxu0 %v894
    %v3077 = vpop.f32.mrb[0].mxu0
    %v3078 = vadd.f32 %v456, %v3077
    %v3079 = vpop.f32.mrb[0].mxu0
    %v3080 = vadd.f32 %v460, %v3079
    %v3081 = vpop.f32.mrb[0].mxu0
    %v3082 = vadd.f32 %v456, %v3081
    %v3083 = vpop.f32.mrb[0].mxu0
    %v3084 = vadd.f32 %v460, %v3083
    %3085 = vmatprep.mubr.bf16.mxu0 %v902
    %3086 = vmatmul.mubr.bf16.gmra.mrb[0].mxu0 %v901
    %v3087 = vpop.f32.mrb[0].mxu0
    %v3088 = vadd.f32 %v456, %v3087
    %v3089 = vpop.f32.mrb[0].mxu0
    %v3090 = vadd.f32 %v460, %v3089
    %v3091 = vpop.f32.mrb[0].mxu0
    %v3092 = vadd.f32 %v456, %v3091
    %v3093 = vpop.f32.mrb[0].mxu0
    %v3094 = vadd.f32 %v460, %v3093
    %3095 = vmatprep.mubr.bf16.mxu0 %v909
    %3096 = vmatmul.mubr.bf16.gmra.mrb[0].mxu0 %v908
    %v3097 = vpop.f32.mrb[0].mxu0
    %v3098 = vadd.f32 %v456, %v3097
    %v3099 = vpop.f32.mrb[0].mxu0
    %v3100 = vadd.f32 %v460, %v3099
    %v3101 = vpop.f32.mrb[0].mxu0
    %v3102 = vadd.f32 %v456, %v3101
    %v3103 = vpop.f32.mrb[0].mxu0
    %v3104 = vadd.f32 %v460, %v3103
    %3105 = vmatprep.mubr.bf16.mxu0 %v916
    %3106 = vmatmul.mubr.bf16.gmra.mrb[0].mxu0 %v915
    %v3107 = vpop.f32.mrb[0].mxu0
    %v3108 = vadd.f32 %v456, %v3107
    %v3109 = vpop.f32.mrb[0].mxu0
    %v3110 = vadd.f32 %v460, %v3109
    %v3111 = vpop.f32.mrb[0].mxu0
    %v3112 = vadd.f32 %v456, %v3111
    %v3113 = vpop.f32.mrb[0].mxu0
    %v3114 = vadd.f32 %v460, %v3113
    %3115 = vmatprep.mubr.bf16.mxu0 %v923
    %3116 = vmatmul.mubr.bf16.gmra.mrb[0].mxu0 %v922
    %v3117 = vpop.f32.mrb[0].mxu0
    %v3118 = vadd.f32 %v456, %v3117
    %v3119 = vpop.f32.mrb[0].mxu0
    %v3120 = vadd.f32 %v460, %v3119
    %v3121 = vpop.f32.mrb[0].mxu0
    %v3122 = vadd.f32 %v456, %v3121
    %v3123 = vpop.f32.mrb[0].mxu0
    %v3124 = vadd.f32 %v460, %v3123
    %3125 = vdwg.mxu0
    %3126 = vmatprep.subr.bf16.mxu0 %v1780
    %3127 = vmatpush1.bf16.msra.mxu0 %v1779
    %3128 = vmatprep.subr.bf16.mxu0 %v1784
    %3129 = vmatpush1.bf16.msra.mxu0 %v1783
    %3130 = vmatprep.subr.bf16.mxu0 %v1788
    %3131 = vmatpush1.bf16.msra.mxu0 %v1787
    %3132 = vmatprep.subr.bf16.mxu0 %v1792
    %3133 = vmatpush1.bf16.msra.mxu0 %v1791
    %3134 = vmatprep.subr.bf16.mxu0 %v1796
    %3135 = vmatpush1.bf16.msra.mxu0 %v1795
    %3136 = vmatprep.subr.bf16.mxu0 %v1800
    %3137 = vmatpush1.bf16.msra.mxu0 %v1799
    %3138 = vmatprep.subr.bf16.mxu0 %v1804
    %3139 = vmatpush1.bf16.msra.mxu0 %v1803
    %3140 = vmatprep.subr.bf16.mxu0 %v1808
    %3141 = vmatpush1.bf16.msra.mxu0 %v1807
    %3142 = vmatprep.subr.bf16.mxu0 %v1812
    %3143 = vmatpush1.bf16.msra.mxu0 %v1811
    %3144 = vmatprep.subr.bf16.mxu0 %v1816
    %3145 = vmatpush1.bf16.msra.mxu0 %v1815
    %3146 = vmatprep.subr.bf16.mxu0 %v1820
    %3147 = vmatpush1.bf16.msra.mxu0 %v1819
    %3148 = vmatprep.subr.bf16.mxu0 %v1824
    %3149 = vmatpush1.bf16.msra.mxu0 %v1823
    %3150 = vmatprep.subr.bf16.mxu0 %v1828
    %3151 = vmatpush1.bf16.msra.mxu0 %v1827
    %3152 = vmatprep.subr.bf16.mxu0 %v1832
    %3153 = vmatpush1.bf16.msra.mxu0 %v1831
    %3154 = vmatprep.subr.bf16.mxu0 %v1836
    %3155 = vmatpush1.bf16.msra.mxu0 %v1835
    %3156 = vmatprep.subr.bf16.mxu0 %v1840
    %3157 = vmatpush1.bf16.msra.mxu0 %v1839
    %3158 = vmatprep.mubr.bf16.mxu0 %v820
    %3159 = vmatmul.mubr.bf16.gmra.mrb[0].mxu0 %v819
    %v3160 = vpop.f32.mrb[0].mxu0
    %v3161 = vadd.f32 %v2968, %v3160
    %v3162 = vpop.f32.mrb[0].mxu0
    %v3163 = vadd.f32 %v2970, %v3162
    %v3164 = vpop.f32.mrb[0].mxu0
    %v3165 = vadd.f32 %v2972, %v3164
    %v3166 = vpop.f32.mrb[0].mxu0
    %v3167 = vadd.f32 %v2974, %v3166
    %3168 = vmatprep.mubr.bf16.mxu0 %v827
    %3169 = vmatmul.mubr.bf16.gmra.mrb[0].mxu0 %v826
    %v3170 = vpop.f32.mrb[0].mxu0
    %v3171 = vadd.f32 %v2978, %v3170
    %v3172 = vpop.f32.mrb[0].mxu0
    %v3173 = vadd.f32 %v2980, %v3172
    %v3174 = vpop.f32.mrb[0].mxu0
    %v3175 = vadd.f32 %v2982, %v3174
    %v3176 = vpop.f32.mrb[0].mxu0
    %v3177 = vadd.f32 %v2984, %v3176
    %3178 = vmatprep.mubr.bf16.mxu0 %v834
    %3179 = vmatmul.mubr.bf16.gmra.mrb[0].mxu0 %v833
    %v3180 = vpop.f32.mrb[0].mxu0
    %v3181 = vadd.f32 %v2988, %v3180
    %v3182 = vpop.f32.mrb[0].mxu0
    %v3183 = vadd.f32 %v2990, %v3182
    %v3184 = vpop.f32.mrb[0].mxu0
    %v3185 = vadd.f32 %v2992, %v3184
    %v3186 = vpop.f32.mrb[0].mxu0
    %v3187 = vadd.f32 %v2994, %v3186
    %3188 = vmatprep.mubr.bf16.mxu0 %v841
    %3189 = vmatmul.mubr.bf16.gmra.mrb[0].mxu0 %v840
    %v3190 = vpop.f32.mrb[0].mxu0
    %v3191 = vadd.f32 %v2998, %v3190
    %v3192 = vpop.f32.mrb[0].mxu0
    %v3193 = vadd.f32 %v3000, %v3192
    %v3194 = vpop.f32.mrb[0].mxu0
    %v3195 = vadd.f32 %v3002, %v3194
    %v3196 = vpop.f32.mrb[0].mxu0
    %v3197 = vadd.f32 %v3004, %v3196
    %3198 = vmatprep.mubr.bf16.mxu0 %v848
    %3199 = vmatmul.mubr.bf16.gmra.mrb[0].mxu0 %v847
    %v3200 = vpop.f32.mrb[0].mxu0
    %v3201 = vadd.f32 %v3008, %v3200
    %v3202 = vpop.f32.mrb[0].mxu0
    %v3203 = vadd.f32 %v3010, %v3202
    %v3204 = vpop.f32.mrb[0].mxu0
    %v3205 = vadd.f32 %v3012, %v3204
    %v3206 = vpop.f32.mrb[0].mxu0
    %v3207 = vadd.f32 %v3014, %v3206
    %3208 = vmatprep.mubr.bf16.mxu0 %v855
    %3209 = vmatmul.mubr.bf16.gmra.mrb[0].mxu0 %v854
    %v3210 = vpop.f32.mrb[0].mxu0
    %v3211 = vadd.f32 %v3018, %v3210
    %v3212 = vpop.f32.mrb[0].mxu0
    %v3213 = vadd.f32 %v3020, %v3212
    %v3214 = vpop.f32.mrb[0].mxu0
    %v3215 = vadd.f32 %v3022, %v3214
    %v3216 = vpop.f32.mrb[0].mxu0
    %v3217 = vadd.f32 %v3024, %v3216
    %3218 = vmatprep.mubr.bf16.mxu0 %v862
    %3219 = vmatmul.mubr.bf16.gmra.mrb[0].mxu0 %v861
    %v3220 = vpop.f32.mrb[0].mxu0
    %v3221 = vadd.f32 %v3028, %v3220
    %v3222 = vpop.f32.mrb[0].mxu0
    %v3223 = vadd.f32 %v3030, %v3222
    %v3224 = vpop.f32.mrb[0].mxu0
    %v3225 = vadd.f32 %v3032, %v3224
    %v3226 = vpop.f32.mrb[0].mxu0
    %v3227 = vadd.f32 %v3034, %v3226
    %3228 = vmatprep.mubr.bf16.mxu0 %v869
    %3229 = vmatmul.mubr.bf16.gmra.mrb[0].mxu0 %v868
    %v3230 = vpop.f32.mrb[0].mxu0
    %v3231 = vadd.f32 %v3038, %v3230
    %v3232 = vpop.f32.mrb[0].mxu0
    %v3233 = vadd.f32 %v3040, %v3232
    %v3234 = vpop.f32.mrb[0].mxu0
    %v3235 = vadd.f32 %v3042, %v3234
    %v3236 = vpop.f32.mrb[0].mxu0
    %v3237 = vadd.f32 %v3044, %v3236
    %3238 = vmatprep.mubr.bf16.mxu0 %v876
    %3239 = vmatmul.mubr.bf16.gmra.mrb[0].mxu0 %v875
    %v3240 = vpop.f32.mrb[0].mxu0
    %v3241 = vadd.f32 %v3048, %v3240
    %v3242 = vpop.f32.mrb[0].mxu0
    %v3243 = vadd.f32 %v3050, %v3242
    %v3244 = vpop.f32.mrb[0].mxu0
    %v3245 = vadd.f32 %v3052, %v3244
    %v3246 = vpop.f32.mrb[0].mxu0
    %v3247 = vadd.f32 %v3054, %v3246
    %3248 = vmatprep.mubr.bf16.mxu0 %v883
    %3249 = vmatmul.mubr.bf16.gmra.mrb[0].mxu0 %v882
    %v3250 = vpop.f32.mrb[0].mxu0
    %v3251 = vadd.f32 %v3058, %v3250
    %v3252 = vpop.f32.mrb[0].mxu0
    %v3253 = vadd.f32 %v3060, %v3252
    %v3254 = vpop.f32.mrb[0].mxu0
    %v3255 = vadd.f32 %v3062, %v3254
    %v3256 = vpop.f32.mrb[0].mxu0
    %v3257 = vadd.f32 %v3064, %v3256
    %3258 = vmatprep.mubr.bf16.mxu0 %v890
    %3259 = vmatmul.mubr.bf16.gmra.mrb[0].mxu0 %v889
    %v3260 = vpop.f32.mrb[0].mxu0
    %v3261 = vadd.f32 %v3068, %v3260
    %v3262 = vpop.f32.mrb[0].mxu0
    %v3263 = vadd.f32 %v3070, %v3262
    %v3264 = vpop.f32.mrb[0].mxu0
    %v3265 = vadd.f32 %v3072, %v3264
    %v3266 = vpop.f32.mrb[0].mxu0
    %v3267 = vadd.f32 %v3074, %v3266
    %3268 = vmatprep.mubr.bf16.mxu0 %v897
    %3269 = vmatmul.mubr.bf16.gmra.mrb[0].mxu0 %v896
    %v3270 = vpop.f32.mrb[0].mxu0
    %v3271 = vadd.f32 %v3078, %v3270
    %v3272 = vpop.f32.mrb[0].mxu0
    %v3273 = vadd.f32 %v3080, %v3272
    %v3274 = vpop.f32.mrb[0].mxu0
    %v3275 = vadd.f32 %v3082, %v3274
    %v3276 = vpop.f32.mrb[0].mxu0
    %v3277 = vadd.f32 %v3084, %v3276
    %3278 = vmatprep.mubr.bf16.mxu0 %v904
    %3279 = vmatmul.mubr.bf16.gmra.mrb[0].mxu0 %v903
    %v3280 = vpop.f32.mrb[0].mxu0
    %v3281 = vadd.f32 %v3088, %v3280
    %v3282 = vpop.f32.mrb[0].mxu0
    %v3283 = vadd.f32 %v3090, %v3282
    %v3284 = vpop.f32.mrb[0].mxu0
    %v3285 = vadd.f32 %v3092, %v3284
    %v3286 = vpop.f32.mrb[0].mxu0
    %v3287 = vadd.f32 %v3094, %v3286
    %3288 = vmatprep.mubr.bf16.mxu0 %v911
    %3289 = vmatmul.mubr.bf16.gmra.mrb[0].mxu0 %v910
    %v3290 = vpop.f32.mrb[0].mxu0
    %v3291 = vadd.f32 %v3098, %v3290
    %v3292 = vpop.f32.mrb[0].mxu0
    %v3293 = vadd.f32 %v3100, %v3292
    %v3294 = vpop.f32.mrb[0].mxu0
    %v3295 = vadd.f32 %v3102, %v3294
    %v3296 = vpop.f32.mrb[0].mxu0
    %v3297 = vadd.f32 %v3104, %v3296
    %3298 = vmatprep.mubr.bf16.mxu0 %v918
    %3299 = vmatmul.mubr.bf16.gmra.mrb[0].mxu0 %v917
    %v3300 = vpop.f32.mrb[0].mxu0
    %v3301 = vadd.f32 %v3108, %v3300
    %v3302 = vpop.f32.mrb[0].mxu0
    %v3303 = vadd.f32 %v3110, %v3302
    %v3304 = vpop.f32.mrb[0].mxu0
    %v3305 = vadd.f32 %v3112, %v3304
    %v3306 = vpop.f32.mrb[0].mxu0
    %v3307 = vadd.f32 %v3114, %v3306
    %3308 = vmatprep.mubr.bf16.mxu0 %v925
    %3309 = vmatmul.mubr.bf16.gmra.mrb[0].mxu0 %v924
    %v3310 = vpop.f32.mrb[0].mxu0
    %v3311 = vadd.f32 %v3118, %v3310
    %v3312 = vpop.f32.mrb[0].mxu0
    %v3313 = vadd.f32 %v3120, %v3312
    %v3314 = vpop.f32.mrb[0].mxu0
    %v3315 = vadd.f32 %v3122, %v3314
    %v3316 = vpop.f32.mrb[0].mxu0
    %v3317 = vadd.f32 %v3124, %v3316
    %3318 = vdwg.mxu0
    %3319 = vmatprep.subr.bf16.mxu0 %v1844
    %3320 = vmatpush1.bf16.msra.mxu0 %v1843
    %3321 = vmatprep.subr.bf16.mxu0 %v1848
    %3322 = vmatpush1.bf16.msra.mxu0 %v1847
    %3323 = vmatprep.subr.bf16.mxu0 %v1852
    %3324 = vmatpush1.bf16.msra.mxu0 %v1851
    %3325 = vmatprep.subr.bf16.mxu0 %v1856
    %3326 = vmatpush1.bf16.msra.mxu0 %v1855
    %3327 = vmatprep.subr.bf16.mxu0 %v1860
    %3328 = vmatpush1.bf16.msra.mxu0 %v1859
    %3329 = vmatprep.subr.bf16.mxu0 %v1864
    %3330 = vmatpush1.bf16.msra.mxu0 %v1863
    %3331 = vmatprep.subr.bf16.mxu0 %v1868
    %3332 = vmatpush1.bf16.msra.mxu0 %v1867
    %3333 = vmatprep.subr.bf16.mxu0 %v1872
    %3334 = vmatpush1.bf16.msra.mxu0 %v1871
    %3335 = vmatprep.subr.bf16.mxu0 %v1876
    %3336 = vmatpush1.bf16.msra.mxu0 %v1875
    %3337 = vmatprep.subr.bf16.mxu0 %v1880
    %3338 = vmatpush1.bf16.msra.mxu0 %v1879
    %3339 = vmatprep.subr.bf16.mxu0 %v1884
    %3340 = vmatpush1.bf16.msra.mxu0 %v1883
    %3341 = vmatprep.subr.bf16.mxu0 %v1888
    %3342 = vmatpush1.bf16.msra.mxu0 %v1887
    %3343 = vmatprep.subr.bf16.mxu0 %v1892
    %3344 = vmatpush1.bf16.msra.mxu0 %v1891
    %3345 = vmatprep.subr.bf16.mxu0 %v1896
    %3346 = vmatpush1.bf16.msra.mxu0 %v1895
    %3347 = vmatprep.subr.bf16.mxu0 %v1900
    %3348 = vmatpush1.bf16.msra.mxu0 %v1899
    %3349 = vmatprep.subr.bf16.mxu0 %v1904
    %3350 = vmatpush1.bf16.msra.mxu0 %v1903
    %3351 = vmatprep.mubr.bf16.mxu0 %v822
    %3352 = vmatmul.mubr.bf16.gmra.mrb[0].mxu0 %v821
    %v3353 = vpop.f32.mrb[0].mxu0
    %v3354 = vadd.f32 %v3161, %v3353
    %v3355 = vpop.f32.mrb[0].mxu0
    %v3356 = vadd.f32 %v3163, %v3355
    %v3357 = vpop.f32.mrb[0].mxu0
    %v3358 = vadd.f32 %v3165, %v3357
    %v3359 = vpop.f32.mrb[0].mxu0
    %v3360 = vadd.f32 %v3167, %v3359
    %3361 = vmatprep.mubr.bf16.mxu0 %v829
    %3362 = vmatmul.mubr.bf16.gmra.mrb[0].mxu0 %v828
    %v3363 = vpop.f32.mrb[0].mxu0
    %v3364 = vadd.f32 %v3171, %v3363
    %v3365 = vpop.f32.mrb[0].mxu0
    %v3366 = vadd.f32 %v3173, %v3365
    %v3367 = vpop.f32.mrb[0].mxu0
    %v3368 = vadd.f32 %v3175, %v3367
    %v3369 = vpop.f32.mrb[0].mxu0
    %v3370 = vadd.f32 %v3177, %v3369
    %3371 = vmatprep.mubr.bf16.mxu0 %v836
    %3372 = vmatmul.mubr.bf16.gmra.mrb[0].mxu0 %v835
    %v3373 = vpop.f32.mrb[0].mxu0
    %v3374 = vadd.f32 %v3181, %v3373
    %v3375 = vpop.f32.mrb[0].mxu0
    %v3376 = vadd.f32 %v3183, %v3375
    %v3377 = vpop.f32.mrb[0].mxu0
    %v3378 = vadd.f32 %v3185, %v3377
    %v3379 = vpop.f32.mrb[0].mxu0
    %v3380 = vadd.f32 %v3187, %v3379
    %3381 = vmatprep.mubr.bf16.mxu0 %v843
    %3382 = vmatmul.mubr.bf16.gmra.mrb[0].mxu0 %v842
    %v3383 = vpop.f32.mrb[0].mxu0
    %v3384 = vadd.f32 %v3191, %v3383
    %v3385 = vpop.f32.mrb[0].mxu0
    %v3386 = vadd.f32 %v3193, %v3385
    %v3387 = vpop.f32.mrb[0].mxu0
    %v3388 = vadd.f32 %v3195, %v3387
    %v3389 = vpop.f32.mrb[0].mxu0
    %v3390 = vadd.f32 %v3197, %v3389
    %3391 = vmatprep.mubr.bf16.mxu0 %v850
    %3392 = vmatmul.mubr.bf16.gmra.mrb[0].mxu0 %v849
    %v3393 = vpop.f32.mrb[0].mxu0
    %v3394 = vadd.f32 %v3201, %v3393
    %v3395 = vpop.f32.mrb[0].mxu0
    %v3396 = vadd.f32 %v3203, %v3395
    %v3397 = vpop.f32.mrb[0].mxu0
    %v3398 = vadd.f32 %v3205, %v3397
    %v3399 = vpop.f32.mrb[0].mxu0
    %v3400 = vadd.f32 %v3207, %v3399
    %3401 = vmatprep.mubr.bf16.mxu0 %v857
    %3402 = vmatmul.mubr.bf16.gmra.mrb[0].mxu0 %v856
    %v3403 = vpop.f32.mrb[0].mxu0
    %v3404 = vadd.f32 %v3211, %v3403
    %v3405 = vpop.f32.mrb[0].mxu0
    %v3406 = vadd.f32 %v3213, %v3405
    %v3407 = vpop.f32.mrb[0].mxu0
    %v3408 = vadd.f32 %v3215, %v3407
    %v3409 = vpop.f32.mrb[0].mxu0
    %v3410 = vadd.f32 %v3217, %v3409
    %3411 = vmatprep.mubr.bf16.mxu0 %v864
    %3412 = vmatmul.mubr.bf16.gmra.mrb[0].mxu0 %v863
    %v3413 = vpop.f32.mrb[0].mxu0
    %v3414 = vadd.f32 %v3221, %v3413
    %v3415 = vpop.f32.mrb[0].mxu0
    %v3416 = vadd.f32 %v3223, %v3415
    %v3417 = vpop.f32.mrb[0].mxu0
    %v3418 = vadd.f32 %v3225, %v3417
    %v3419 = vpop.f32.mrb[0].mxu0
    %v3420 = vadd.f32 %v3227, %v3419
    %3421 = vmatprep.mubr.bf16.mxu0 %v871
    %3422 = vmatmul.mubr.bf16.gmra.mrb[0].mxu0 %v870
    %v3423 = vpop.f32.mrb[0].mxu0
    %v3424 = vadd.f32 %v3231, %v3423
    %v3425 = vpop.f32.mrb[0].mxu0
    %v3426 = vadd.f32 %v3233, %v3425
    %v3427 = vpop.f32.mrb[0].mxu0
    %v3428 = vadd.f32 %v3235, %v3427
    %v3429 = vpop.f32.mrb[0].mxu0
    %v3430 = vadd.f32 %v3237, %v3429
    %3431 = vmatprep.mubr.bf16.mxu0 %v878
    %3432 = vmatmul.mubr.bf16.gmra.mrb[0].mxu0 %v877
    %v3433 = vpop.f32.mrb[0].mxu0
    %v3434 = vadd.f32 %v3241, %v3433
    %v3435 = vpop.f32.mrb[0].mxu0
    %v3436 = vadd.f32 %v3243, %v3435
    %v3437 = vpop.f32.mrb[0].mxu0
    %v3438 = vadd.f32 %v3245, %v3437
    %v3439 = vpop.f32.mrb[0].mxu0
    %v3440 = vadd.f32 %v3247, %v3439
    %3441 = vmatprep.mubr.bf16.mxu0 %v885
    %3442 = vmatmul.mubr.bf16.gmra.mrb[0].mxu0 %v884
    %v3443 = vpop.f32.mrb[0].mxu0
    %v3444 = vadd.f32 %v3251, %v3443
    %v3445 = vpop.f32.mrb[0].mxu0
    %v3446 = vadd.f32 %v3253, %v3445
    %v3447 = vpop.f32.mrb[0].mxu0
    %v3448 = vadd.f32 %v3255, %v3447
    %v3449 = vpop.f32.mrb[0].mxu0
    %v3450 = vadd.f32 %v3257, %v3449
    %3451 = vmatprep.mubr.bf16.mxu0 %v892
    %3452 = vmatmul.mubr.bf16.gmra.mrb[0].mxu0 %v891
    %v3453 = vpop.f32.mrb[0].mxu0
    %v3454 = vadd.f32 %v3261, %v3453
    %v3455 = vpop.f32.mrb[0].mxu0
    %v3456 = vadd.f32 %v3263, %v3455
    %v3457 = vpop.f32.mrb[0].mxu0
    %v3458 = vadd.f32 %v3265, %v3457
    %v3459 = vpop.f32.mrb[0].mxu0
    %v3460 = vadd.f32 %v3267, %v3459
    %3461 = vmatprep.mubr.bf16.mxu0 %v899
    %3462 = vmatmul.mubr.bf16.gmra.mrb[0].mxu0 %v898
    %v3463 = vpop.f32.mrb[0].mxu0
    %v3464 = vadd.f32 %v3271, %v3463
    %v3465 = vpop.f32.mrb[0].mxu0
    %v3466 = vadd.f32 %v3273, %v3465
    %v3467 = vpop.f32.mrb[0].mxu0
    %v3468 = vadd.f32 %v3275, %v3467
    %v3469 = vpop.f32.mrb[0].mxu0
    %v3470 = vadd.f32 %v3277, %v3469
    %3471 = vmatprep.mubr.bf16.mxu0 %v906
    %3472 = vmatmul.mubr.bf16.gmra.mrb[0].mxu0 %v905
    %v3473 = vpop.f32.mrb[0].mxu0
    %v3474 = vadd.f32 %v3281, %v3473
    %v3475 = vpop.f32.mrb[0].mxu0
    %v3476 = vadd.f32 %v3283, %v3475
    %v3477 = vpop.f32.mrb[0].mxu0
    %v3478 = vadd.f32 %v3285, %v3477
    %v3479 = vpop.f32.mrb[0].mxu0
    %v3480 = vadd.f32 %v3287, %v3479
    %3481 = vmatprep.mubr.bf16.mxu0 %v913
    %3482 = vmatmul.mubr.bf16.gmra.mrb[0].mxu0 %v912
    %v3483 = vpop.f32.mrb[0].mxu0
    %v3484 = vadd.f32 %v3291, %v3483
    %v3485 = vpop.f32.mrb[0].mxu0
    %v3486 = vadd.f32 %v3293, %v3485
    %v3487 = vpop.f32.mrb[0].mxu0
    %v3488 = vadd.f32 %v3295, %v3487
    %v3489 = vpop.f32.mrb[0].mxu0
    %v3490 = vadd.f32 %v3297, %v3489
    %3491 = vmatprep.mubr.bf16.mxu0 %v920
    %3492 = vmatmul.mubr.bf16.gmra.mrb[0].mxu0 %v919
    %v3493 = vpop.f32.mrb[0].mxu0
    %v3494 = vadd.f32 %v3301, %v3493
    %v3495 = vpop.f32.mrb[0].mxu0
    %v3496 = vadd.f32 %v3303, %v3495
    %v3497 = vpop.f32.mrb[0].mxu0
    %v3498 = vadd.f32 %v3305, %v3497
    %v3499 = vpop.f32.mrb[0].mxu0
    %v3500 = vadd.f32 %v3307, %v3499
    %3501 = vmatprep.mubr.bf16.mxu0 %v927
    %3502 = vmatmul.mubr.bf16.gmra.mrb[0].mxu0 %v926
    %v3503 = vpop.f32.mrb[0].mxu0
    %v3504 = vadd.f32 %v3311, %v3503
    %v3505 = vpop.f32.mrb[0].mxu0
    %v3506 = vadd.f32 %v3313, %v3505
    %v3507 = vpop.f32.mrb[0].mxu0
    %v3508 = vadd.f32 %v3315, %v3507
    %v3509 = vpop.f32.mrb[0].mxu0
    %v3510 = vadd.f32 %v3317, %v3509
    %3511 = vdwg.mxu0
    %3512 = vmatprep.subr.bf16.mxu0 %v1908
    %3513 = vmatpush1.bf16.msra.mxu0 %v1907
    %3514 = vmatprep.subr.bf16.mxu0 %v1912
    %3515 = vmatpush1.bf16.msra.mxu0 %v1911
    %3516 = vmatprep.subr.bf16.mxu0 %v1916
    %3517 = vmatpush1.bf16.msra.mxu0 %v1915
    %3518 = vmatprep.subr.bf16.mxu0 %v1920
    %3519 = vmatpush1.bf16.msra.mxu0 %v1919
    %3520 = vmatprep.subr.bf16.mxu0 %v1924
    %3521 = vmatpush1.bf16.msra.mxu0 %v1923
    %3522 = vmatprep.subr.bf16.mxu0 %v1928
    %3523 = vmatpush1.bf16.msra.mxu0 %v1927
    %3524 = vmatprep.subr.bf16.mxu0 %v1932
    %3525 = vmatpush1.bf16.msra.mxu0 %v1931
    %3526 = vmatprep.subr.bf16.mxu0 %v1936
    %3527 = vmatpush1.bf16.msra.mxu0 %v1935
    %3528 = vmatprep.subr.bf16.mxu0 0
    %3529 = vmatpush1.bf16.msra.mxu0 0
    %3530 = vmatprep.subr.bf16.mxu0 0
    %3531 = vmatpush1.bf16.msra.mxu0 0
    %3532 = vmatprep.subr.bf16.mxu0 0
    %3533 = vmatpush1.bf16.msra.mxu0 0
    %3534 = vmatprep.subr.bf16.mxu0 0
    %3535 = vmatpush1.bf16.msra.mxu0 0
    %3536 = vmatprep.subr.bf16.mxu0 0
    %3537 = vmatpush1.bf16.msra.mxu0 0
    %3538 = vmatprep.subr.bf16.mxu0 0
    %3539 = vmatpush1.bf16.msra.mxu0 0
    %3540 = vmatprep.subr.bf16.mxu0 0
    %3541 = vmatpush1.bf16.msra.mxu0 0
    %3542 = vmatprep.subr.bf16.mxu0 0
    %3543 = vmatpush1.bf16.msra.mxu0 0
    %3544 = vmatprep.mubr.bf16.mxu0 0
    %3545 = vmatmul.mubr.bf16.gmra.mrb[0].mxu0 %v823
    %v3546 = vpop.f32.mrb[0].mxu0
    %v3547 = vadd.f32 %v3354, %v3546
    %v3548 = vpop.f32.mrb[0].mxu0
    %v3549 = vadd.f32 %v3356, %v3548
    %v3550 = vpop.f32.mrb[0].mxu0
    %v3551 = vadd.f32 %v3358, %v3550
    %v3552 = vpop.f32.mrb[0].mxu0
    %v3553 = vadd.f32 %v3360, %v3552
    %3554 = vmatprep.mubr.bf16.mxu0 0
    %3555 = vmatmul.mubr.bf16.gmra.mrb[0].mxu0 %v830
    %v3556 = vpop.f32.mrb[0].mxu0
    %v3557 = vadd.f32 %v3364, %v3556
    %v3558 = vpop.f32.mrb[0].mxu0
    %v3559 = vadd.f32 %v3366, %v3558
    %v3560 = vpop.f32.mrb[0].mxu0
    %v3561 = vadd.f32 %v3368, %v3560
    %v3562 = vpop.f32.mrb[0].mxu0
    %v3563 = vadd.f32 %v3370, %v3562
    %3564 = vmatprep.mubr.bf16.mxu0 0
    %3565 = vmatmul.mubr.bf16.gmra.mrb[0].mxu0 %v837
    %v3566 = vpop.f32.mrb[0].mxu0
    %v3567 = vadd.f32 %v3374, %v3566
    %v3568 = vpop.f32.mrb[0].mxu0
    %v3569 = vadd.f32 %v3376, %v3568
    %v3570 = vpop.f32.mrb[0].mxu0
    %v3571 = vadd.f32 %v3378, %v3570
    %v3572 = vpop.f32.mrb[0].mxu0
    %v3573 = vadd.f32 %v3380, %v3572
    %3574 = vmatprep.mubr.bf16.mxu0 0
    %3575 = vmatmul.mubr.bf16.gmra.mrb[0].mxu0 %v844
    %v3576 = vpop.f32.mrb[0].mxu0
    %v3577 = vadd.f32 %v3384, %v3576
    %v3578 = vpop.f32.mrb[0].mxu0
    %v3579 = vadd.f32 %v3386, %v3578
    %v3580 = vpop.f32.mrb[0].mxu0
    %v3581 = vadd.f32 %v3388, %v3580
    %v3582 = vpop.f32.mrb[0].mxu0
    %v3583 = vadd.f32 %v3390, %v3582
    %3584 = vmatprep.mubr.bf16.mxu0 0
    %3585 = vmatmul.mubr.bf16.gmra.mrb[0].mxu0 %v851
    %v3586 = vpop.f32.mrb[0].mxu0
    %v3587 = vadd.f32 %v3394, %v3586
    %v3588 = vpop.f32.mrb[0].mxu0
    %v3589 = vadd.f32 %v3396, %v3588
    %v3590 = vpop.f32.mrb[0].mxu0
    %v3591 = vadd.f32 %v3398, %v3590
    %v3592 = vpop.f32.mrb[0].mxu0
    %v3593 = vadd.f32 %v3400, %v3592
    %3594 = vmatprep.mubr.bf16.mxu0 0
    %3595 = vmatmul.mubr.bf16.gmra.mrb[0].mxu0 %v858
    %v3596 = vpop.f32.mrb[0].mxu0
    %v3597 = vadd.f32 %v3404, %v3596
    %v3598 = vpop.f32.mrb[0].mxu0
    %v3599 = vadd.f32 %v3406, %v3598
    %v3600 = vpop.f32.mrb[0].mxu0
    %v3601 = vadd.f32 %v3408, %v3600
    %v3602 = vpop.f32.mrb[0].mxu0
    %v3603 = vadd.f32 %v3410, %v3602
    %3604 = vmatprep.mubr.bf16.mxu0 0
    %3605 = vmatmul.mubr.bf16.gmra.mrb[0].mxu0 %v865
    %v3606 = vpop.f32.mrb[0].mxu0
    %v3607 = vadd.f32 %v3414, %v3606
    %v3608 = vpop.f32.mrb[0].mxu0
    %v3609 = vadd.f32 %v3416, %v3608
    %v3610 = vpop.f32.mrb[0].mxu0
    %v3611 = vadd.f32 %v3418, %v3610
    %v3612 = vpop.f32.mrb[0].mxu0
    %v3613 = vadd.f32 %v3420, %v3612
    %3614 = vmatprep.mubr.bf16.mxu0 0
    %3615 = vmatmul.mubr.bf16.gmra.mrb[0].mxu0 %v872
    %v3616 = vpop.f32.mrb[0].mxu0
    %v3617 = vadd.f32 %v3424, %v3616
    %v3618 = vpop.f32.mrb[0].mxu0
    %v3619 = vadd.f32 %v3426, %v3618
    %v3620 = vpop.f32.mrb[0].mxu0
    %v3621 = vadd.f32 %v3428, %v3620
    %v3622 = vpop.f32.mrb[0].mxu0
    %v3623 = vadd.f32 %v3430, %v3622
    %3624 = vmatprep.mubr.bf16.mxu0 0
    %3625 = vmatmul.mubr.bf16.gmra.mrb[0].mxu0 %v879
    %v3626 = vpop.f32.mrb[0].mxu0
    %v3627 = vadd.f32 %v3434, %v3626
    %v3628 = vpop.f32.mrb[0].mxu0
    %v3629 = vadd.f32 %v3436, %v3628
    %v3630 = vpop.f32.mrb[0].mxu0
    %v3631 = vadd.f32 %v3438, %v3630
    %v3632 = vpop.f32.mrb[0].mxu0
    %v3633 = vadd.f32 %v3440, %v3632
    %3634 = vmatprep.mubr.bf16.mxu0 0
    %3635 = vmatmul.mubr.bf16.gmra.mrb[0].mxu0 %v886
    %v3636 = vpop.f32.mrb[0].mxu0
    %v3637 = vadd.f32 %v3444, %v3636
    %v3638 = vpop.f32.mrb[0].mxu0
    %v3639 = vadd.f32 %v3446, %v3638
    %v3640 = vpop.f32.mrb[0].mxu0
    %v3641 = vadd.f32 %v3448, %v3640
    %v3642 = vpop.f32.mrb[0].mxu0
    %v3643 = vadd.f32 %v3450, %v3642
    %3644 = vmatprep.mubr.bf16.mxu0 0
    %3645 = vmatmul.mubr.bf16.gmra.mrb[0].mxu0 %v893
    %v3646 = vpop.f32.mrb[0].mxu0
    %v3647 = vadd.f32 %v3454, %v3646
    %v3648 = vpop.f32.mrb[0].mxu0
    %v3649 = vadd.f32 %v3456, %v3648
    %v3650 = vpop.f32.mrb[0].mxu0
    %v3651 = vadd.f32 %v3458, %v3650
    %v3652 = vpop.f32.mrb[0].mxu0
    %v3653 = vadd.f32 %v3460, %v3652
    %3654 = vmatprep.mubr.bf16.mxu0 0
    %3655 = vmatmul.mubr.bf16.gmra.mrb[0].mxu0 %v900
    %v3656 = vpop.f32.mrb[0].mxu0
    %v3657 = vadd.f32 %v3464, %v3656
    %v3658 = vpop.f32.mrb[0].mxu0
    %v3659 = vadd.f32 %v3466, %v3658
    %v3660 = vpop.f32.mrb[0].mxu0
    %v3661 = vadd.f32 %v3468, %v3660
    %v3662 = vpop.f32.mrb[0].mxu0
    %v3663 = vadd.f32 %v3470, %v3662
    %3664 = vmatprep.mubr.bf16.mxu0 0
    %3665 = vmatmul.mubr.bf16.gmra.mrb[0].mxu0 %v907
    %v3666 = vpop.f32.mrb[0].mxu0
    %v3667 = vadd.f32 %v3474, %v3666
    %v3668 = vpop.f32.mrb[0].mxu0
    %v3669 = vadd.f32 %v3476, %v3668
    %v3670 = vpop.f32.mrb[0].mxu0
    %v3671 = vadd.f32 %v3478, %v3670
    %v3672 = vpop.f32.mrb[0].mxu0
    %v3673 = vadd.f32 %v3480, %v3672
    %3674 = vmatprep.mubr.bf16.mxu0 0
    %3675 = vmatmul.mubr.bf16.gmra.mrb[0].mxu0 %v914
    %v3676 = vpop.f32.mrb[0].mxu0
    %v3677 = vadd.f32 %v3484, %v3676
    %v3678 = vpop.f32.mrb[0].mxu0
    %v3679 = vadd.f32 %v3486, %v3678
    %v3680 = vpop.f32.mrb[0].mxu0
    %v3681 = vadd.f32 %v3488, %v3680
    %v3682 = vpop.f32.mrb[0].mxu0
    %v3683 = vadd.f32 %v3490, %v3682
    %3684 = vmatprep.mubr.bf16.mxu0 0
    %3685 = vmatmul.mubr.bf16.gmra.mrb[0].mxu0 %v921
    %v3686 = vpop.f32.mrb[0].mxu0
    %v3687 = vadd.f32 %v3494, %v3686
    %v3688 = vpop.f32.mrb[0].mxu0
    %v3689 = vadd.f32 %v3496, %v3688
    %v3690 = vpop.f32.mrb[0].mxu0
    %v3691 = vadd.f32 %v3498, %v3690
    %v3692 = vpop.f32.mrb[0].mxu0
    %v3693 = vadd.f32 %v3500, %v3692
    %3694 = vmatprep.mubr.bf16.mxu0 0
    %3695 = vmatmul.mubr.bf16.gmra.mrb[0].mxu0 %v928
    %v3696 = vpop.f32.mrb[0].mxu0
    %v3697 = vadd.f32 %v3504, %v3696
    %v3698 = vpop.f32.mrb[0].mxu0
    %v3699 = vadd.f32 %v3506, %v3698
    %v3700 = vpop.f32.mrb[0].mxu0
    %v3701 = vadd.f32 %v3508, %v3700
    %v3702 = vpop.f32.mrb[0].mxu0
    %v3703 = vadd.f32 %v3510, %v3702
    %3704 = vdwg.mxu0
    %vm3705 = vcmp.gt.f32.partialorder %v2775, 0.0
    %vm3706 = vcmp.gt.f32.partialorder %v2777, 0.0
    %vm3707 = vcmp.gt.f32.partialorder %v3547, 0.0
    %vm3708 = vcmp.gt.f32.partialorder %v3549, 0.0
    %vm3709 = vcmp.gt.f32.partialorder %v2779, 0.0
    %vm3710 = vcmp.gt.f32.partialorder %v2781, 0.0
    %vm3711 = vcmp.gt.f32.partialorder %v3551, 0.0
    %vm3712 = vcmp.gt.f32.partialorder %v3553, 0.0
    %vm3713 = vcmp.gt.f32.partialorder %v2785, 0.0
    %vm3714 = vcmp.gt.f32.partialorder %v2787, 0.0
    %vm3715 = vcmp.gt.f32.partialorder %v3557, 0.0
    %vm3716 = vcmp.gt.f32.partialorder %v3559, 0.0
    %vm3717 = vcmp.gt.f32.partialorder %v2789, 0.0
    %vm3718 = vcmp.gt.f32.partialorder %v2791, 0.0
    %vm3719 = vcmp.gt.f32.partialorder %v3561, 0.0
    %vm3720 = vcmp.gt.f32.partialorder %v3563, 0.0
    %vm3721 = vcmp.gt.f32.partialorder %v2795, 0.0
    %vm3722 = vcmp.gt.f32.partialorder %v2797, 0.0
    %vm3723 = vcmp.gt.f32.partialorder %v3567, 0.0
    %vm3724 = vcmp.gt.f32.partialorder %v3569, 0.0
    %vm3725 = vcmp.gt.f32.partialorder %v2799, 0.0
    %vm3726 = vcmp.gt.f32.partialorder %v2801, 0.0
    %vm3727 = vcmp.gt.f32.partialorder %v3571, 0.0
    %vm3728 = vcmp.gt.f32.partialorder %v3573, 0.0
    %vm3729 = vcmp.gt.f32.partialorder %v2805, 0.0
    %vm3730 = vcmp.gt.f32.partialorder %v2807, 0.0
    %vm3731 = vcmp.gt.f32.partialorder %v3577, 0.0
    %vm3732 = vcmp.gt.f32.partialorder %v3579, 0.0
    %vm3733 = vcmp.gt.f32.partialorder %v2809, 0.0
    %vm3734 = vcmp.gt.f32.partialorder %v2811, 0.0
    %vm3735 = vcmp.gt.f32.partialorder %v3581, 0.0
    %vm3736 = vcmp.gt.f32.partialorder %v3583, 0.0
    %vm3737 = vcmp.gt.f32.partialorder %v2815, 0.0
    %vm3738 = vcmp.gt.f32.partialorder %v2817, 0.0
    %vm3739 = vcmp.gt.f32.partialorder %v3587, 0.0
    %vm3740 = vcmp.gt.f32.partialorder %v3589, 0.0
    %vm3741 = vcmp.gt.f32.partialorder %v2819, 0.0
    %vm3742 = vcmp.gt.f32.partialorder %v2821, 0.0
    %vm3743 = vcmp.gt.f32.partialorder %v3591, 0.0
    %vm3744 = vcmp.gt.f32.partialorder %v3593, 0.0
    %vm3745 = vcmp.gt.f32.partialorder %v2825, 0.0
    %vm3746 = vcmp.gt.f32.partialorder %v2827, 0.0
    %vm3747 = vcmp.gt.f32.partialorder %v3597, 0.0
    %vm3748 = vcmp.gt.f32.partialorder %v3599, 0.0
    %vm3749 = vcmp.gt.f32.partialorder %v2829, 0.0
    %vm3750 = vcmp.gt.f32.partialorder %v2831, 0.0
    %vm3751 = vcmp.gt.f32.partialorder %v3601, 0.0
    %vm3752 = vcmp.gt.f32.partialorder %v3603, 0.0
    %vm3753 = vcmp.gt.f32.partialorder %v2835, 0.0
    %vm3754 = vcmp.gt.f32.partialorder %v2837, 0.0
    %vm3755 = vcmp.gt.f32.partialorder %v3607, 0.0
    %vm3756 = vcmp.gt.f32.partialorder %v3609, 0.0
    %vm3757 = vcmp.gt.f32.partialorder %v2839, 0.0
    %vm3758 = vcmp.gt.f32.partialorder %v2841, 0.0
    %vm3759 = vcmp.gt.f32.partialorder %v3611, 0.0
    %vm3760 = vcmp.gt.f32.partialorder %v3613, 0.0
    %vm3761 = vcmp.gt.f32.partialorder %v2845, 0.0
    %vm3762 = vcmp.gt.f32.partialorder %v2847, 0.0
    %vm3763 = vcmp.gt.f32.partialorder %v3617, 0.0
    %vm3764 = vcmp.gt.f32.partialorder %v3619, 0.0
    %vm3765 = vcmp.gt.f32.partialorder %v2849, 0.0
    %vm3766 = vcmp.gt.f32.partialorder %v2851, 0.0
    %vm3767 = vcmp.gt.f32.partialorder %v3621, 0.0
    %vm3768 = vcmp.gt.f32.partialorder %v3623, 0.0
    %vm3769 = vcmp.gt.f32.partialorder %v2855, 0.0
    %vm3770 = vcmp.gt.f32.partialorder %v2857, 0.0
    %vm3771 = vcmp.gt.f32.partialorder %v3627, 0.0
    %vm3772 = vcmp.gt.f32.partialorder %v3629, 0.0
    %vm3773 = vcmp.gt.f32.partialorder %v2859, 0.0
    %vm3774 = vcmp.gt.f32.partialorder %v2861, 0.0
    %vm3775 = vcmp.gt.f32.partialorder %v3631, 0.0
    %vm3776 = vcmp.gt.f32.partialorder %v3633, 0.0
    %vm3777 = vcmp.gt.f32.partialorder %v2865, 0.0
    %vm3778 = vcmp.gt.f32.partialorder %v2867, 0.0
    %vm3779 = vcmp.gt.f32.partialorder %v3637, 0.0
    %vm3780 = vcmp.gt.f32.partialorder %v3639, 0.0
    %vm3781 = vcmp.gt.f32.partialorder %v2869, 0.0
    %vm3782 = vcmp.gt.f32.partialorder %v2871, 0.0
    %vm3783 = vcmp.gt.f32.partialorder %v3641, 0.0
    %vm3784 = vcmp.gt.f32.partialorder %v3643, 0.0
    %vm3785 = vcmp.gt.f32.partialorder %v2875, 0.0
    %vm3786 = vcmp.gt.f32.partialorder %v2877, 0.0
    %vm3787 = vcmp.gt.f32.partialorder %v3647, 0.0
    %vm3788 = vcmp.gt.f32.partialorder %v3649, 0.0
    %vm3789 = vcmp.gt.f32.partialorder %v2879, 0.0
    %vm3790 = vcmp.gt.f32.partialorder %v2881, 0.0
    %vm3791 = vcmp.gt.f32.partialorder %v3651, 0.0
    %vm3792 = vcmp.gt.f32.partialorder %v3653, 0.0
    %vm3793 = vcmp.gt.f32.partialorder %v2885, 0.0
    %vm3794 = vcmp.gt.f32.partialorder %v2887, 0.0
    %vm3795 = vcmp.gt.f32.partialorder %v3657, 0.0
    %vm3796 = vcmp.gt.f32.partialorder %v3659, 0.0
    %vm3797 = vcmp.gt.f32.partialorder %v2889, 0.0
    %vm3798 = vcmp.gt.f32.partialorder %v2891, 0.0
    %vm3799 = vcmp.gt.f32.partialorder %v3661, 0.0
    %vm3800 = vcmp.gt.f32.partialorder %v3663, 0.0
    %vm3801 = vcmp.gt.f32.partialorder %v2895, 0.0
    %vm3802 = vcmp.gt.f32.partialorder %v2897, 0.0
    %vm3803 = vcmp.gt.f32.partialorder %v3667, 0.0
    %vm3804 = vcmp.gt.f32.partialorder %v3669, 0.0
    %vm3805 = vcmp.gt.f32.partialorder %v2899, 0.0
    %vm3806 = vcmp.gt.f32.partialorder %v2901, 0.0
    %vm3807 = vcmp.gt.f32.partialorder %v3671, 0.0
    %vm3808 = vcmp.gt.f32.partialorder %v3673, 0.0
    %vm3809 = vcmp.gt.f32.partialorder %v2905, 0.0
    %vm3810 = vcmp.gt.f32.partialorder %v2907, 0.0
    %vm3811 = vcmp.gt.f32.partialorder %v3677, 0.0
    %vm3812 = vcmp.gt.f32.partialorder %v3679, 0.0
    %vm3813 = vcmp.gt.f32.partialorder %v2909, 0.0
    %vm3814 = vcmp.gt.f32.partialorder %v2911, 0.0
    %vm3815 = vcmp.gt.f32.partialorder %v3681, 0.0
    %vm3816 = vcmp.gt.f32.partialorder %v3683, 0.0
    %vm3817 = vcmp.gt.f32.partialorder %v2915, 0.0
    %vm3818 = vcmp.gt.f32.partialorder %v2917, 0.0
    %vm3819 = vcmp.gt.f32.partialorder %v3687, 0.0
    %vm3820 = vcmp.gt.f32.partialorder %v3689, 0.0
    %vm3821 = vcmp.gt.f32.partialorder %v2919, 0.0
    %vm3822 = vcmp.gt.f32.partialorder %v2921, 0.0
    %vm3823 = vcmp.gt.f32.partialorder %v3691, 0.0
    %vm3824 = vcmp.gt.f32.partialorder %v3693, 0.0
    %vm3825 = vcmp.gt.f32.partialorder %v2925, 0.0
    %vm3826 = vcmp.gt.f32.partialorder %v2927, 0.0
    %vm3827 = vcmp.gt.f32.partialorder %v3697, 0.0
    %vm3828 = vcmp.gt.f32.partialorder %v3699, 0.0
    %vm3829 = vcmp.gt.f32.partialorder %v2929, 0.0
    %vm3830 = vcmp.gt.f32.partialorder %v2931, 0.0
    %vm3831 = vcmp.gt.f32.partialorder %v3701, 0.0
    %vm3832 = vcmp.gt.f32.partialorder %v3703, 0.0
    %v3833 = vmul.f32 %v2775, 0.2
    %v3834 = vmul.f32 %v2777, 0.2
    %v3835 = vmul.f32 %v3547, 0.2
    %v3836 = vmul.f32 %v3549, 0.2
    %v3837 = vmul.f32 %v2779, 0.2
    %v3838 = vmul.f32 %v2781, 0.2
    %v3839 = vmul.f32 %v3551, 0.2
    %v3840 = vmul.f32 %v3553, 0.2
    %v3841 = vmul.f32 %v2785, 0.2
    %v3842 = vmul.f32 %v2787, 0.2
    %v3843 = vmul.f32 %v3557, 0.2
    %v3844 = vmul.f32 %v3559, 0.2
    %v3845 = vmul.f32 %v2789, 0.2
    %v3846 = vmul.f32 %v2791, 0.2
    %v3847 = vmul.f32 %v3561, 0.2
    %v3848 = vmul.f32 %v3563, 0.2
    %v3849 = vmul.f32 %v2795, 0.2
    %v3850 = vmul.f32 %v2797, 0.2
    %v3851 = vmul.f32 %v3567, 0.2
    %v3852 = vmul.f32 %v3569, 0.2
    %v3853 = vmul.f32 %v2799, 0.2
    %v3854 = vmul.f32 %v2801, 0.2
    %v3855 = vmul.f32 %v3571, 0.2
    %v3856 = vmul.f32 %v3573, 0.2
    %v3857 = vmul.f32 %v2805, 0.2
    %v3858 = vmul.f32 %v2807, 0.2
    %v3859 = vmul.f32 %v3577, 0.2
    %v3860 = vmul.f32 %v3579, 0.2
    %v3861 = vmul.f32 %v2809, 0.2
    %v3862 = vmul.f32 %v2811, 0.2
    %v3863 = vmul.f32 %v3581, 0.2
    %v3864 = vmul.f32 %v3583, 0.2
    %v3865 = vmul.f32 %v2815, 0.2
    %v3866 = vmul.f32 %v2817, 0.2
    %v3867 = vmul.f32 %v3587, 0.2
    %v3868 = vmul.f32 %v3589, 0.2
    %v3869 = vmul.f32 %v2819, 0.2
    %v3870 = vmul.f32 %v2821, 0.2
    %v3871 = vmul.f32 %v3591, 0.2
    %v3872 = vmul.f32 %v3593, 0.2
    %v3873 = vmul.f32 %v2825, 0.2
    %v3874 = vmul.f32 %v2827, 0.2
    %v3875 = vmul.f32 %v3597, 0.2
    %v3876 = vmul.f32 %v3599, 0.2
    %v3877 = vmul.f32 %v2829, 0.2
    %v3878 = vmul.f32 %v2831, 0.2
    %v3879 = vmul.f32 %v3601, 0.2
    %v3880 = vmul.f32 %v3603, 0.2
    %v3881 = vmul.f32 %v2835, 0.2
    %v3882 = vmul.f32 %v2837, 0.2
    %v3883 = vmul.f32 %v3607, 0.2
    %v3884 = vmul.f32 %v3609, 0.2
    %v3885 = vmul.f32 %v2839, 0.2
    %v3886 = vmul.f32 %v2841, 0.2
    %v3887 = vmul.f32 %v3611, 0.2
    %v3888 = vmul.f32 %v3613, 0.2
    %v3889 = vmul.f32 %v2845, 0.2
    %v3890 = vmul.f32 %v2847, 0.2
    %v3891 = vmul.f32 %v3617, 0.2
    %v3892 = vmul.f32 %v3619, 0.2
    %v3893 = vmul.f32 %v2849, 0.2
    %v3894 = vmul.f32 %v2851, 0.2
    %v3895 = vmul.f32 %v3621, 0.2
    %v3896 = vmul.f32 %v3623, 0.2
    %v3897 = vmul.f32 %v2855, 0.2
    %v3898 = vmul.f32 %v2857, 0.2
    %v3899 = vmul.f32 %v3627, 0.2
    %v3900 = vmul.f32 %v3629, 0.2
    %v3901 = vmul.f32 %v2859, 0.2
    %v3902 = vmul.f32 %v2861, 0.2
    %v3903 = vmul.f32 %v3631, 0.2
    %v3904 = vmul.f32 %v3633, 0.2
    %v3905 = vmul.f32 %v2865, 0.2
    %v3906 = vmul.f32 %v2867, 0.2
    %v3907 = vmul.f32 %v3637, 0.2
    %v3908 = vmul.f32 %v3639, 0.2
    %v3909 = vmul.f32 %v2869, 0.2
    %v3910 = vmul.f32 %v2871, 0.2
    %v3911 = vmul.f32 %v3641, 0.2
    %v3912 = vmul.f32 %v3643, 0.2
    %v3913 = vmul.f32 %v2875, 0.2
    %v3914 = vmul.f32 %v2877, 0.2
    %v3915 = vmul.f32 %v3647, 0.2
    %v3916 = vmul.f32 %v3649, 0.2
    %v3917 = vmul.f32 %v2879, 0.2
    %v3918 = vmul.f32 %v2881, 0.2
    %v3919 = vmul.f32 %v3651, 0.2
    %v3920 = vmul.f32 %v3653, 0.2
    %v3921 = vmul.f32 %v2885, 0.2
    %v3922 = vmul.f32 %v2887, 0.2
    %v3923 = vmul.f32 %v3657, 0.2
    %v3924 = vmul.f32 %v3659, 0.2
    %v3925 = vmul.f32 %v2889, 0.2
    %v3926 = vmul.f32 %v2891, 0.2
    %v3927 = vmul.f32 %v3661, 0.2
    %v3928 = vmul.f32 %v3663, 0.2
    %v3929 = vmul.f32 %v2895, 0.2
    %v3930 = vmul.f32 %v2897, 0.2
    %v3931 = vmul.f32 %v3667, 0.2
    %v3932 = vmul.f32 %v3669, 0.2
    %v3933 = vmul.f32 %v2899, 0.2
    %v3934 = vmul.f32 %v2901, 0.2
    %v3935 = vmul.f32 %v3671, 0.2
    %v3936 = vmul.f32 %v3673, 0.2
    %v3937 = vmul.f32 %v2905, 0.2
    %v3938 = vmul.f32 %v2907, 0.2
    %v3939 = vmul.f32 %v3677, 0.2
    %v3940 = vmul.f32 %v3679, 0.2
    %v3941 = vmul.f32 %v2909, 0.2
    %v3942 = vmul.f32 %v2911, 0.2
    %v3943 = vmul.f32 %v3681, 0.2
    %v3944 = vmul.f32 %v3683, 0.2
    %v3945 = vmul.f32 %v2915, 0.2
    %v3946 = vmul.f32 %v2917, 0.2
    %v3947 = vmul.f32 %v3687, 0.2
    %v3948 = vmul.f32 %v3689, 0.2
    %v3949 = vmul.f32 %v2919, 0.2
    %v3950 = vmul.f32 %v2921, 0.2
    %v3951 = vmul.f32 %v3691, 0.2
    %v3952 = vmul.f32 %v3693, 0.2
    %v3953 = vmul.f32 %v2925, 0.2
    %v3954 = vmul.f32 %v2927, 0.2
    %v3955 = vmul.f32 %v3697, 0.2
    %v3956 = vmul.f32 %v3699, 0.2
    %v3957 = vmul.f32 %v2929, 0.2
    %v3958 = vmul.f32 %v2931, 0.2
    %v3959 = vmul.f32 %v3701, 0.2
    %v3960 = vmul.f32 %v3703, 0.2
    %v3961 = vsel %vm3705, %v2775, %v3833
    %v3962 = vsel %vm3706, %v2777, %v3834
    %v3963 = vsel %vm3707, %v3547, %v3835
    %v3964 = vsel %vm3708, %v3549, %v3836
    %v3965 = vsel %vm3709, %v2779, %v3837
    %v3966 = vsel %vm3710, %v2781, %v3838
    %v3967 = vsel %vm3711, %v3551, %v3839
    %v3968 = vsel %vm3712, %v3553, %v3840
    %v3969 = vsel %vm3713, %v2785, %v3841
    %v3970 = vsel %vm3714, %v2787, %v3842
    %v3971 = vsel %vm3715, %v3557, %v3843
    %v3972 = vsel %vm3716, %v3559, %v3844
    %v3973 = vsel %vm3717, %v2789, %v3845
    %v3974 = vsel %vm3718, %v2791, %v3846
    %v3975 = vsel %vm3719, %v3561, %v3847
    %v3976 = vsel %vm3720, %v3563, %v3848
    %v3977 = vsel %vm3721, %v2795, %v3849
    %v3978 = vsel %vm3722, %v2797, %v3850
    %v3979 = vsel %vm3723, %v3567, %v3851
    %v3980 = vsel %vm3724, %v3569, %v3852
    %v3981 = vsel %vm3725, %v2799, %v3853
    %v3982 = vsel %vm3726, %v2801, %v3854
    %v3983 = vsel %vm3727, %v3571, %v3855
    %v3984 = vsel %vm3728, %v3573, %v3856
    %v3985 = vsel %vm3729, %v2805, %v3857
    %v3986 = vsel %vm3730, %v2807, %v3858
    %v3987 = vsel %vm3731, %v3577, %v3859
    %v3988 = vsel %vm3732, %v3579, %v3860
    %v3989 = vsel %vm3733, %v2809, %v3861
    %v3990 = vsel %vm3734, %v2811, %v3862
    %v3991 = vsel %vm3735, %v3581, %v3863
    %v3992 = vsel %vm3736, %v3583, %v3864
    %v3993 = vsel %vm3737, %v2815, %v3865
    %v3994 = vsel %vm3738, %v2817, %v3866
    %v3995 = vsel %vm3739, %v3587, %v3867
    %v3996 = vsel %vm3740, %v3589, %v3868
    %v3997 = vsel %vm3741, %v2819, %v3869
    %v3998 = vsel %vm3742, %v2821, %v3870
    %v3999 = vsel %vm3743, %v3591, %v3871
    %v4000 = vsel %vm3744, %v3593, %v3872
    %v4001 = vsel %vm3745, %v2825, %v3873
    %v4002 = vsel %vm3746, %v2827, %v3874
    %v4003 = vsel %vm3747, %v3597, %v3875
    %v4004 = vsel %vm3748, %v3599, %v3876
    %v4005 = vsel %vm3749, %v2829, %v3877
    %v4006 = vsel %vm3750, %v2831, %v3878
    %v4007 = vsel %vm3751, %v3601, %v3879
    %v4008 = vsel %vm3752, %v3603, %v3880
    %v4009 = vsel %vm3753, %v2835, %v3881
    %v4010 = vsel %vm3754, %v2837, %v3882
    %v4011 = vsel %vm3755, %v3607, %v3883
    %v4012 = vsel %vm3756, %v3609, %v3884
    %v4013 = vsel %vm3757, %v2839, %v3885
    %v4014 = vsel %vm3758, %v2841, %v3886
    %v4015 = vsel %vm3759, %v3611, %v3887
    %v4016 = vsel %vm3760, %v3613, %v3888
    %v4017 = vsel %vm3761, %v2845, %v3889
    %v4018 = vsel %vm3762, %v2847, %v3890
    %v4019 = vsel %vm3763, %v3617, %v3891
    %v4020 = vsel %vm3764, %v3619, %v3892
    %v4021 = vsel %vm3765, %v2849, %v3893
    %v4022 = vsel %vm3766, %v2851, %v3894
    %v4023 = vsel %vm3767, %v3621, %v3895
    %v4024 = vsel %vm3768, %v3623, %v3896
    %v4025 = vsel %vm3769, %v2855, %v3897
    %v4026 = vsel %vm3770, %v2857, %v3898
    %v4027 = vsel %vm3771, %v3627, %v3899
    %v4028 = vsel %vm3772, %v3629, %v3900
    %v4029 = vsel %vm3773, %v2859, %v3901
    %v4030 = vsel %vm3774, %v2861, %v3902
    %v4031 = vsel %vm3775, %v3631, %v3903
    %v4032 = vsel %vm3776, %v3633, %v3904
    %v4033 = vsel %vm3777, %v2865, %v3905
    %v4034 = vsel %vm3778, %v2867, %v3906
    %v4035 = vsel %vm3779, %v3637, %v3907
    %v4036 = vsel %vm3780, %v3639, %v3908
    %v4037 = vsel %vm3781, %v2869, %v3909
    %v4038 = vsel %vm3782, %v2871, %v3910
    %v4039 = vsel %vm3783, %v3641, %v3911
    %v4040 = vsel %vm3784, %v3643, %v3912
    %v4041 = vsel %vm3785, %v2875, %v3913
    %v4042 = vsel %vm3786, %v2877, %v3914
    %v4043 = vsel %vm3787, %v3647, %v3915
    %v4044 = vsel %vm3788, %v3649, %v3916
    %v4045 = vsel %vm3789, %v2879, %v3917
    %v4046 = vsel %vm3790, %v2881, %v3918
    %v4047 = vsel %vm3791, %v3651, %v3919
    %v4048 = vsel %vm3792, %v3653, %v3920
    %v4049 = vsel %vm3793, %v2885, %v3921
    %v4050 = vsel %vm3794, %v2887, %v3922
    %v4051 = vsel %vm3795, %v3657, %v3923
    %v4052 = vsel %vm3796, %v3659, %v3924
    %v4053 = vsel %vm3797, %v2889, %v3925
    %v4054 = vsel %vm3798, %v2891, %v3926
    %v4055 = vsel %vm3799, %v3661, %v3927
    %v4056 = vsel %vm3800, %v3663, %v3928
    %v4057 = vsel %vm3801, %v2895, %v3929
    %v4058 = vsel %vm3802, %v2897, %v3930
    %v4059 = vsel %vm3803, %v3667, %v3931
    %v4060 = vsel %vm3804, %v3669, %v3932
    %v4061 = vsel %vm3805, %v2899, %v3933
    %v4062 = vsel %vm3806, %v2901, %v3934
    %v4063 = vsel %vm3807, %v3671, %v3935
    %v4064 = vsel %vm3808, %v3673, %v3936
    %v4065 = vsel %vm3809, %v2905, %v3937
    %v4066 = vsel %vm3810, %v2907, %v3938
    %v4067 = vsel %vm3811, %v3677, %v3939
    %v4068 = vsel %vm3812, %v3679, %v3940
    %v4069 = vsel %vm3813, %v2909, %v3941
    %v4070 = vsel %vm3814, %v2911, %v3942
    %v4071 = vsel %vm3815, %v3681, %v3943
    %v4072 = vsel %vm3816, %v3683, %v3944
    %v4073 = vsel %vm3817, %v2915, %v3945
    %v4074 = vsel %vm3818, %v2917, %v3946
    %v4075 = vsel %vm3819, %v3687, %v3947
    %v4076 = vsel %vm3820, %v3689, %v3948
    %v4077 = vsel %vm3821, %v2919, %v3949
    %v4078 = vsel %vm3822, %v2921, %v3950
    %v4079 = vsel %vm3823, %v3691, %v3951
    %v4080 = vsel %vm3824, %v3693, %v3952
    %v4081 = vsel %vm3825, %v2925, %v3953
    %v4082 = vsel %vm3826, %v2927, %v3954
    %v4083 = vsel %vm3827, %v3697, %v3955
    %v4084 = vsel %vm3828, %v3699, %v3956
    %v4085 = vsel %vm3829, %v2929, %v3957
    %v4086 = vsel %vm3830, %v2931, %v3958
    %v4087 = vsel %vm3831, %v3701, %v3959
    %v4088 = vsel %vm3832, %v3703, %v3960
    %v4089 = vpack.c.bf16 %v3965, %v3961
    %v4090 = vpack.c.bf16 %v3966, %v3962
    %v4091 = vpack.c.bf16 %v3967, %v3963
    %v4092 = vpack.c.bf16 %v3968, %v3964
    %v4093 = vpack.c.bf16 %v3973, %v3969
    %v4094 = vpack.c.bf16 %v3974, %v3970
    %v4095 = vpack.c.bf16 %v3975, %v3971
    %v4096 = vpack.c.bf16 %v3976, %v3972
    %v4097 = vpack.c.bf16 %v3981, %v3977
    %v4098 = vpack.c.bf16 %v3982, %v3978
    %v4099 = vpack.c.bf16 %v3983, %v3979
    %v4100 = vpack.c.bf16 %v3984, %v3980
    %v4101 = vpack.c.bf16 %v3989, %v3985
    %v4102 = vpack.c.bf16 %v3990, %v3986
    %v4103 = vpack.c.bf16 %v3991, %v3987
    %v4104 = vpack.c.bf16 %v3992, %v3988
    %v4105 = vpack.c.bf16 %v3997, %v3993
    %v4106 = vpack.c.bf16 %v3998, %v3994
    %v4107 = vpack.c.bf16 %v3999, %v3995
    %v4108 = vpack.c.bf16 %v4000, %v3996
    %v4109 = vpack.c.bf16 %v4005, %v4001
    %v4110 = vpack.c.bf16 %v4006, %v4002
    %v4111 = vpack.c.bf16 %v4007, %v4003
    %v4112 = vpack.c.bf16 %v4008, %v4004
    %v4113 = vpack.c.bf16 %v4013, %v4009
    %v4114 = vpack.c.bf16 %v4014, %v4010
    %v4115 = vpack.c.bf16 %v4015, %v4011
    %v4116 = vpack.c.bf16 %v4016, %v4012
    %v4117 = vpack.c.bf16 %v4021, %v4017
    %v4118 = vpack.c.bf16 %v4022, %v4018
    %v4119 = vpack.c.bf16 %v4023, %v4019
    %v4120 = vpack.c.bf16 %v4024, %v4020
    %v4121 = vpack.c.bf16 %v4029, %v4025
    %v4122 = vpack.c.bf16 %v4030, %v4026
    %v4123 = vpack.c.bf16 %v4031, %v4027
    %v4124 = vpack.c.bf16 %v4032, %v4028
    %v4125 = vpack.c.bf16 %v4037, %v4033
    %v4126 = vpack.c.bf16 %v4038, %v4034
    %v4127 = vpack.c.bf16 %v4039, %v4035
    %v4128 = vpack.c.bf16 %v4040, %v4036
    %v4129 = vpack.c.bf16 %v4045, %v4041
    %v4130 = vpack.c.bf16 %v4046, %v4042
    %v4131 = vpack.c.bf16 %v4047, %v4043
    %v4132 = vpack.c.bf16 %v4048, %v4044
    %v4133 = vpack.c.bf16 %v4053, %v4049
    %v4134 = vpack.c.bf16 %v4054, %v4050
    %v4135 = vpack.c.bf16 %v4055, %v4051
    %v4136 = vpack.c.bf16 %v4056, %v4052
    %v4137 = vpack.c.bf16 %v4061, %v4057
    %v4138 = vpack.c.bf16 %v4062, %v4058
    %v4139 = vpack.c.bf16 %v4063, %v4059
    %v4140 = vpack.c.bf16 %v4064, %v4060
    %v4141 = vpack.c.bf16 %v4069, %v4065
    %v4142 = vpack.c.bf16 %v4070, %v4066
    %v4143 = vpack.c.bf16 %v4071, %v4067
    %v4144 = vpack.c.bf16 %v4072, %v4068
    %v4145 = vpack.c.bf16 %v4077, %v4073
    %v4146 = vpack.c.bf16 %v4078, %v4074
    %v4147 = vpack.c.bf16 %v4079, %v4075
    %v4148 = vpack.c.bf16 %v4080, %v4076
    %v4149 = vpack.c.bf16 %v4085, %v4081
    %v4150 = vpack.c.bf16 %v4086, %v4082
    %v4151 = vpack.c.bf16 %v4087, %v4083
    %v4152 = vpack.c.bf16 %v4088, %v4084
    %v4153 = vld [vmem:[#allocation8] sm:$0xff]
    %v4154 = vld [vmem:[#allocation8 + $0x8] sm:$0xff]
    %v4155 = vld [vmem:[#allocation8 + $0x10] sm:$0xff]
    %v4156 = vld [vmem:[#allocation8 + $0x18] sm:$0xff]
    %v4157 = vld [vmem:[#allocation8 + $0x20] sm:$0xff]
    %v4158 = vld [vmem:[#allocation8 + $0x28] sm:$0xff]
    %v4159 = vld [vmem:[#allocation8 + $0x30] sm:$0xff]
    %v4160 = vld [vmem:[#allocation8 + $0x38] sm:$0xff]
    %v4161 = vld [vmem:[#allocation8 + $0x40] sm:$0xff]
    %v4162 = vld [vmem:[#allocation8 + $0x48] sm:$0xff]
    %v4163 = vld [vmem:[#allocation8 + $0x50] sm:$0xff]
    %v4164 = vld [vmem:[#allocation8 + $0x58] sm:$0xff]
    %v4165 = vld [vmem:[#allocation8 + $0x60] sm:$0xff]
    %v4166 = vld [vmem:[#allocation8 + $0x68] sm:$0xff]
    %v4167 = vld [vmem:[#allocation8 + $0x70] sm:$0xff]
    %v4168 = vld [vmem:[#allocation8 + $0x78] sm:$0xff]
    %v4169 = vld [vmem:[#allocation8 + $0x80] sm:$0xff]
    %v4170 = vld [vmem:[#allocation8 + $0x88] sm:$0xff]
    %v4171 = vld [vmem:[#allocation8 + $0x90] sm:$0xff]
    %v4172 = vld [vmem:[#allocation8 + $0x98] sm:$0xff]
    %v4173 = vld [vmem:[#allocation8 + $0xa0] sm:$0xff]
    %v4174 = vld [vmem:[#allocation8 + $0xa8] sm:$0xff]
    %v4175 = vld [vmem:[#allocation8 + $0xb0] sm:$0xff]
    %v4176 = vld [vmem:[#allocation8 + $0xb8] sm:$0xff]
    %v4177 = vld [vmem:[#allocation8 + $0xc0] sm:$0xff]
    %v4178 = vld [vmem:[#allocation8 + $0xc8] sm:$0xff]
    %v4179 = vld [vmem:[#allocation8 + $0xd0] sm:$0xff]
    %v4180 = vld [vmem:[#allocation8 + $0xd8] sm:$0xff]
    %v4181 = vld [vmem:[#allocation8 + $0xe0] sm:$0xff]
    %v4182 = vld [vmem:[#allocation8 + $0xe8] sm:$0xff]
    %v4183 = vld [vmem:[#allocation8 + $0xf0] sm:$0xff]
    %v4184 = vld [vmem:[#allocation8 + $0xf8] sm:$0xff]
    %v4185 = vld [vmem:[#allocation8 + $0x100] sm:$0xff]
    %v4186 = vld [vmem:[#allocation8 + $0x108] sm:$0xff]
    %v4187 = vld [vmem:[#allocation8 + $0x110] sm:$0xff]
    %v4188 = vld [vmem:[#allocation8 + $0x118] sm:$0xff]
    %v4189 = vld [vmem:[#allocation8 + $0x120] sm:$0xff]
    %v4190 = vld [vmem:[#allocation8 + $0x128] sm:$0xff]
    %v4191 = vld [vmem:[#allocation8 + $0x130] sm:$0xff]
    %v4192 = vld [vmem:[#allocation8 + $0x138] sm:$0xff]
    %v4193 = vld [vmem:[#allocation8 + $0x140] sm:$0xff]
    %v4194 = vld [vmem:[#allocation8 + $0x148] sm:$0xff]
    %v4195 = vld [vmem:[#allocation8 + $0x150] sm:$0xff]
    %v4196 = vld [vmem:[#allocation8 + $0x158] sm:$0xff]
    %v4197 = vld [vmem:[#allocation8 + $0x160] sm:$0xff]
    %v4198 = vld [vmem:[#allocation8 + $0x168] sm:$0xff]
    %v4199 = vld [vmem:[#allocation8 + $0x170] sm:$0xff]
    %v4200 = vld [vmem:[#allocation8 + $0x178] sm:$0xff]
    %v4201 = vld [vmem:[#allocation8 + $0x180] sm:$0xff]
    %v4202 = vld [vmem:[#allocation8 + $0x188] sm:$0xff]
    %v4203 = vld [vmem:[#allocation8 + $0x190] sm:$0xff]
    %v4204 = vld [vmem:[#allocation8 + $0x198] sm:$0xff]
    %v4205 = vld [vmem:[#allocation8 + $0x1a0] sm:$0xff]
    %v4206 = vld [vmem:[#allocation8 + $0x1a8] sm:$0xff]
    %v4207 = vld [vmem:[#allocation8 + $0x1b0] sm:$0xff]
    %v4208 = vld [vmem:[#allocation8 + $0x1b8] sm:$0xff]
    %v4209 = vld [vmem:[#allocation8 + $0x1c0] sm:$0xff]
    %v4210 = vld [vmem:[#allocation8 + $0x1c8] sm:$0xff]
    %v4211 = vld [vmem:[#allocation8 + $0x1d0] sm:$0xff]
    %v4212 = vld [vmem:[#allocation8 + $0x1d8] sm:$0xff]
    %v4213 = vld [vmem:[#allocation8 + $0x1e0] sm:$0xff]
    %v4214 = vld [vmem:[#allocation8 + $0x1e8] sm:$0xff]
    %v4215 = vld [vmem:[#allocation8 + $0x1f0] sm:$0xff]
    %v4216 = vld [vmem:[#allocation8 + $0x1f8] sm:$0xff]
    %v4217 = vld [vmem:[%s4] sm:$0x3]
    %v4219 = vlaneseq
    %v4220 = vshrl.u32 %v4219, 7
    %v4221 = vsub.s32 0, %v4220
    %v4222 = vrot.slane %v4217, %v4221
    %v4223 = vlaneseq
    %v4224 = vshrl.u32 %v4223, 7
    %v4225 = vsub.s32 1, %v4224
    %v4226 = vrot.slane %v4217, %v4225
    %v4293 = vunpack.c.l.b16 %v4153
    %v4294 = vunpack.c.h.b16 %v4153
    %v4295 = vunpack.c.l.b16 %v4154
    %v4296 = vunpack.c.h.b16 %v4154
    %v4297 = vunpack.c.l.b16 %v4155
    %v4298 = vunpack.c.h.b16 %v4155
    %v4299 = vunpack.c.l.b16 %v4156
    %v4300 = vunpack.c.h.b16 %v4156
    %v4301 = vunpack.c.l.b16 %v4157
    %v4302 = vunpack.c.h.b16 %v4157
    %v4303 = vunpack.c.l.b16 %v4158
    %v4304 = vunpack.c.h.b16 %v4158
    %v4305 = vunpack.c.l.b16 %v4159
    %v4306 = vunpack.c.h.b16 %v4159
    %v4307 = vunpack.c.l.b16 %v4160
    %v4308 = vunpack.c.h.b16 %v4160
    %v4309 = vunpack.c.l.b16 %v4161
    %v4310 = vunpack.c.h.b16 %v4161
    %v4311 = vunpack.c.l.b16 %v4162
    %v4312 = vunpack.c.h.b16 %v4162
    %v4313 = vunpack.c.l.b16 %v4163
    %v4314 = vunpack.c.h.b16 %v4163
    %v4315 = vunpack.c.l.b16 %v4164
    %v4316 = vunpack.c.h.b16 %v4164
    %v4317 = vunpack.c.l.b16 %v4165
    %v4318 = vunpack.c.h.b16 %v4165
    %v4319 = vunpack.c.l.b16 %v4166
    %v4320 = vunpack.c.h.b16 %v4166
    %v4321 = vunpack.c.l.b16 %v4167
    %v4322 = vunpack.c.h.b16 %v4167
    %v4323 = vunpack.c.l.b16 %v4168
    %v4324 = vunpack.c.h.b16 %v4168
    %v4325 = vunpack.c.l.b16 %v4169
    %v4326 = vunpack.c.h.b16 %v4169
    %v4327 = vunpack.c.l.b16 %v4170
    %v4328 = vunpack.c.h.b16 %v4170
    %v4329 = vunpack.c.l.b16 %v4171
    %v4330 = vunpack.c.h.b16 %v4171
    %v4331 = vunpack.c.l.b16 %v4172
    %v4332 = vunpack.c.h.b16 %v4172
    %v4333 = vunpack.c.l.b16 %v4173
    %v4334 = vunpack.c.h.b16 %v4173
    %v4335 = vunpack.c.l.b16 %v4174
    %v4336 = vunpack.c.h.b16 %v4174
    %v4337 = vunpack.c.l.b16 %v4175
    %v4338 = vunpack.c.h.b16 %v4175
    %v4339 = vunpack.c.l.b16 %v4176
    %v4340 = vunpack.c.h.b16 %v4176
    %v4341 = vunpack.c.l.b16 %v4177
    %v4342 = vunpack.c.h.b16 %v4177
    %v4343 = vunpack.c.l.b16 %v4178
    %v4344 = vunpack.c.h.b16 %v4178
    %v4345 = vunpack.c.l.b16 %v4179
    %v4346 = vunpack.c.h.b16 %v4179
    %v4347 = vunpack.c.l.b16 %v4180
    %v4348 = vunpack.c.h.b16 %v4180
    %v4349 = vunpack.c.l.b16 %v4181
    %v4350 = vunpack.c.h.b16 %v4181
    %v4351 = vunpack.c.l.b16 %v4182
    %v4352 = vunpack.c.h.b16 %v4182
    %v4353 = vunpack.c.l.b16 %v4183
    %v4354 = vunpack.c.h.b16 %v4183
    %v4355 = vunpack.c.l.b16 %v4184
    %v4356 = vunpack.c.h.b16 %v4184
    %v4357 = vunpack.c.l.b16 %v4185
    %v4358 = vunpack.c.h.b16 %v4185
    %v4359 = vunpack.c.l.b16 %v4186
    %v4360 = vunpack.c.h.b16 %v4186
    %v4361 = vunpack.c.l.b16 %v4187
    %v4362 = vunpack.c.h.b16 %v4187
    %v4363 = vunpack.c.l.b16 %v4188
    %v4364 = vunpack.c.h.b16 %v4188
    %v4365 = vunpack.c.l.b16 %v4189
    %v4366 = vunpack.c.h.b16 %v4189
    %v4367 = vunpack.c.l.b16 %v4190
    %v4368 = vunpack.c.h.b16 %v4190
    %v4369 = vunpack.c.l.b16 %v4191
    %v4370 = vunpack.c.h.b16 %v4191
    %v4371 = vunpack.c.l.b16 %v4192
    %v4372 = vunpack.c.h.b16 %v4192
    %v4373 = vunpack.c.l.b16 %v4193
    %v4374 = vunpack.c.h.b16 %v4193
    %v4375 = vunpack.c.l.b16 %v4194
    %v4376 = vunpack.c.h.b16 %v4194
    %v4377 = vunpack.c.l.b16 %v4195
    %v4378 = vunpack.c.h.b16 %v4195
    %v4379 = vunpack.c.l.b16 %v4196
    %v4380 = vunpack.c.h.b16 %v4196
    %v4381 = vunpack.c.l.b16 %v4197
    %v4382 = vunpack.c.h.b16 %v4197
    %v4383 = vunpack.c.l.b16 %v4198
    %v4384 = vunpack.c.h.b16 %v4198
    %v4385 = vunpack.c.l.b16 %v4199
    %v4386 = vunpack.c.h.b16 %v4199
    %v4387 = vunpack.c.l.b16 %v4200
    %v4388 = vunpack.c.h.b16 %v4200
    %v4389 = vunpack.c.l.b16 %v4201
    %v4390 = vunpack.c.h.b16 %v4201
    %v4391 = vunpack.c.l.b16 %v4202
    %v4392 = vunpack.c.h.b16 %v4202
    %v4393 = vunpack.c.l.b16 %v4203
    %v4394 = vunpack.c.h.b16 %v4203
    %v4395 = vunpack.c.l.b16 %v4204
    %v4396 = vunpack.c.h.b16 %v4204
    %v4397 = vunpack.c.l.b16 %v4205
    %v4398 = vunpack.c.h.b16 %v4205
    %v4399 = vunpack.c.l.b16 %v4206
    %v4400 = vunpack.c.h.b16 %v4206
    %v4401 = vunpack.c.l.b16 %v4207
    %v4402 = vunpack.c.h.b16 %v4207
    %v4403 = vunpack.c.l.b16 %v4208
    %v4404 = vunpack.c.h.b16 %v4208
    %v4405 = vunpack.c.l.b16 %v4209
    %v4406 = vunpack.c.h.b16 %v4209
    %v4407 = vunpack.c.l.b16 %v4210
    %v4408 = vunpack.c.h.b16 %v4210
    %v4409 = vunpack.c.l.b16 %v4211
    %v4410 = vunpack.c.h.b16 %v4211
    %v4411 = vunpack.c.l.b16 %v4212
    %v4412 = vunpack.c.h.b16 %v4212
    %v4413 = vunpack.c.l.b16 %v4213
    %v4414 = vunpack.c.h.b16 %v4213
    %v4415 = vunpack.c.l.b16 %v4214
    %v4416 = vunpack.c.h.b16 %v4214
    %v4417 = vunpack.c.l.b16 %v4215
    %v4418 = vunpack.c.h.b16 %v4215
    %v4419 = vunpack.c.l.b16 %v4216
    %v4420 = vunpack.c.h.b16 %v4216
    %v4421 = vpack.c.b16 %v4295, %v4293
    %v4422 = vpack.c.b16 %v4296, %v4294
    %v4423 = vpack.c.b16 %v4299, %v4297
    %v4424 = vpack.c.b16 %v4300, %v4298
    %v4425 = vpack.c.b16 %v4303, %v4301
    %v4426 = vpack.c.b16 %v4304, %v4302
    %v4427 = vpack.c.b16 %v4307, %v4305
    %v4428 = vpack.c.b16 %v4308, %v4306
    %v4429 = vpack.c.b16 %v4311, %v4309
    %v4430 = vpack.c.b16 %v4312, %v4310
    %v4431 = vpack.c.b16 %v4315, %v4313
    %v4432 = vpack.c.b16 %v4316, %v4314
    %v4433 = vpack.c.b16 %v4319, %v4317
    %v4434 = vpack.c.b16 %v4320, %v4318
    %v4435 = vpack.c.b16 %v4323, %v4321
    %v4436 = vpack.c.b16 %v4324, %v4322
    %v4437 = vpack.c.b16 %v4327, %v4325
    %v4438 = vpack.c.b16 %v4328, %v4326
    %v4439 = vpack.c.b16 %v4331, %v4329
    %v4440 = vpack.c.b16 %v4332, %v4330
    %v4441 = vpack.c.b16 %v4335, %v4333
    %v4442 = vpack.c.b16 %v4336, %v4334
    %v4443 = vpack.c.b16 %v4339, %v4337
    %v4444 = vpack.c.b16 %v4340, %v4338
    %v4445 = vpack.c.b16 %v4343, %v4341
    %v4446 = vpack.c.b16 %v4344, %v4342
    %v4447 = vpack.c.b16 %v4347, %v4345
    %v4448 = vpack.c.b16 %v4348, %v4346
    %v4449 = vpack.c.b16 %v4351, %v4349
    %v4450 = vpack.c.b16 %v4352, %v4350
    %v4451 = vpack.c.b16 %v4355, %v4353
    %v4452 = vpack.c.b16 %v4356, %v4354
    %v4453 = vpack.c.b16 %v4359, %v4357
    %v4454 = vpack.c.b16 %v4360, %v4358
    %v4455 = vpack.c.b16 %v4363, %v4361
    %v4456 = vpack.c.b16 %v4364, %v4362
    %v4457 = vpack.c.b16 %v4367, %v4365
    %v4458 = vpack.c.b16 %v4368, %v4366
    %v4459 = vpack.c.b16 %v4371, %v4369
    %v4460 = vpack.c.b16 %v4372, %v4370
    %v4461 = vpack.c.b16 %v4375, %v4373
    %v4462 = vpack.c.b16 %v4376, %v4374
    %v4463 = vpack.c.b16 %v4379, %v4377
    %v4464 = vpack.c.b16 %v4380, %v4378
    %v4465 = vpack.c.b16 %v4383, %v4381
    %v4466 = vpack.c.b16 %v4384, %v4382
    %v4467 = vpack.c.b16 %v4387, %v4385
    %v4468 = vpack.c.b16 %v4388, %v4386
    %v4469 = vpack.c.b16 %v4391, %v4389
    %v4470 = vpack.c.b16 %v4392, %v4390
    %v4471 = vpack.c.b16 %v4395, %v4393
    %v4472 = vpack.c.b16 %v4396, %v4394
    %v4473 = vpack.c.b16 %v4399, %v4397
    %v4474 = vpack.c.b16 %v4400, %v4398
    %v4475 = vpack.c.b16 %v4403, %v4401
    %v4476 = vpack.c.b16 %v4404, %v4402
    %v4477 = vpack.c.b16 %v4407, %v4405
    %v4478 = vpack.c.b16 %v4408, %v4406
    %v4479 = vpack.c.b16 %v4411, %v4409
    %v4480 = vpack.c.b16 %v4412, %v4410
    %v4481 = vpack.c.b16 %v4415, %v4413
    %v4482 = vpack.c.b16 %v4416, %v4414
    %v4483 = vpack.c.b16 %v4419, %v4417
    %v4484 = vpack.c.b16 %v4420, %v4418
    %4549 = vmatprep.subr.bf16.mxu0 %v4422
    %4550 = vmatpush1.bf16.msra.mxu0 %v4421
    %4551 = vmatprep.subr.bf16.mxu0 %v4424
    %4552 = vmatpush1.bf16.msra.mxu0 %v4423
    %4553 = vmatprep.subr.bf16.mxu0 %v4426
    %4554 = vmatpush1.bf16.msra.mxu0 %v4425
    %4555 = vmatprep.subr.bf16.mxu0 %v4428
    %4556 = vmatpush1.bf16.msra.mxu0 %v4427
    %4557 = vmatprep.subr.bf16.mxu0 %v4430
    %4558 = vmatpush1.bf16.msra.mxu0 %v4429
    %4559 = vmatprep.subr.bf16.mxu0 %v4432
    %4560 = vmatpush1.bf16.msra.mxu0 %v4431
    %4561 = vmatprep.subr.bf16.mxu0 %v4434
    %4562 = vmatpush1.bf16.msra.mxu0 %v4433
    %4563 = vmatprep.subr.bf16.mxu0 %v4436
    %4564 = vmatpush1.bf16.msra.mxu0 %v4435
    %4565 = vmatprep.subr.bf16.mxu0 %v4438
    %4566 = vmatpush1.bf16.msra.mxu0 %v4437
    %4567 = vmatprep.subr.bf16.mxu0 %v4440
    %4568 = vmatpush1.bf16.msra.mxu0 %v4439
    %4569 = vmatprep.subr.bf16.mxu0 %v4442
    %4570 = vmatpush1.bf16.msra.mxu0 %v4441
    %4571 = vmatprep.subr.bf16.mxu0 %v4444
    %4572 = vmatpush1.bf16.msra.mxu0 %v4443
    %4573 = vmatprep.subr.bf16.mxu0 %v4446
    %4574 = vmatpush1.bf16.msra.mxu0 %v4445
    %4575 = vmatprep.subr.bf16.mxu0 %v4448
    %4576 = vmatpush1.bf16.msra.mxu0 %v4447
    %4577 = vmatprep.subr.bf16.mxu0 %v4450
    %4578 = vmatpush1.bf16.msra.mxu0 %v4449
    %4579 = vmatprep.subr.bf16.mxu0 %v4452
    %4580 = vmatpush1.bf16.msra.mxu0 %v4451
    %4581 = vmatprep.mubr.bf16.mxu0 %v4090
    %4582 = vmatmul.mubr.bf16.gmra.mrb[0].mxu0 %v4089
    %v4583 = vpop.f32.mrb[0].mxu0
    %v4584 = vadd.f32 %v4222, %v4583
    %v4585 = vpop.f32.mrb[0].mxu0
    %v4586 = vadd.f32 %v4226, %v4585
    %v4587 = vpop.f32.mrb[0].mxu0
    %v4588 = vadd.f32 %v4222, %v4587
    %v4589 = vpop.f32.mrb[0].mxu0
    %v4590 = vadd.f32 %v4226, %v4589
    %4591 = vmatprep.mubr.bf16.mxu0 %v4094
    %4592 = vmatmul.mubr.bf16.gmra.mrb[0].mxu0 %v4093
    %v4593 = vpop.f32.mrb[0].mxu0
    %v4594 = vadd.f32 %v4222, %v4593
    %v4595 = vpop.f32.mrb[0].mxu0
    %v4596 = vadd.f32 %v4226, %v4595
    %v4597 = vpop.f32.mrb[0].mxu0
    %v4598 = vadd.f32 %v4222, %v4597
    %v4599 = vpop.f32.mrb[0].mxu0
    %v4600 = vadd.f32 %v4226, %v4599
    %4601 = vmatprep.mubr.bf16.mxu0 %v4098
    %4602 = vmatmul.mubr.bf16.gmra.mrb[0].mxu0 %v4097
    %v4603 = vpop.f32.mrb[0].mxu0
    %v4604 = vadd.f32 %v4222, %v4603
    %v4605 = vpop.f32.mrb[0].mxu0
    %v4606 = vadd.f32 %v4226, %v4605
    %v4607 = vpop.f32.mrb[0].mxu0
    %v4608 = vadd.f32 %v4222, %v4607
    %v4609 = vpop.f32.mrb[0].mxu0
    %v4610 = vadd.f32 %v4226, %v4609
    %4611 = vmatprep.mubr.bf16.mxu0 %v4102
    %4612 = vmatmul.mubr.bf16.gmra.mrb[0].mxu0 %v4101
    %v4613 = vpop.f32.mrb[0].mxu0
    %v4614 = vadd.f32 %v4222, %v4613
    %v4615 = vpop.f32.mrb[0].mxu0
    %v4616 = vadd.f32 %v4226, %v4615
    %v4617 = vpop.f32.mrb[0].mxu0
    %v4618 = vadd.f32 %v4222, %v4617
    %v4619 = vpop.f32.mrb[0].mxu0
    %v4620 = vadd.f32 %v4226, %v4619
    %4621 = vmatprep.mubr.bf16.mxu0 %v4106
    %4622 = vmatmul.mubr.bf16.gmra.mrb[0].mxu0 %v4105
    %v4623 = vpop.f32.mrb[0].mxu0
    %v4624 = vadd.f32 %v4222, %v4623
    %v4625 = vpop.f32.mrb[0].mxu0
    %v4626 = vadd.f32 %v4226, %v4625
    %v4627 = vpop.f32.mrb[0].mxu0
    %v4628 = vadd.f32 %v4222, %v4627
    %v4629 = vpop.f32.mrb[0].mxu0
    %v4630 = vadd.f32 %v4226, %v4629
    %4631 = vmatprep.mubr.bf16.mxu0 %v4110
    %4632 = vmatmul.mubr.bf16.gmra.mrb[0].mxu0 %v4109
    %v4633 = vpop.f32.mrb[0].mxu0
    %v4634 = vadd.f32 %v4222, %v4633
    %v4635 = vpop.f32.mrb[0].mxu0
    %v4636 = vadd.f32 %v4226, %v4635
    %v4637 = vpop.f32.mrb[0].mxu0
    %v4638 = vadd.f32 %v4222, %v4637
    %v4639 = vpop.f32.mrb[0].mxu0
    %v4640 = vadd.f32 %v4226, %v4639
    %4641 = vmatprep.mubr.bf16.mxu0 %v4114
    %4642 = vmatmul.mubr.bf16.gmra.mrb[0].mxu0 %v4113
    %v4643 = vpop.f32.mrb[0].mxu0
    %v4644 = vadd.f32 %v4222, %v4643
    %v4645 = vpop.f32.mrb[0].mxu0
    %v4646 = vadd.f32 %v4226, %v4645
    %v4647 = vpop.f32.mrb[0].mxu0
    %v4648 = vadd.f32 %v4222, %v4647
    %v4649 = vpop.f32.mrb[0].mxu0
    %v4650 = vadd.f32 %v4226, %v4649
    %4651 = vmatprep.mubr.bf16.mxu0 %v4118
    %4652 = vmatmul.mubr.bf16.gmra.mrb[0].mxu0 %v4117
    %v4653 = vpop.f32.mrb[0].mxu0
    %v4654 = vadd.f32 %v4222, %v4653
    %v4655 = vpop.f32.mrb[0].mxu0
    %v4656 = vadd.f32 %v4226, %v4655
    %v4657 = vpop.f32.mrb[0].mxu0
    %v4658 = vadd.f32 %v4222, %v4657
    %v4659 = vpop.f32.mrb[0].mxu0
    %v4660 = vadd.f32 %v4226, %v4659
    %4661 = vmatprep.mubr.bf16.mxu0 %v4122
    %4662 = vmatmul.mubr.bf16.gmra.mrb[0].mxu0 %v4121
    %v4663 = vpop.f32.mrb[0].mxu0
    %v4664 = vadd.f32 %v4222, %v4663
    %v4665 = vpop.f32.mrb[0].mxu0
    %v4666 = vadd.f32 %v4226, %v4665
    %v4667 = vpop.f32.mrb[0].mxu0
    %v4668 = vadd.f32 %v4222, %v4667
    %v4669 = vpop.f32.mrb[0].mxu0
    %v4670 = vadd.f32 %v4226, %v4669
    %4671 = vmatprep.mubr.bf16.mxu0 %v4126
    %4672 = vmatmul.mubr.bf16.gmra.mrb[0].mxu0 %v4125
    %v4673 = vpop.f32.mrb[0].mxu0
    %v4674 = vadd.f32 %v4222, %v4673
    %v4675 = vpop.f32.mrb[0].mxu0
    %v4676 = vadd.f32 %v4226, %v4675
    %v4677 = vpop.f32.mrb[0].mxu0
    %v4678 = vadd.f32 %v4222, %v4677
    %v4679 = vpop.f32.mrb[0].mxu0
    %v4680 = vadd.f32 %v4226, %v4679
    %4681 = vmatprep.mubr.bf16.mxu0 %v4130
    %4682 = vmatmul.mubr.bf16.gmra.mrb[0].mxu0 %v4129
    %v4683 = vpop.f32.mrb[0].mxu0
    %v4684 = vadd.f32 %v4222, %v4683
    %v4685 = vpop.f32.mrb[0].mxu0
    %v4686 = vadd.f32 %v4226, %v4685
    %v4687 = vpop.f32.mrb[0].mxu0
    %v4688 = vadd.f32 %v4222, %v4687
    %v4689 = vpop.f32.mrb[0].mxu0
    %v4690 = vadd.f32 %v4226, %v4689
    %4691 = vmatprep.mubr.bf16.mxu0 %v4134
    %4692 = vmatmul.mubr.bf16.gmra.mrb[0].mxu0 %v4133
    %v4693 = vpop.f32.mrb[0].mxu0
    %v4694 = vadd.f32 %v4222, %v4693
    %v4695 = vpop.f32.mrb[0].mxu0
    %v4696 = vadd.f32 %v4226, %v4695
    %v4697 = vpop.f32.mrb[0].mxu0
    %v4698 = vadd.f32 %v4222, %v4697
    %v4699 = vpop.f32.mrb[0].mxu0
    %v4700 = vadd.f32 %v4226, %v4699
    %4701 = vmatprep.mubr.bf16.mxu0 %v4138
    %4702 = vmatmul.mubr.bf16.gmra.mrb[0].mxu0 %v4137
    %v4703 = vpop.f32.mrb[0].mxu0
    %v4704 = vadd.f32 %v4222, %v4703
    %v4705 = vpop.f32.mrb[0].mxu0
    %v4706 = vadd.f32 %v4226, %v4705
    %v4707 = vpop.f32.mrb[0].mxu0
    %v4708 = vadd.f32 %v4222, %v4707
    %v4709 = vpop.f32.mrb[0].mxu0
    %v4710 = vadd.f32 %v4226, %v4709
    %4711 = vmatprep.mubr.bf16.mxu0 %v4142
    %4712 = vmatmul.mubr.bf16.gmra.mrb[0].mxu0 %v4141
    %v4713 = vpop.f32.mrb[0].mxu0
    %v4714 = vadd.f32 %v4222, %v4713
    %v4715 = vpop.f32.mrb[0].mxu0
    %v4716 = vadd.f32 %v4226, %v4715
    %v4717 = vpop.f32.mrb[0].mxu0
    %v4718 = vadd.f32 %v4222, %v4717
    %v4719 = vpop.f32.mrb[0].mxu0
    %v4720 = vadd.f32 %v4226, %v4719
    %4721 = vmatprep.mubr.bf16.mxu0 %v4146
    %4722 = vmatmul.mubr.bf16.gmra.mrb[0].mxu0 %v4145
    %v4723 = vpop.f32.mrb[0].mxu0
    %v4724 = vadd.f32 %v4222, %v4723
    %v4725 = vpop.f32.mrb[0].mxu0
    %v4726 = vadd.f32 %v4226, %v4725
    %v4727 = vpop.f32.mrb[0].mxu0
    %v4728 = vadd.f32 %v4222, %v4727
    %v4729 = vpop.f32.mrb[0].mxu0
    %v4730 = vadd.f32 %v4226, %v4729
    %4731 = vmatprep.mubr.bf16.mxu0 %v4150
    %4732 = vmatmul.mubr.bf16.gmra.mrb[0].mxu0 %v4149
    %v4733 = vpop.f32.mrb[0].mxu0
    %v4734 = vadd.f32 %v4222, %v4733
    %v4735 = vpop.f32.mrb[0].mxu0
    %v4736 = vadd.f32 %v4226, %v4735
    %v4737 = vpop.f32.mrb[0].mxu0
    %v4738 = vadd.f32 %v4222, %v4737
    %v4739 = vpop.f32.mrb[0].mxu0
    %v4740 = vadd.f32 %v4226, %v4739
    %4741 = vdwg.mxu0
    %4742 = vmatprep.subr.bf16.mxu0 %v4454
    %4743 = vmatpush1.bf16.msra.mxu0 %v4453
    %4744 = vmatprep.subr.bf16.mxu0 %v4456
    %4745 = vmatpush1.bf16.msra.mxu0 %v4455
    %4746 = vmatprep.subr.bf16.mxu0 %v4458
    %4747 = vmatpush1.bf16.msra.mxu0 %v4457
    %4748 = vmatprep.subr.bf16.mxu0 %v4460
    %4749 = vmatpush1.bf16.msra.mxu0 %v4459
    %4750 = vmatprep.subr.bf16.mxu0 %v4462
    %4751 = vmatpush1.bf16.msra.mxu0 %v4461
    %4752 = vmatprep.subr.bf16.mxu0 %v4464
    %4753 = vmatpush1.bf16.msra.mxu0 %v4463
    %4754 = vmatprep.subr.bf16.mxu0 %v4466
    %4755 = vmatpush1.bf16.msra.mxu0 %v4465
    %4756 = vmatprep.subr.bf16.mxu0 %v4468
    %4757 = vmatpush1.bf16.msra.mxu0 %v4467
    %4758 = vmatprep.subr.bf16.mxu0 %v4470
    %4759 = vmatpush1.bf16.msra.mxu0 %v4469
    %4760 = vmatprep.subr.bf16.mxu0 %v4472
    %4761 = vmatpush1.bf16.msra.mxu0 %v4471
    %4762 = vmatprep.subr.bf16.mxu0 %v4474
    %4763 = vmatpush1.bf16.msra.mxu0 %v4473
    %4764 = vmatprep.subr.bf16.mxu0 %v4476
    %4765 = vmatpush1.bf16.msra.mxu0 %v4475
    %4766 = vmatprep.subr.bf16.mxu0 %v4478
    %4767 = vmatpush1.bf16.msra.mxu0 %v4477
    %4768 = vmatprep.subr.bf16.mxu0 %v4480
    %4769 = vmatpush1.bf16.msra.mxu0 %v4479
    %4770 = vmatprep.subr.bf16.mxu0 %v4482
    %4771 = vmatpush1.bf16.msra.mxu0 %v4481
    %4772 = vmatprep.subr.bf16.mxu0 %v4484
    %4773 = vmatpush1.bf16.msra.mxu0 %v4483
    %4774 = vmatprep.mubr.bf16.mxu0 %v4092
    %4775 = vmatmul.mubr.bf16.gmra.mrb[0].mxu0 %v4091
    %v4776 = vpop.f32.mrb[0].mxu0
    %v4777 = vadd.f32 %v4584, %v4776
    %v4778 = vpop.f32.mrb[0].mxu0
    %v4779 = vadd.f32 %v4586, %v4778
    %v4780 = vpop.f32.mrb[0].mxu0
    %v4781 = vadd.f32 %v4588, %v4780
    %v4782 = vpop.f32.mrb[0].mxu0
    %v4783 = vadd.f32 %v4590, %v4782
    %4784 = vmatprep.mubr.bf16.mxu0 %v4096
    %4785 = vmatmul.mubr.bf16.gmra.mrb[0].mxu0 %v4095
    %v4786 = vpop.f32.mrb[0].mxu0
    %v4787 = vadd.f32 %v4594, %v4786
    %v4788 = vpop.f32.mrb[0].mxu0
    %v4789 = vadd.f32 %v4596, %v4788
    %v4790 = vpop.f32.mrb[0].mxu0
    %v4791 = vadd.f32 %v4598, %v4790
    %v4792 = vpop.f32.mrb[0].mxu0
    %v4793 = vadd.f32 %v4600, %v4792
    %4794 = vmatprep.mubr.bf16.mxu0 %v4100
    %4795 = vmatmul.mubr.bf16.gmra.mrb[0].mxu0 %v4099
    %v4796 = vpop.f32.mrb[0].mxu0
    %v4797 = vadd.f32 %v4604, %v4796
    %v4798 = vpop.f32.mrb[0].mxu0
    %v4799 = vadd.f32 %v4606, %v4798
    %v4800 = vpop.f32.mrb[0].mxu0
    %v4801 = vadd.f32 %v4608, %v4800
    %v4802 = vpop.f32.mrb[0].mxu0
    %v4803 = vadd.f32 %v4610, %v4802
    %4804 = vmatprep.mubr.bf16.mxu0 %v4104
    %4805 = vmatmul.mubr.bf16.gmra.mrb[0].mxu0 %v4103
    %v4806 = vpop.f32.mrb[0].mxu0
    %v4807 = vadd.f32 %v4614, %v4806
    %v4808 = vpop.f32.mrb[0].mxu0
    %v4809 = vadd.f32 %v4616, %v4808
    %v4810 = vpop.f32.mrb[0].mxu0
    %v4811 = vadd.f32 %v4618, %v4810
    %v4812 = vpop.f32.mrb[0].mxu0
    %v4813 = vadd.f32 %v4620, %v4812
    %4814 = vmatprep.mubr.bf16.mxu0 %v4108
    %4815 = vmatmul.mubr.bf16.gmra.mrb[0].mxu0 %v4107
    %v4816 = vpop.f32.mrb[0].mxu0
    %v4817 = vadd.f32 %v4624, %v4816
    %v4818 = vpop.f32.mrb[0].mxu0
    %v4819 = vadd.f32 %v4626, %v4818
    %v4820 = vpop.f32.mrb[0].mxu0
    %v4821 = vadd.f32 %v4628, %v4820
    %v4822 = vpop.f32.mrb[0].mxu0
    %v4823 = vadd.f32 %v4630, %v4822
    %4824 = vmatprep.mubr.bf16.mxu0 %v4112
    %4825 = vmatmul.mubr.bf16.gmra.mrb[0].mxu0 %v4111
    %v4826 = vpop.f32.mrb[0].mxu0
    %v4827 = vadd.f32 %v4634, %v4826
    %v4828 = vpop.f32.mrb[0].mxu0
    %v4829 = vadd.f32 %v4636, %v4828
    %v4830 = vpop.f32.mrb[0].mxu0
    %v4831 = vadd.f32 %v4638, %v4830
    %v4832 = vpop.f32.mrb[0].mxu0
    %v4833 = vadd.f32 %v4640, %v4832
    %4834 = vmatprep.mubr.bf16.mxu0 %v4116
    %4835 = vmatmul.mubr.bf16.gmra.mrb[0].mxu0 %v4115
    %v4836 = vpop.f32.mrb[0].mxu0
    %v4837 = vadd.f32 %v4644, %v4836
    %v4838 = vpop.f32.mrb[0].mxu0
    %v4839 = vadd.f32 %v4646, %v4838
    %v4840 = vpop.f32.mrb[0].mxu0
    %v4841 = vadd.f32 %v4648, %v4840
    %v4842 = vpop.f32.mrb[0].mxu0
    %v4843 = vadd.f32 %v4650, %v4842
    %4844 = vmatprep.mubr.bf16.mxu0 %v4120
    %4845 = vmatmul.mubr.bf16.gmra.mrb[0].mxu0 %v4119
    %v4846 = vpop.f32.mrb[0].mxu0
    %v4847 = vadd.f32 %v4654, %v4846
    %v4848 = vpop.f32.mrb[0].mxu0
    %v4849 = vadd.f32 %v4656, %v4848
    %v4850 = vpop.f32.mrb[0].mxu0
    %v4851 = vadd.f32 %v4658, %v4850
    %v4852 = vpop.f32.mrb[0].mxu0
    %v4853 = vadd.f32 %v4660, %v4852
    %4854 = vmatprep.mubr.bf16.mxu0 %v4124
    %4855 = vmatmul.mubr.bf16.gmra.mrb[0].mxu0 %v4123
    %v4856 = vpop.f32.mrb[0].mxu0
    %v4857 = vadd.f32 %v4664, %v4856
    %v4858 = vpop.f32.mrb[0].mxu0
    %v4859 = vadd.f32 %v4666, %v4858
    %v4860 = vpop.f32.mrb[0].mxu0
    %v4861 = vadd.f32 %v4668, %v4860
    %v4862 = vpop.f32.mrb[0].mxu0
    %v4863 = vadd.f32 %v4670, %v4862
    %4864 = vmatprep.mubr.bf16.mxu0 %v4128
    %4865 = vmatmul.mubr.bf16.gmra.mrb[0].mxu0 %v4127
    %v4866 = vpop.f32.mrb[0].mxu0
    %v4867 = vadd.f32 %v4674, %v4866
    %v4868 = vpop.f32.mrb[0].mxu0
    %v4869 = vadd.f32 %v4676, %v4868
    %v4870 = vpop.f32.mrb[0].mxu0
    %v4871 = vadd.f32 %v4678, %v4870
    %v4872 = vpop.f32.mrb[0].mxu0
    %v4873 = vadd.f32 %v4680, %v4872
    %4874 = vmatprep.mubr.bf16.mxu0 %v4132
    %4875 = vmatmul.mubr.bf16.gmra.mrb[0].mxu0 %v4131
    %v4876 = vpop.f32.mrb[0].mxu0
    %v4877 = vadd.f32 %v4684, %v4876
    %v4878 = vpop.f32.mrb[0].mxu0
    %v4879 = vadd.f32 %v4686, %v4878
    %v4880 = vpop.f32.mrb[0].mxu0
    %v4881 = vadd.f32 %v4688, %v4880
    %v4882 = vpop.f32.mrb[0].mxu0
    %v4883 = vadd.f32 %v4690, %v4882
    %4884 = vmatprep.mubr.bf16.mxu0 %v4136
    %4885 = vmatmul.mubr.bf16.gmra.mrb[0].mxu0 %v4135
    %v4886 = vpop.f32.mrb[0].mxu0
    %v4887 = vadd.f32 %v4694, %v4886
    %v4888 = vpop.f32.mrb[0].mxu0
    %v4889 = vadd.f32 %v4696, %v4888
    %v4890 = vpop.f32.mrb[0].mxu0
    %v4891 = vadd.f32 %v4698, %v4890
    %v4892 = vpop.f32.mrb[0].mxu0
    %v4893 = vadd.f32 %v4700, %v4892
    %4894 = vmatprep.mubr.bf16.mxu0 %v4140
    %4895 = vmatmul.mubr.bf16.gmra.mrb[0].mxu0 %v4139
    %v4896 = vpop.f32.mrb[0].mxu0
    %v4897 = vadd.f32 %v4704, %v4896
    %v4898 = vpop.f32.mrb[0].mxu0
    %v4899 = vadd.f32 %v4706, %v4898
    %v4900 = vpop.f32.mrb[0].mxu0
    %v4901 = vadd.f32 %v4708, %v4900
    %v4902 = vpop.f32.mrb[0].mxu0
    %v4903 = vadd.f32 %v4710, %v4902
    %4904 = vmatprep.mubr.bf16.mxu0 %v4144
    %4905 = vmatmul.mubr.bf16.gmra.mrb[0].mxu0 %v4143
    %v4906 = vpop.f32.mrb[0].mxu0
    %v4907 = vadd.f32 %v4714, %v4906
    %v4908 = vpop.f32.mrb[0].mxu0
    %v4909 = vadd.f32 %v4716, %v4908
    %v4910 = vpop.f32.mrb[0].mxu0
    %v4911 = vadd.f32 %v4718, %v4910
    %v4912 = vpop.f32.mrb[0].mxu0
    %v4913 = vadd.f32 %v4720, %v4912
    %4914 = vmatprep.mubr.bf16.mxu0 %v4148
    %4915 = vmatmul.mubr.bf16.gmra.mrb[0].mxu0 %v4147
    %v4916 = vpop.f32.mrb[0].mxu0
    %v4917 = vadd.f32 %v4724, %v4916
    %v4918 = vpop.f32.mrb[0].mxu0
    %v4919 = vadd.f32 %v4726, %v4918
    %v4920 = vpop.f32.mrb[0].mxu0
    %v4921 = vadd.f32 %v4728, %v4920
    %v4922 = vpop.f32.mrb[0].mxu0
    %v4923 = vadd.f32 %v4730, %v4922
    %4924 = vmatprep.mubr.bf16.mxu0 %v4152
    %4925 = vmatmul.mubr.bf16.gmra.mrb[0].mxu0 %v4151
    %v4926 = vpop.f32.mrb[0].mxu0
    %v4927 = vadd.f32 %v4734, %v4926
    %v4928 = vpop.f32.mrb[0].mxu0
    %v4929 = vadd.f32 %v4736, %v4928
    %v4930 = vpop.f32.mrb[0].mxu0
    %v4931 = vadd.f32 %v4738, %v4930
    %v4932 = vpop.f32.mrb[0].mxu0
    %v4933 = vadd.f32 %v4740, %v4932
    %4934 = vdwg.mxu0
    %vm4935 = vcmp.gt.f32.partialorder %v4777, 0.0
    %vm4936 = vcmp.gt.f32.partialorder %v4779, 0.0
    %vm4937 = vcmp.gt.f32.partialorder %v4781, 0.0
    %vm4938 = vcmp.gt.f32.partialorder %v4783, 0.0
    %vm4939 = vcmp.gt.f32.partialorder %v4787, 0.0
    %vm4940 = vcmp.gt.f32.partialorder %v4789, 0.0
    %vm4941 = vcmp.gt.f32.partialorder %v4791, 0.0
    %vm4942 = vcmp.gt.f32.partialorder %v4793, 0.0
    %vm4943 = vcmp.gt.f32.partialorder %v4797, 0.0
    %vm4944 = vcmp.gt.f32.partialorder %v4799, 0.0
    %vm4945 = vcmp.gt.f32.partialorder %v4801, 0.0
    %vm4946 = vcmp.gt.f32.partialorder %v4803, 0.0
    %vm4947 = vcmp.gt.f32.partialorder %v4807, 0.0
    %vm4948 = vcmp.gt.f32.partialorder %v4809, 0.0
    %vm4949 = vcmp.gt.f32.partialorder %v4811, 0.0
    %vm4950 = vcmp.gt.f32.partialorder %v4813, 0.0
    %vm4951 = vcmp.gt.f32.partialorder %v4817, 0.0
    %vm4952 = vcmp.gt.f32.partialorder %v4819, 0.0
    %vm4953 = vcmp.gt.f32.partialorder %v4821, 0.0
    %vm4954 = vcmp.gt.f32.partialorder %v4823, 0.0
    %vm4955 = vcmp.gt.f32.partialorder %v4827, 0.0
    %vm4956 = vcmp.gt.f32.partialorder %v4829, 0.0
    %vm4957 = vcmp.gt.f32.partialorder %v4831, 0.0
    %vm4958 = vcmp.gt.f32.partialorder %v4833, 0.0
    %vm4959 = vcmp.gt.f32.partialorder %v4837, 0.0
    %vm4960 = vcmp.gt.f32.partialorder %v4839, 0.0
    %vm4961 = vcmp.gt.f32.partialorder %v4841, 0.0
    %vm4962 = vcmp.gt.f32.partialorder %v4843, 0.0
    %vm4963 = vcmp.gt.f32.partialorder %v4847, 0.0
    %vm4964 = vcmp.gt.f32.partialorder %v4849, 0.0
    %vm4965 = vcmp.gt.f32.partialorder %v4851, 0.0
    %vm4966 = vcmp.gt.f32.partialorder %v4853, 0.0
    %vm4967 = vcmp.gt.f32.partialorder %v4857, 0.0
    %vm4968 = vcmp.gt.f32.partialorder %v4859, 0.0
    %vm4969 = vcmp.gt.f32.partialorder %v4861, 0.0
    %vm4970 = vcmp.gt.f32.partialorder %v4863, 0.0
    %vm4971 = vcmp.gt.f32.partialorder %v4867, 0.0
    %vm4972 = vcmp.gt.f32.partialorder %v4869, 0.0
    %vm4973 = vcmp.gt.f32.partialorder %v4871, 0.0
    %vm4974 = vcmp.gt.f32.partialorder %v4873, 0.0
    %vm4975 = vcmp.gt.f32.partialorder %v4877, 0.0
    %vm4976 = vcmp.gt.f32.partialorder %v4879, 0.0
    %vm4977 = vcmp.gt.f32.partialorder %v4881, 0.0
    %vm4978 = vcmp.gt.f32.partialorder %v4883, 0.0
    %vm4979 = vcmp.gt.f32.partialorder %v4887, 0.0
    %vm4980 = vcmp.gt.f32.partialorder %v4889, 0.0
    %vm4981 = vcmp.gt.f32.partialorder %v4891, 0.0
    %vm4982 = vcmp.gt.f32.partialorder %v4893, 0.0
    %vm4983 = vcmp.gt.f32.partialorder %v4897, 0.0
    %vm4984 = vcmp.gt.f32.partialorder %v4899, 0.0
    %vm4985 = vcmp.gt.f32.partialorder %v4901, 0.0
    %vm4986 = vcmp.gt.f32.partialorder %v4903, 0.0
    %vm4987 = vcmp.gt.f32.partialorder %v4907, 0.0
    %vm4988 = vcmp.gt.f32.partialorder %v4909, 0.0
    %vm4989 = vcmp.gt.f32.partialorder %v4911, 0.0
    %vm4990 = vcmp.gt.f32.partialorder %v4913, 0.0
    %vm4991 = vcmp.gt.f32.partialorder %v4917, 0.0
    %vm4992 = vcmp.gt.f32.partialorder %v4919, 0.0
    %vm4993 = vcmp.gt.f32.partialorder %v4921, 0.0
    %vm4994 = vcmp.gt.f32.partialorder %v4923, 0.0
    %vm4995 = vcmp.gt.f32.partialorder %v4927, 0.0
    %vm4996 = vcmp.gt.f32.partialorder %v4929, 0.0
    %vm4997 = vcmp.gt.f32.partialorder %v4931, 0.0
    %vm4998 = vcmp.gt.f32.partialorder %v4933, 0.0
    %v4999 = vmul.f32 %v4777, 0.2
    %v5000 = vmul.f32 %v4779, 0.2
    %v5001 = vmul.f32 %v4781, 0.2
    %v5002 = vmul.f32 %v4783, 0.2
    %v5003 = vmul.f32 %v4787, 0.2
    %v5004 = vmul.f32 %v4789, 0.2
    %v5005 = vmul.f32 %v4791, 0.2
    %v5006 = vmul.f32 %v4793, 0.2
    %v5007 = vmul.f32 %v4797, 0.2
    %v5008 = vmul.f32 %v4799, 0.2
    %v5009 = vmul.f32 %v4801, 0.2
    %v5010 = vmul.f32 %v4803, 0.2
    %v5011 = vmul.f32 %v4807, 0.2
    %v5012 = vmul.f32 %v4809, 0.2
    %v5013 = vmul.f32 %v4811, 0.2
    %v5014 = vmul.f32 %v4813, 0.2
    %v5015 = vmul.f32 %v4817, 0.2
    %v5016 = vmul.f32 %v4819, 0.2
    %v5017 = vmul.f32 %v4821, 0.2
    %v5018 = vmul.f32 %v4823, 0.2
    %v5019 = vmul.f32 %v4827, 0.2
    %v5020 = vmul.f32 %v4829, 0.2
    %v5021 = vmul.f32 %v4831, 0.2
    %v5022 = vmul.f32 %v4833, 0.2
    %v5023 = vmul.f32 %v4837, 0.2
    %v5024 = vmul.f32 %v4839, 0.2
    %v5025 = vmul.f32 %v4841, 0.2
    %v5026 = vmul.f32 %v4843, 0.2
    %v5027 = vmul.f32 %v4847, 0.2
    %v5028 = vmul.f32 %v4849, 0.2
    %v5029 = vmul.f32 %v4851, 0.2
    %v5030 = vmul.f32 %v4853, 0.2
    %v5031 = vmul.f32 %v4857, 0.2
    %v5032 = vmul.f32 %v4859, 0.2
    %v5033 = vmul.f32 %v4861, 0.2
    %v5034 = vmul.f32 %v4863, 0.2
    %v5035 = vmul.f32 %v4867, 0.2
    %v5036 = vmul.f32 %v4869, 0.2
    %v5037 = vmul.f32 %v4871, 0.2
    %v5038 = vmul.f32 %v4873, 0.2
    %v5039 = vmul.f32 %v4877, 0.2
    %v5040 = vmul.f32 %v4879, 0.2
    %v5041 = vmul.f32 %v4881, 0.2
    %v5042 = vmul.f32 %v4883, 0.2
    %v5043 = vmul.f32 %v4887, 0.2
    %v5044 = vmul.f32 %v4889, 0.2
    %v5045 = vmul.f32 %v4891, 0.2
    %v5046 = vmul.f32 %v4893, 0.2
    %v5047 = vmul.f32 %v4897, 0.2
    %v5048 = vmul.f32 %v4899, 0.2
    %v5049 = vmul.f32 %v4901, 0.2
    %v5050 = vmul.f32 %v4903, 0.2
    %v5051 = vmul.f32 %v4907, 0.2
    %v5052 = vmul.f32 %v4909, 0.2
    %v5053 = vmul.f32 %v4911, 0.2
    %v5054 = vmul.f32 %v4913, 0.2
    %v5055 = vmul.f32 %v4917, 0.2
    %v5056 = vmul.f32 %v4919, 0.2
    %v5057 = vmul.f32 %v4921, 0.2
    %v5058 = vmul.f32 %v4923, 0.2
    %v5059 = vmul.f32 %v4927, 0.2
    %v5060 = vmul.f32 %v4929, 0.2
    %v5061 = vmul.f32 %v4931, 0.2
    %v5062 = vmul.f32 %v4933, 0.2
    %v5063 = vsel %vm4935, %v4777, %v4999
    %v5064 = vsel %vm4936, %v4779, %v5000
    %v5065 = vsel %vm4937, %v4781, %v5001
    %v5066 = vsel %vm4938, %v4783, %v5002
    %v5067 = vsel %vm4939, %v4787, %v5003
    %v5068 = vsel %vm4940, %v4789, %v5004
    %v5069 = vsel %vm4941, %v4791, %v5005
    %v5070 = vsel %vm4942, %v4793, %v5006
    %v5071 = vsel %vm4943, %v4797, %v5007
    %v5072 = vsel %vm4944, %v4799, %v5008
    %v5073 = vsel %vm4945, %v4801, %v5009
    %v5074 = vsel %vm4946, %v4803, %v5010
    %v5075 = vsel %vm4947, %v4807, %v5011
    %v5076 = vsel %vm4948, %v4809, %v5012
    %v5077 = vsel %vm4949, %v4811, %v5013
    %v5078 = vsel %vm4950, %v4813, %v5014
    %v5079 = vsel %vm4951, %v4817, %v5015
    %v5080 = vsel %vm4952, %v4819, %v5016
    %v5081 = vsel %vm4953, %v4821, %v5017
    %v5082 = vsel %vm4954, %v4823, %v5018
    %v5083 = vsel %vm4955, %v4827, %v5019
    %v5084 = vsel %vm4956, %v4829, %v5020
    %v5085 = vsel %vm4957, %v4831, %v5021
    %v5086 = vsel %vm4958, %v4833, %v5022
    %v5087 = vsel %vm4959, %v4837, %v5023
    %v5088 = vsel %vm4960, %v4839, %v5024
    %v5089 = vsel %vm4961, %v4841, %v5025
    %v5090 = vsel %vm4962, %v4843, %v5026
    %v5091 = vsel %vm4963, %v4847, %v5027
    %v5092 = vsel %vm4964, %v4849, %v5028
    %v5093 = vsel %vm4965, %v4851, %v5029
    %v5094 = vsel %vm4966, %v4853, %v5030
    %v5095 = vsel %vm4967, %v4857, %v5031
    %v5096 = vsel %vm4968, %v4859, %v5032
    %v5097 = vsel %vm4969, %v4861, %v5033
    %v5098 = vsel %vm4970, %v4863, %v5034
    %v5099 = vsel %vm4971, %v4867, %v5035
    %v5100 = vsel %vm4972, %v4869, %v5036
    %v5101 = vsel %vm4973, %v4871, %v5037
    %v5102 = vsel %vm4974, %v4873, %v5038
    %v5103 = vsel %vm4975, %v4877, %v5039
    %v5104 = vsel %vm4976, %v4879, %v5040
    %v5105 = vsel %vm4977, %v4881, %v5041
    %v5106 = vsel %vm4978, %v4883, %v5042
    %v5107 = vsel %vm4979, %v4887, %v5043
    %v5108 = vsel %vm4980, %v4889, %v5044
    %v5109 = vsel %vm4981, %v4891, %v5045
    %v5110 = vsel %vm4982, %v4893, %v5046
    %v5111 = vsel %vm4983, %v4897, %v5047
    %v5112 = vsel %vm4984, %v4899, %v5048
    %v5113 = vsel %vm4985, %v4901, %v5049
    %v5114 = vsel %vm4986, %v4903, %v5050
    %v5115 = vsel %vm4987, %v4907, %v5051
    %v5116 = vsel %vm4988, %v4909, %v5052
    %v5117 = vsel %vm4989, %v4911, %v5053
    %v5118 = vsel %vm4990, %v4913, %v5054
    %v5119 = vsel %vm4991, %v4917, %v5055
    %v5120 = vsel %vm4992, %v4919, %v5056
    %v5121 = vsel %vm4993, %v4921, %v5057
    %v5122 = vsel %vm4994, %v4923, %v5058
    %v5123 = vsel %vm4995, %v4927, %v5059
    %v5124 = vsel %vm4996, %v4929, %v5060
    %v5125 = vsel %vm4997, %v4931, %v5061
    %v5126 = vsel %vm4998, %v4933, %v5062
    %v5127 = vpack.c.bf16 %v5065, %v5063
    %v5128 = vpack.c.bf16 %v5066, %v5064
    %v5129 = vpack.c.bf16 %v5069, %v5067
    %v5130 = vpack.c.bf16 %v5070, %v5068
    %v5131 = vpack.c.bf16 %v5073, %v5071
    %v5132 = vpack.c.bf16 %v5074, %v5072
    %v5133 = vpack.c.bf16 %v5077, %v5075
    %v5134 = vpack.c.bf16 %v5078, %v5076
    %v5135 = vpack.c.bf16 %v5081, %v5079
    %v5136 = vpack.c.bf16 %v5082, %v5080
    %v5137 = vpack.c.bf16 %v5085, %v5083
    %v5138 = vpack.c.bf16 %v5086, %v5084
    %v5139 = vpack.c.bf16 %v5089, %v5087
    %v5140 = vpack.c.bf16 %v5090, %v5088
    %v5141 = vpack.c.bf16 %v5093, %v5091
    %v5142 = vpack.c.bf16 %v5094, %v5092
    %v5143 = vpack.c.bf16 %v5097, %v5095
    %v5144 = vpack.c.bf16 %v5098, %v5096
    %v5145 = vpack.c.bf16 %v5101, %v5099
    %v5146 = vpack.c.bf16 %v5102, %v5100
    %v5147 = vpack.c.bf16 %v5105, %v5103
    %v5148 = vpack.c.bf16 %v5106, %v5104
    %v5149 = vpack.c.bf16 %v5109, %v5107
    %v5150 = vpack.c.bf16 %v5110, %v5108
    %v5151 = vpack.c.bf16 %v5113, %v5111
    %v5152 = vpack.c.bf16 %v5114, %v5112
    %v5153 = vpack.c.bf16 %v5117, %v5115
    %v5154 = vpack.c.bf16 %v5118, %v5116
    %v5155 = vpack.c.bf16 %v5121, %v5119
    %v5156 = vpack.c.bf16 %v5122, %v5120
    %v5157 = vpack.c.bf16 %v5125, %v5123
    %v5158 = vpack.c.bf16 %v5126, %v5124
    %v5159 = vld [vmem:[#allocation9] sm:$0xf]
    %v5160 = vld [vmem:[#allocation9 + $0x4] sm:$0xf]
    %v5161 = vld [vmem:[#allocation9 + $0x8] sm:$0xf]
    %v5162 = vld [vmem:[#allocation9 + $0xc] sm:$0xf]
    %v5163 = vld [vmem:[#allocation9 + $0x10] sm:$0xf]
    %v5164 = vld [vmem:[#allocation9 + $0x14] sm:$0xf]
    %v5165 = vld [vmem:[#allocation9 + $0x18] sm:$0xf]
    %v5166 = vld [vmem:[#allocation9 + $0x1c] sm:$0xf]
    %v5167 = vld [vmem:[#allocation9 + $0x20] sm:$0xf]
    %v5168 = vld [vmem:[#allocation9 + $0x24] sm:$0xf]
    %v5169 = vld [vmem:[#allocation9 + $0x28] sm:$0xf]
    %v5170 = vld [vmem:[#allocation9 + $0x2c] sm:$0xf]
    %v5171 = vld [vmem:[#allocation9 + $0x30] sm:$0xf]
    %v5172 = vld [vmem:[#allocation9 + $0x34] sm:$0xf]
    %v5173 = vld [vmem:[#allocation9 + $0x38] sm:$0xf]
    %v5174 = vld [vmem:[#allocation9 + $0x3c] sm:$0xf]
    %v5175 = vld [vmem:[#allocation9 + $0x40] sm:$0xf]
    %v5176 = vld [vmem:[#allocation9 + $0x44] sm:$0xf]
    %v5177 = vld [vmem:[#allocation9 + $0x48] sm:$0xf]
    %v5178 = vld [vmem:[#allocation9 + $0x4c] sm:$0xf]
    %v5179 = vld [vmem:[#allocation9 + $0x50] sm:$0xf]
    %v5180 = vld [vmem:[#allocation9 + $0x54] sm:$0xf]
    %v5181 = vld [vmem:[#allocation9 + $0x58] sm:$0xf]
    %v5182 = vld [vmem:[#allocation9 + $0x5c] sm:$0xf]
    %v5183 = vld [vmem:[#allocation9 + $0x60] sm:$0xf]
    %v5184 = vld [vmem:[#allocation9 + $0x64] sm:$0xf]
    %v5185 = vld [vmem:[#allocation9 + $0x68] sm:$0xf]
    %v5186 = vld [vmem:[#allocation9 + $0x6c] sm:$0xf]
    %v5187 = vld [vmem:[#allocation9 + $0x70] sm:$0xf]
    %v5188 = vld [vmem:[#allocation9 + $0x74] sm:$0xf]
    %v5189 = vld [vmem:[#allocation9 + $0x78] sm:$0xf]
    %v5190 = vld [vmem:[#allocation9 + $0x7c] sm:$0xf]
    %v5191 = vld [vmem:[%s6] sm:$0x1]
    %v5193 = vlaneseq
    %v5194 = vshrl.u32 %v5193, 7
    %v5195 = vsub.s32 0, %v5194
    %v5196 = vrot.slane %v5191, %v5195
    %v5230 = vunpack.c.l.b16 %v5159
    %v5231 = vunpack.c.l.b16 %v5160
    %v5232 = vunpack.c.l.b16 %v5161
    %v5233 = vunpack.c.l.b16 %v5162
    %v5234 = vunpack.c.l.b16 %v5163
    %v5235 = vunpack.c.l.b16 %v5164
    %v5236 = vunpack.c.l.b16 %v5165
    %v5237 = vunpack.c.l.b16 %v5166
    %v5238 = vunpack.c.l.b16 %v5167
    %v5239 = vunpack.c.l.b16 %v5168
    %v5240 = vunpack.c.l.b16 %v5169
    %v5241 = vunpack.c.l.b16 %v5170
    %v5242 = vunpack.c.l.b16 %v5171
    %v5243 = vunpack.c.l.b16 %v5172
    %v5244 = vunpack.c.l.b16 %v5173
    %v5245 = vunpack.c.l.b16 %v5174
    %v5246 = vunpack.c.l.b16 %v5175
    %v5247 = vunpack.c.l.b16 %v5176
    %v5248 = vunpack.c.l.b16 %v5177
    %v5249 = vunpack.c.l.b16 %v5178
    %v5250 = vunpack.c.l.b16 %v5179
    %v5251 = vunpack.c.l.b16 %v5180
    %v5252 = vunpack.c.l.b16 %v5181
    %v5253 = vunpack.c.l.b16 %v5182
    %v5254 = vunpack.c.l.b16 %v5183
    %v5255 = vunpack.c.l.b16 %v5184
    %v5256 = vunpack.c.l.b16 %v5185
    %v5257 = vunpack.c.l.b16 %v5186
    %v5258 = vunpack.c.l.b16 %v5187
    %v5259 = vunpack.c.l.b16 %v5188
    %v5260 = vunpack.c.l.b16 %v5189
    %v5261 = vunpack.c.l.b16 %v5190
    %v5262 = vpack.c.b16 %v5231, %v5230
    %v5263 = vpack.c.b16 %v5233, %v5232
    %v5264 = vpack.c.b16 %v5235, %v5234
    %v5265 = vpack.c.b16 %v5237, %v5236
    %v5266 = vpack.c.b16 %v5239, %v5238
    %v5267 = vpack.c.b16 %v5241, %v5240
    %v5268 = vpack.c.b16 %v5243, %v5242
    %v5269 = vpack.c.b16 %v5245, %v5244
    %v5270 = vpack.c.b16 %v5247, %v5246
    %v5271 = vpack.c.b16 %v5249, %v5248
    %v5272 = vpack.c.b16 %v5251, %v5250
    %v5273 = vpack.c.b16 %v5253, %v5252
    %v5274 = vpack.c.b16 %v5255, %v5254
    %v5275 = vpack.c.b16 %v5257, %v5256
    %v5276 = vpack.c.b16 %v5259, %v5258
    %v5277 = vpack.c.b16 %v5261, %v5260
    %5294 = vmatprep.subr.bf16.mxu0 0
    %5295 = vmatpush1.bf16.msra.mxu0 %v5262
    %5296 = vmatprep.subr.bf16.mxu0 0
    %5297 = vmatpush1.bf16.msra.mxu0 %v5263
    %5298 = vmatprep.subr.bf16.mxu0 0
    %5299 = vmatpush1.bf16.msra.mxu0 %v5264
    %5300 = vmatprep.subr.bf16.mxu0 0
    %5301 = vmatpush1.bf16.msra.mxu0 %v5265
    %5302 = vmatprep.subr.bf16.mxu0 0
    %5303 = vmatpush1.bf16.msra.mxu0 %v5266
    %5304 = vmatprep.subr.bf16.mxu0 0
    %5305 = vmatpush1.bf16.msra.mxu0 %v5267
    %5306 = vmatprep.subr.bf16.mxu0 0
    %5307 = vmatpush1.bf16.msra.mxu0 %v5268
    %5308 = vmatprep.subr.bf16.mxu0 0
    %5309 = vmatpush1.bf16.msra.mxu0 %v5269
    %5310 = vmatprep.subr.bf16.mxu0 0
    %5311 = vmatpush1.bf16.msra.mxu0 %v5270
    %5312 = vmatprep.subr.bf16.mxu0 0
    %5313 = vmatpush1.bf16.msra.mxu0 %v5271
    %5314 = vmatprep.subr.bf16.mxu0 0
    %5315 = vmatpush1.bf16.msra.mxu0 %v5272
    %5316 = vmatprep.subr.bf16.mxu0 0
    %5317 = vmatpush1.bf16.msra.mxu0 %v5273
    %5318 = vmatprep.subr.bf16.mxu0 0
    %5319 = vmatpush1.bf16.msra.mxu0 %v5274
    %5320 = vmatprep.subr.bf16.mxu0 0
    %5321 = vmatpush1.bf16.msra.mxu0 %v5275
    %5322 = vmatprep.subr.bf16.mxu0 0
    %5323 = vmatpush1.bf16.msra.mxu0 %v5276
    %5324 = vmatprep.subr.bf16.mxu0 0
    %5325 = vmatpush1.bf16.msra.mxu0 %v5277
    %5326 = vmatprep.mubr.bf16.mxu0 %v5128
    %5327 = vmatmul.mubr.bf16.gmra.mrb[0].mxu0 %v5127
    %v5328 = vpop.f32.mrb[0].mxu0
    %v5329 = vadd.f32 %v5196, %v5328
    %v5330 = vpop.f32.mrb[0].mxu0
    %v5331 = vpop.f32.mrb[0].mxu0
    %v5332 = vadd.f32 %v5196, %v5331
    %v5333 = vpop.f32.mrb[0].mxu0
    %5334 = vmatprep.mubr.bf16.mxu0 %v5130
    %5335 = vmatmul.mubr.bf16.gmra.mrb[0].mxu0 %v5129
    %v5336 = vpop.f32.mrb[0].mxu0
    %v5337 = vadd.f32 %v5196, %v5336
    %v5338 = vpop.f32.mrb[0].mxu0
    %v5339 = vpop.f32.mrb[0].mxu0
    %v5340 = vadd.f32 %v5196, %v5339
    %v5341 = vpop.f32.mrb[0].mxu0
    %5342 = vmatprep.mubr.bf16.mxu0 %v5132
    %5343 = vmatmul.mubr.bf16.gmra.mrb[0].mxu0 %v5131
    %v5344 = vpop.f32.mrb[0].mxu0
    %v5345 = vadd.f32 %v5196, %v5344
    %v5346 = vpop.f32.mrb[0].mxu0
    %v5347 = vpop.f32.mrb[0].mxu0
    %v5348 = vadd.f32 %v5196, %v5347
    %v5349 = vpop.f32.mrb[0].mxu0
    %5350 = vmatprep.mubr.bf16.mxu0 %v5134
    %5351 = vmatmul.mubr.bf16.gmra.mrb[0].mxu0 %v5133
    %v5352 = vpop.f32.mrb[0].mxu0
    %v5353 = vadd.f32 %v5196, %v5352
    %v5354 = vpop.f32.mrb[0].mxu0
    %v5355 = vpop.f32.mrb[0].mxu0
    %v5356 = vadd.f32 %v5196, %v5355
    %v5357 = vpop.f32.mrb[0].mxu0
    %5358 = vmatprep.mubr.bf16.mxu0 %v5136
    %5359 = vmatmul.mubr.bf16.gmra.mrb[0].mxu0 %v5135
    %v5360 = vpop.f32.mrb[0].mxu0
    %v5361 = vadd.f32 %v5196, %v5360
    %v5362 = vpop.f32.mrb[0].mxu0
    %v5363 = vpop.f32.mrb[0].mxu0
    %v5364 = vadd.f32 %v5196, %v5363
    %v5365 = vpop.f32.mrb[0].mxu0
    %5366 = vmatprep.mubr.bf16.mxu0 %v5138
    %5367 = vmatmul.mubr.bf16.gmra.mrb[0].mxu0 %v5137
    %v5368 = vpop.f32.mrb[0].mxu0
    %v5369 = vadd.f32 %v5196, %v5368
    %v5370 = vpop.f32.mrb[0].mxu0
    %v5371 = vpop.f32.mrb[0].mxu0
    %v5372 = vadd.f32 %v5196, %v5371
    %v5373 = vpop.f32.mrb[0].mxu0
    %5374 = vmatprep.mubr.bf16.mxu0 %v5140
    %5375 = vmatmul.mubr.bf16.gmra.mrb[0].mxu0 %v5139
    %v5376 = vpop.f32.mrb[0].mxu0
    %v5377 = vadd.f32 %v5196, %v5376
    %v5378 = vpop.f32.mrb[0].mxu0
    %v5379 = vpop.f32.mrb[0].mxu0
    %v5380 = vadd.f32 %v5196, %v5379
    %v5381 = vpop.f32.mrb[0].mxu0
    %5382 = vmatprep.mubr.bf16.mxu0 %v5142
    %5383 = vmatmul.mubr.bf16.gmra.mrb[0].mxu0 %v5141
    %v5384 = vpop.f32.mrb[0].mxu0
    %v5385 = vadd.f32 %v5196, %v5384
    %v5386 = vpop.f32.mrb[0].mxu0
    %v5387 = vpop.f32.mrb[0].mxu0
    %v5388 = vadd.f32 %v5196, %v5387
    %v5389 = vpop.f32.mrb[0].mxu0
    %5390 = vmatprep.mubr.bf16.mxu0 %v5144
    %5391 = vmatmul.mubr.bf16.gmra.mrb[0].mxu0 %v5143
    %v5392 = vpop.f32.mrb[0].mxu0
    %v5393 = vadd.f32 %v5196, %v5392
    %v5394 = vpop.f32.mrb[0].mxu0
    %v5395 = vpop.f32.mrb[0].mxu0
    %v5396 = vadd.f32 %v5196, %v5395
    %v5397 = vpop.f32.mrb[0].mxu0
    %5398 = vmatprep.mubr.bf16.mxu0 %v5146
    %5399 = vmatmul.mubr.bf16.gmra.mrb[0].mxu0 %v5145
    %v5400 = vpop.f32.mrb[0].mxu0
    %v5401 = vadd.f32 %v5196, %v5400
    %v5402 = vpop.f32.mrb[0].mxu0
    %v5403 = vpop.f32.mrb[0].mxu0
    %v5404 = vadd.f32 %v5196, %v5403
    %v5405 = vpop.f32.mrb[0].mxu0
    %5406 = vmatprep.mubr.bf16.mxu0 %v5148
    %5407 = vmatmul.mubr.bf16.gmra.mrb[0].mxu0 %v5147
    %v5408 = vpop.f32.mrb[0].mxu0
    %v5409 = vadd.f32 %v5196, %v5408
    %v5410 = vpop.f32.mrb[0].mxu0
    %v5411 = vpop.f32.mrb[0].mxu0
    %v5412 = vadd.f32 %v5196, %v5411
    %v5413 = vpop.f32.mrb[0].mxu0
    %5414 = vmatprep.mubr.bf16.mxu0 %v5150
    %5415 = vmatmul.mubr.bf16.gmra.mrb[0].mxu0 %v5149
    %v5416 = vpop.f32.mrb[0].mxu0
    %v5417 = vadd.f32 %v5196, %v5416
    %v5418 = vpop.f32.mrb[0].mxu0
    %v5419 = vpop.f32.mrb[0].mxu0
    %v5420 = vadd.f32 %v5196, %v5419
    %v5421 = vpop.f32.mrb[0].mxu0
    %5422 = vmatprep.mubr.bf16.mxu0 %v5152
    %5423 = vmatmul.mubr.bf16.gmra.mrb[0].mxu0 %v5151
    %v5424 = vpop.f32.mrb[0].mxu0
    %v5425 = vadd.f32 %v5196, %v5424
    %v5426 = vpop.f32.mrb[0].mxu0
    %v5427 = vpop.f32.mrb[0].mxu0
    %v5428 = vadd.f32 %v5196, %v5427
    %v5429 = vpop.f32.mrb[0].mxu0
    %5430 = vmatprep.mubr.bf16.mxu0 %v5154
    %5431 = vmatmul.mubr.bf16.gmra.mrb[0].mxu0 %v5153
    %v5432 = vpop.f32.mrb[0].mxu0
    %v5433 = vadd.f32 %v5196, %v5432
    %v5434 = vpop.f32.mrb[0].mxu0
    %v5435 = vpop.f32.mrb[0].mxu0
    %v5436 = vadd.f32 %v5196, %v5435
    %v5437 = vpop.f32.mrb[0].mxu0
    %5438 = vmatprep.mubr.bf16.mxu0 %v5156
    %5439 = vmatmul.mubr.bf16.gmra.mrb[0].mxu0 %v5155
    %v5440 = vpop.f32.mrb[0].mxu0
    %v5441 = vadd.f32 %v5196, %v5440
    %v5442 = vpop.f32.mrb[0].mxu0
    %v5443 = vpop.f32.mrb[0].mxu0
    %v5444 = vadd.f32 %v5196, %v5443
    %v5445 = vpop.f32.mrb[0].mxu0
    %5446 = vmatprep.mubr.bf16.mxu0 %v5158
    %5447 = vmatmul.mubr.bf16.gmra.mrb[0].mxu0 %v5157
    %v5448 = vpop.f32.mrb[0].mxu0
    %v5449 = vadd.f32 %v5196, %v5448
    %v5450 = vpop.f32.mrb[0].mxu0
    %v5451 = vpop.f32.mrb[0].mxu0
    %v5452 = vadd.f32 %v5196, %v5451
    %v5453 = vpop.f32.mrb[0].mxu0
    %5454 = vdwg.mxu0
    %vm5455 = vcmp.gt.f32.partialorder %v5329, 0.0
    %vm5456 = vcmp.gt.f32.partialorder %v5332, 0.0
    %vm5457 = vcmp.gt.f32.partialorder %v5337, 0.0
    %vm5458 = vcmp.gt.f32.partialorder %v5340, 0.0
    %vm5459 = vcmp.gt.f32.partialorder %v5345, 0.0
    %vm5460 = vcmp.gt.f32.partialorder %v5348, 0.0
    %vm5461 = vcmp.gt.f32.partialorder %v5353, 0.0
    %vm5462 = vcmp.gt.f32.partialorder %v5356, 0.0
    %vm5463 = vcmp.gt.f32.partialorder %v5361, 0.0
    %vm5464 = vcmp.gt.f32.partialorder %v5364, 0.0
    %vm5465 = vcmp.gt.f32.partialorder %v5369, 0.0
    %vm5466 = vcmp.gt.f32.partialorder %v5372, 0.0
    %vm5467 = vcmp.gt.f32.partialorder %v5377, 0.0
    %vm5468 = vcmp.gt.f32.partialorder %v5380, 0.0
    %vm5469 = vcmp.gt.f32.partialorder %v5385, 0.0
    %vm5470 = vcmp.gt.f32.partialorder %v5388, 0.0
    %vm5471 = vcmp.gt.f32.partialorder %v5393, 0.0
    %vm5472 = vcmp.gt.f32.partialorder %v5396, 0.0
    %vm5473 = vcmp.gt.f32.partialorder %v5401, 0.0
    %vm5474 = vcmp.gt.f32.partialorder %v5404, 0.0
    %vm5475 = vcmp.gt.f32.partialorder %v5409, 0.0
    %vm5476 = vcmp.gt.f32.partialorder %v5412, 0.0
    %vm5477 = vcmp.gt.f32.partialorder %v5417, 0.0
    %vm5478 = vcmp.gt.f32.partialorder %v5420, 0.0
    %vm5479 = vcmp.gt.f32.partialorder %v5425, 0.0
    %vm5480 = vcmp.gt.f32.partialorder %v5428, 0.0
    %vm5481 = vcmp.gt.f32.partialorder %v5433, 0.0
    %vm5482 = vcmp.gt.f32.partialorder %v5436, 0.0
    %vm5483 = vcmp.gt.f32.partialorder %v5441, 0.0
    %vm5484 = vcmp.gt.f32.partialorder %v5444, 0.0
    %vm5485 = vcmp.gt.f32.partialorder %v5449, 0.0
    %vm5486 = vcmp.gt.f32.partialorder %v5452, 0.0
    %v5487 = vmul.f32 %v5329, 0.2
    %v5488 = vmul.f32 %v5332, 0.2
    %v5489 = vmul.f32 %v5337, 0.2
    %v5490 = vmul.f32 %v5340, 0.2
    %v5491 = vmul.f32 %v5345, 0.2
    %v5492 = vmul.f32 %v5348, 0.2
    %v5493 = vmul.f32 %v5353, 0.2
    %v5494 = vmul.f32 %v5356, 0.2
    %v5495 = vmul.f32 %v5361, 0.2
    %v5496 = vmul.f32 %v5364, 0.2
    %v5497 = vmul.f32 %v5369, 0.2
    %v5498 = vmul.f32 %v5372, 0.2
    %v5499 = vmul.f32 %v5377, 0.2
    %v5500 = vmul.f32 %v5380, 0.2
    %v5501 = vmul.f32 %v5385, 0.2
    %v5502 = vmul.f32 %v5388, 0.2
    %v5503 = vmul.f32 %v5393, 0.2
    %v5504 = vmul.f32 %v5396, 0.2
    %v5505 = vmul.f32 %v5401, 0.2
    %v5506 = vmul.f32 %v5404, 0.2
    %v5507 = vmul.f32 %v5409, 0.2
    %v5508 = vmul.f32 %v5412, 0.2
    %v5509 = vmul.f32 %v5417, 0.2
    %v5510 = vmul.f32 %v5420, 0.2
    %v5511 = vmul.f32 %v5425, 0.2
    %v5512 = vmul.f32 %v5428, 0.2
    %v5513 = vmul.f32 %v5433, 0.2
    %v5514 = vmul.f32 %v5436, 0.2
    %v5515 = vmul.f32 %v5441, 0.2
    %v5516 = vmul.f32 %v5444, 0.2
    %v5517 = vmul.f32 %v5449, 0.2
    %v5518 = vmul.f32 %v5452, 0.2
    %v5519 = vsel %vm5455, %v5329, %v5487
    %v5520 = vsel %vm5456, %v5332, %v5488
    %v5521 = vsel %vm5457, %v5337, %v5489
    %v5522 = vsel %vm5458, %v5340, %v5490
    %v5523 = vsel %vm5459, %v5345, %v5491
    %v5524 = vsel %vm5460, %v5348, %v5492
    %v5525 = vsel %vm5461, %v5353, %v5493
    %v5526 = vsel %vm5462, %v5356, %v5494
    %v5527 = vsel %vm5463, %v5361, %v5495
    %v5528 = vsel %vm5464, %v5364, %v5496
    %v5529 = vsel %vm5465, %v5369, %v5497
    %v5530 = vsel %vm5466, %v5372, %v5498
    %v5531 = vsel %vm5467, %v5377, %v5499
    %v5532 = vsel %vm5468, %v5380, %v5500
    %v5533 = vsel %vm5469, %v5385, %v5501
    %v5534 = vsel %vm5470, %v5388, %v5502
    %v5535 = vsel %vm5471, %v5393, %v5503
    %v5536 = vsel %vm5472, %v5396, %v5504
    %v5537 = vsel %vm5473, %v5401, %v5505
    %v5538 = vsel %vm5474, %v5404, %v5506
    %v5539 = vsel %vm5475, %v5409, %v5507
    %v5540 = vsel %vm5476, %v5412, %v5508
    %v5541 = vsel %vm5477, %v5417, %v5509
    %v5542 = vsel %vm5478, %v5420, %v5510
    %v5543 = vsel %vm5479, %v5425, %v5511
    %v5544 = vsel %vm5480, %v5428, %v5512
    %v5545 = vsel %vm5481, %v5433, %v5513
    %v5546 = vsel %vm5482, %v5436, %v5514
    %v5547 = vsel %vm5483, %v5441, %v5515
    %v5548 = vsel %vm5484, %v5444, %v5516
    %v5549 = vsel %vm5485, %v5449, %v5517
    %v5550 = vsel %vm5486, %v5452, %v5518
    %v5551 = vld [vmem:[%s7] sm:$0x1]
    %v5553 = vlaneseq
    %v5554 = vshrl.u32 %v5553, 7
    %v5555 = vsub.s32 0, %v5554
    %v5556 = vrot.slane %v5551, %v5555
    %v5558 = vmul.f32 %v5519, %v5556
    %v5559 = vmul.f32 %v5520, %v5556
    %v5560 = vmul.f32 %v5521, %v5556
    %v5561 = vmul.f32 %v5522, %v5556
    %v5562 = vmul.f32 %v5523, %v5556
    %v5563 = vmul.f32 %v5524, %v5556
    %v5564 = vmul.f32 %v5525, %v5556
    %v5565 = vmul.f32 %v5526, %v5556
    %v5566 = vmul.f32 %v5527, %v5556
    %v5567 = vmul.f32 %v5528, %v5556
    %v5568 = vmul.f32 %v5529, %v5556
    %v5569 = vmul.f32 %v5530, %v5556
    %v5570 = vmul.f32 %v5531, %v5556
    %v5571 = vmul.f32 %v5532, %v5556
    %v5572 = vmul.f32 %v5533, %v5556
    %v5573 = vmul.f32 %v5534, %v5556
    %v5574 = vmul.f32 %v5535, %v5556
    %v5575 = vmul.f32 %v5536, %v5556
    %v5576 = vmul.f32 %v5537, %v5556
    %v5577 = vmul.f32 %v5538, %v5556
    %v5578 = vmul.f32 %v5539, %v5556
    %v5579 = vmul.f32 %v5540, %v5556
    %v5580 = vmul.f32 %v5541, %v5556
    %v5581 = vmul.f32 %v5542, %v5556
    %v5582 = vmul.f32 %v5543, %v5556
    %v5583 = vmul.f32 %v5544, %v5556
    %v5584 = vmul.f32 %v5545, %v5556
    %v5585 = vmul.f32 %v5546, %v5556
    %v5586 = vmul.f32 %v5547, %v5556
    %v5587 = vmul.f32 %v5548, %v5556
    %v5588 = vmul.f32 %v5549, %v5556
    %v5589 = vmul.f32 %v5550, %v5556
    %5590 = vadd.xlane.f32.xlu0 %v5558
    %v5591 = vpop.xlane.xlu0 %5590
    %5592 = vadd.xlane.f32.xlu0 %v5559
    %v5593 = vpop.xlane.xlu0 %5592
    %5594 = vadd.xlane.f32.xlu0 %v5560
    %v5595 = vpop.xlane.xlu0 %5594
    %5596 = vadd.xlane.f32.xlu0 %v5561
    %v5597 = vpop.xlane.xlu0 %5596
    %5598 = vadd.xlane.f32.xlu0 %v5562
    %v5599 = vpop.xlane.xlu0 %5598
    %5600 = vadd.xlane.f32.xlu0 %v5563
    %v5601 = vpop.xlane.xlu0 %5600
    %5602 = vadd.xlane.f32.xlu0 %v5564
    %v5603 = vpop.xlane.xlu0 %5602
    %5604 = vadd.xlane.f32.xlu0 %v5565
    %v5605 = vpop.xlane.xlu0 %5604
    %5606 = vadd.xlane.f32.xlu0 %v5566
    %v5607 = vpop.xlane.xlu0 %5606
    %5608 = vadd.xlane.f32.xlu0 %v5567
    %v5609 = vpop.xlane.xlu0 %5608
    %5610 = vadd.xlane.f32.xlu0 %v5568
    %v5611 = vpop.xlane.xlu0 %5610
    %5612 = vadd.xlane.f32.xlu0 %v5569
    %v5613 = vpop.xlane.xlu0 %5612
    %5614 = vadd.xlane.f32.xlu0 %v5570
    %v5615 = vpop.xlane.xlu0 %5614
    %5616 = vadd.xlane.f32.xlu0 %v5571
    %v5617 = vpop.xlane.xlu0 %5616
    %5618 = vadd.xlane.f32.xlu0 %v5572
    %v5619 = vpop.xlane.xlu0 %5618
    %5620 = vadd.xlane.f32.xlu0 %v5573
    %v5621 = vpop.xlane.xlu0 %5620
    %5622 = vadd.xlane.f32.xlu0 %v5574
    %v5623 = vpop.xlane.xlu0 %5622
    %5624 = vadd.xlane.f32.xlu0 %v5575
    %v5625 = vpop.xlane.xlu0 %5624
    %5626 = vadd.xlane.f32.xlu0 %v5576
    %v5627 = vpop.xlane.xlu0 %5626
    %5628 = vadd.xlane.f32.xlu0 %v5577
    %v5629 = vpop.xlane.xlu0 %5628
    %5630 = vadd.xlane.f32.xlu0 %v5578
    %v5631 = vpop.xlane.xlu0 %5630
    %5632 = vadd.xlane.f32.xlu0 %v5579
    %v5633 = vpop.xlane.xlu0 %5632
    %5634 = vadd.xlane.f32.xlu0 %v5580
    %v5635 = vpop.xlane.xlu0 %5634
    %5636 = vadd.xlane.f32.xlu0 %v5581
    %v5637 = vpop.xlane.xlu0 %5636
    %5638 = vadd.xlane.f32.xlu0 %v5582
    %v5639 = vpop.xlane.xlu0 %5638
    %5640 = vadd.xlane.f32.xlu0 %v5583
    %v5641 = vpop.xlane.xlu0 %5640
    %5642 = vadd.xlane.f32.xlu0 %v5584
    %v5643 = vpop.xlane.xlu0 %5642
    %5644 = vadd.xlane.f32.xlu0 %v5585
    %v5645 = vpop.xlane.xlu0 %5644
    %5646 = vadd.xlane.f32.xlu0 %v5586
    %v5647 = vpop.xlane.xlu0 %5646
    %5648 = vadd.xlane.f32.xlu0 %v5587
    %v5649 = vpop.xlane.xlu0 %5648
    %5650 = vadd.xlane.f32.xlu0 %v5588
    %v5651 = vpop.xlane.xlu0 %5650
    %5652 = vadd.xlane.f32.xlu0 %v5589
    %v5653 = vpop.xlane.xlu0 %5652
    %v5654 = vld [vmem:[#allocation2] sm:$0x1]
    %v5656 = vlaneseq
    %v5657 = vshrl.u32 %v5656, 7
    %v5658 = vsub.s32 0, %v5657
    %v5659 = vrot.slane %v5654, %v5658
    %v5661 = vadd.f32 %v5591, %v5659
    %v5662 = vadd.f32 %v5593, %v5659
    %v5663 = vadd.f32 %v5595, %v5659
    %v5664 = vadd.f32 %v5597, %v5659
    %v5665 = vadd.f32 %v5599, %v5659
    %v5666 = vadd.f32 %v5601, %v5659
    %v5667 = vadd.f32 %v5603, %v5659
    %v5668 = vadd.f32 %v5605, %v5659
    %v5669 = vadd.f32 %v5607, %v5659
    %v5670 = vadd.f32 %v5609, %v5659
    %v5671 = vadd.f32 %v5611, %v5659
    %v5672 = vadd.f32 %v5613, %v5659
    %v5673 = vadd.f32 %v5615, %v5659
    %v5674 = vadd.f32 %v5617, %v5659
    %v5675 = vadd.f32 %v5619, %v5659
    %v5676 = vadd.f32 %v5621, %v5659
    %v5677 = vadd.f32 %v5623, %v5659
    %v5678 = vadd.f32 %v5625, %v5659
    %v5679 = vadd.f32 %v5627, %v5659
    %v5680 = vadd.f32 %v5629, %v5659
    %v5681 = vadd.f32 %v5631, %v5659
    %v5682 = vadd.f32 %v5633, %v5659
    %v5683 = vadd.f32 %v5635, %v5659
    %v5684 = vadd.f32 %v5637, %v5659
    %v5685 = vadd.f32 %v5639, %v5659
    %v5686 = vadd.f32 %v5641, %v5659
    %v5687 = vadd.f32 %v5643, %v5659
    %v5688 = vadd.f32 %v5645, %v5659
    %v5689 = vadd.f32 %v5647, %v5659
    %v5690 = vadd.f32 %v5649, %v5659
    %v5691 = vadd.f32 %v5651, %v5659
    %v5692 = vadd.f32 %v5653, %v5659
    %5694 = vset.pattern.permute.xlu0 0
    %5695 = vperm.xlu0 %5694, %v5661
    %v5696 = vpop.permute.xlu0 %5695
    %5699 = vset.pattern.permute.xlu0 0
    %5700 = vperm.xlu0 %5699, %v5662
    %v5701 = vpop.permute.xlu0 %5700
    %5704 = vset.pattern.permute.xlu0 0
    %5705 = vperm.xlu0 %5704, %v5663
    %v5706 = vpop.permute.xlu0 %5705
    %5709 = vset.pattern.permute.xlu0 0
    %5710 = vperm.xlu0 %5709, %v5664
    %v5711 = vpop.permute.xlu0 %5710
    %5714 = vset.pattern.permute.xlu0 0
    %5715 = vperm.xlu0 %5714, %v5665
    %v5716 = vpop.permute.xlu0 %5715
    %5719 = vset.pattern.permute.xlu0 0
    %5720 = vperm.xlu0 %5719, %v5666
    %v5721 = vpop.permute.xlu0 %5720
    %5724 = vset.pattern.permute.xlu0 0
    %5725 = vperm.xlu0 %5724, %v5667
    %v5726 = vpop.permute.xlu0 %5725
    %5729 = vset.pattern.permute.xlu0 0
    %5730 = vperm.xlu0 %5729, %v5668
    %v5731 = vpop.permute.xlu0 %5730
    %5734 = vset.pattern.permute.xlu0 0
    %5735 = vperm.xlu0 %5734, %v5669
    %v5736 = vpop.permute.xlu0 %5735
    %5739 = vset.pattern.permute.xlu0 0
    %5740 = vperm.xlu0 %5739, %v5670
    %v5741 = vpop.permute.xlu0 %5740
    %5744 = vset.pattern.permute.xlu0 0
    %5745 = vperm.xlu0 %5744, %v5671
    %v5746 = vpop.permute.xlu0 %5745
    %5749 = vset.pattern.permute.xlu0 0
    %5750 = vperm.xlu0 %5749, %v5672
    %v5751 = vpop.permute.xlu0 %5750
    %5754 = vset.pattern.permute.xlu0 0
    %5755 = vperm.xlu0 %5754, %v5673
    %v5756 = vpop.permute.xlu0 %5755
    %5759 = vset.pattern.permute.xlu0 0
    %5760 = vperm.xlu0 %5759, %v5674
    %v5761 = vpop.permute.xlu0 %5760
    %5764 = vset.pattern.permute.xlu0 0
    %5765 = vperm.xlu0 %5764, %v5675
    %v5766 = vpop.permute.xlu0 %5765
    %5769 = vset.pattern.permute.xlu0 0
    %5770 = vperm.xlu0 %5769, %v5676
    %v5771 = vpop.permute.xlu0 %5770
    %5774 = vset.pattern.permute.xlu0 0
    %5775 = vperm.xlu0 %5774, %v5677
    %v5776 = vpop.permute.xlu0 %5775
    %5779 = vset.pattern.permute.xlu0 0
    %5780 = vperm.xlu0 %5779, %v5678
    %v5781 = vpop.permute.xlu0 %5780
    %5784 = vset.pattern.permute.xlu0 0
    %5785 = vperm.xlu0 %5784, %v5679
    %v5786 = vpop.permute.xlu0 %5785
    %5789 = vset.pattern.permute.xlu0 0
    %5790 = vperm.xlu0 %5789, %v5680
    %v5791 = vpop.permute.xlu0 %5790
    %5794 = vset.pattern.permute.xlu0 0
    %5795 = vperm.xlu0 %5794, %v5681
    %v5796 = vpop.permute.xlu0 %5795
    %5799 = vset.pattern.permute.xlu0 0
    %5800 = vperm.xlu0 %5799, %v5682
    %v5801 = vpop.permute.xlu0 %5800
    %5804 = vset.pattern.permute.xlu0 0
    %5805 = vperm.xlu0 %5804, %v5683
    %v5806 = vpop.permute.xlu0 %5805
    %5809 = vset.pattern.permute.xlu0 0
    %5810 = vperm.xlu0 %5809, %v5684
    %v5811 = vpop.permute.xlu0 %5810
    %5814 = vset.pattern.permute.xlu0 0
    %5815 = vperm.xlu0 %5814, %v5685
    %v5816 = vpop.permute.xlu0 %5815
    %5819 = vset.pattern.permute.xlu0 0
    %5820 = vperm.xlu0 %5819, %v5686
    %v5821 = vpop.permute.xlu0 %5820
    %5824 = vset.pattern.permute.xlu0 0
    %5825 = vperm.xlu0 %5824, %v5687
    %v5826 = vpop.permute.xlu0 %5825
    %5829 = vset.pattern.permute.xlu0 0
    %5830 = vperm.xlu0 %5829, %v5688
    %v5831 = vpop.permute.xlu0 %5830
    %5834 = vset.pattern.permute.xlu0 0
    %5835 = vperm.xlu0 %5834, %v5689
    %v5836 = vpop.permute.xlu0 %5835
    %5839 = vset.pattern.permute.xlu0 0
    %5840 = vperm.xlu0 %5839, %v5690
    %v5841 = vpop.permute.xlu0 %5840
    %5844 = vset.pattern.permute.xlu0 0
    %5845 = vperm.xlu0 %5844, %v5691
    %v5846 = vpop.permute.xlu0 %5845
    %5849 = vset.pattern.permute.xlu0 0
    %5850 = vperm.xlu0 %5849, %v5692
    %v5851 = vpop.permute.xlu0 %5850
    %5853 = vst [vmem:[#allocation11] sm:$0xff] %v5696
    %5854 = vst [vmem:[#allocation11 + $0x8] sm:$0xff] %v5701
    %5855 = vst [vmem:[#allocation11 + $0x10] sm:$0xff] %v5706
    %5856 = vst [vmem:[#allocation11 + $0x18] sm:$0xff] %v5711
    %5857 = vst [vmem:[#allocation11 + $0x20] sm:$0xff] %v5716
    %5858 = vst [vmem:[#allocation11 + $0x28] sm:$0xff] %v5721
    %5859 = vst [vmem:[#allocation11 + $0x30] sm:$0xff] %v5726
    %5860 = vst [vmem:[#allocation11 + $0x38] sm:$0xff] %v5731
    %5861 = vst [vmem:[#allocation11 + $0x40] sm:$0xff] %v5736
    %5862 = vst [vmem:[#allocation11 + $0x48] sm:$0xff] %v5741
    %5863 = vst [vmem:[#allocation11 + $0x50] sm:$0xff] %v5746
    %5864 = vst [vmem:[#allocation11 + $0x58] sm:$0xff] %v5751
    %5865 = vst [vmem:[#allocation11 + $0x60] sm:$0xff] %v5756
    %5866 = vst [vmem:[#allocation11 + $0x68] sm:$0xff] %v5761
    %5867 = vst [vmem:[#allocation11 + $0x70] sm:$0xff] %v5766
    %5868 = vst [vmem:[#allocation11 + $0x78] sm:$0xff] %v5771
    %5869 = vst [vmem:[#allocation11 + $0x80] sm:$0xff] %v5776
    %5870 = vst [vmem:[#allocation11 + $0x88] sm:$0xff] %v5781
    %5871 = vst [vmem:[#allocation11 + $0x90] sm:$0xff] %v5786
    %5872 = vst [vmem:[#allocation11 + $0x98] sm:$0xff] %v5791
    %5873 = vst [vmem:[#allocation11 + $0xa0] sm:$0xff] %v5796
    %5874 = vst [vmem:[#allocation11 + $0xa8] sm:$0xff] %v5801
    %5875 = vst [vmem:[#allocation11 + $0xb0] sm:$0xff] %v5806
    %5876 = vst [vmem:[#allocation11 + $0xb8] sm:$0xff] %v5811
    %5877 = vst [vmem:[#allocation11 + $0xc0] sm:$0xff] %v5816
    %5878 = vst [vmem:[#allocation11 + $0xc8] sm:$0xff] %v5821
    %5879 = vst [vmem:[#allocation11 + $0xd0] sm:$0xff] %v5826
    %5880 = vst [vmem:[#allocation11 + $0xd8] sm:$0xff] %v5831
    %5881 = vst [vmem:[#allocation11 + $0xe0] sm:$0xff] %v5836
    %5882 = vst [vmem:[#allocation11 + $0xe8] sm:$0xff] %v5841
    %5883 = vst [vmem:[#allocation11 + $0xf0] sm:$0xff] %v5846
    %5884 = vst [vmem:[#allocation11 + $0xf8] sm:$0xff] %v5851
    // Predicated region
    $region54: #{tpu_custom_call.1} parent=1 // pred_check
      _
    $region55: #{tpu_custom_call.1} parent=1 // pred_check_branch
      %5886 = sbr.rel (0) target = $region57
    $region56: #{tpu_custom_call.1} parent=1 // pred_region
      %s5888 = ssub.s32 4096, 4096
      %5889 = vsyncadd [#allocation5], %s5888
      %s5890 = sshll.u32 [#allocation11], 4
      %s5891 = int_to_ptr.vmem [resolvable:$true] %s5890
      %5896 = dma.vmem_to_hbm [thread:$0]  %s5891, 4096, %s9, [#allocation5], 128, 128, 8
    $region57: #{tpu_custom_call.1} parent=1 // pred_fallthru
      _
    // Predicated region
    $region58: #{tpu_custom_call.1} parent=1 // pred_check
      _
    $region59: #{tpu_custom_call.1} parent=1 // pred_check_branch
      %5898 = sbr.rel (0) target = $region61
    $region60: #{tpu_custom_call.1} parent=1 // pred_region
      %5899 = dma.done [#allocation5], 4096
    $region61: #{tpu_custom_call.1} parent=1 // pred_fallthru
      _
    %5900 = vsyncpa [#allocation4], 1
    %5901 = vsyncpa [#allocation7], 1
    %5902 = vsyncpa [#allocation10], 1
    %5903 = vsyncpa [#allocation5], 1

</llo_original>
